<compile_context>
chip_gen: v7x
topology: tpu7x:2x2x1
jax: 0.10.0
libtpu: 0.0.40
codegen_flags: <defaults>
</compile_context>

<pallas_src>
import jax
import jax.numpy as jnp
from jax.experimental import pallas as pl
from jax.experimental.pallas import tpu as pltpu

NUM_BINS = 256
FINE_BITS = 5
NF = 1 << FINE_BITS          # fine bins   (b & 31)
NC = NUM_BINS // NF          # coarse bins (b >> 5)
SUB = 8                      # sublane rows per input block


def _hist_kernel(y_ref, x_ref, cnt_ref, hy_ref, hx_ref):
    # y_ref / x_ref : (1, 1, SUB, LB)    pixel slab of the current channel
    # cnt_ref       : (1, 1, 2, NC, NF)  raw bin counts (row 0: y, row 1: x)
    # hy_ref/hx_ref : (NC, NF) f32 VMEM accumulators, resident across the reduction
    n = pl.program_id(2)
    t = pl.program_id(3)
    first = jnp.logical_and(n == 0, t == 0)
    last = jnp.logical_and(n == pl.num_programs(2) - 1,
                           t == pl.num_programs(3) - 1)

    @pl.when(first)
    def _init():
        hy_ref[...] = jnp.zeros_like(hy_ref)
        hx_ref[...] = jnp.zeros_like(hx_ref)

    lb = y_ref.shape[-1]
    # Built once per step, shared by both images (amortized iota/broadcast).
    c_ids = jax.lax.broadcasted_iota(jnp.int32, (SUB, NC, lb), 1)
    f_ids = jax.lax.broadcasted_iota(jnp.int32, (SUB, NF, lb), 1)

    def tile_counts(ref):
        v = ref[0, 0].astype(jnp.float32)                    # in-kernel cast (free)
        v = jnp.clip(v, 0.0, 1.0)
        b = (v * (NUM_BINS - 1)).astype(jnp.int32)            # trunc == torch .long()
        coarse = jnp.right_shift(b, FINE_BITS)                 # b // 32
        fine = jnp.bitwise_and(b, NF - 1)                      # b % 32
        # Pixels stay on the 128-lane axis; bin ids live on sublanes.
        c_oh = (coarse[:, None, :] == c_ids).astype(jnp.bfloat16)   # (SUB, NC, LB)
        f_oh = (fine[:, None, :] == f_ids).astype(jnp.bfloat16)     # (SUB, NF, LB)
        # MXU contraction over the pixel/lane axis (QK^T pattern, batch = SUB rows).
        prod = jnp.einsum("rcl,rfl->rcf", c_oh, f_oh,
                          preferred_element_type=jnp.float32)        # (SUB, NC, NF)
        return jnp.sum(prod, axis=0)                                  # (NC, NF)

    # Two in-place full-ref adds (no concatenate in the hot loop).
    hy_ref[...] = hy_ref[...] + tile_counts(y_ref)
    hx_ref[...] = hx_ref[...] + tile_counts(x_ref)

    @pl.when(last)
    def _write():
        cnt_ref[...] = jnp.stack([hy_ref[...], hx_ref[...]])[None, None]


def histogram_loss(x, y, num_bins=NUM_BINS):
    """HistogramLoss.forward(x, y): KL(hist(y) || hist(x)) summed over R,G,B."""
    assert num_bins == NUM_BINS
    assert x.shape == y.shape and x.ndim == 4
    N, C, H, W = x.shape
    hw = H * W
    # TODO(synk): pad/mask path for spatial sizes not divisible by 128 not implemented.
    assert hw % 128 == 0, "demo assumes H*W divisible by 128"

    hwd8 = hw // SUB
    # Lane-block size: big blocks (up to 8*4096 px) amortize per-step overhead while
    # keeping one-hot intermediates well under the v7x 64 MiB VMEM budget.
    MAX_LB = 4096
    lb = hwd8
    if hwd8 > MAX_LB:
        for cand in range(MAX_LB, 127, -128):
            if hwd8 % cand == 0:
                lb = cand
                break
    nt = hwd8 // lb

    # 2-way split of the batch reduction -> 6-wide parallel (C, split) grid so the
    # two v7x TensorCores get a balanced share (no effect on single-core v5e/v6e).
    split = 2 if N % 2 == 0 else 1
    nh = N // split

    # Zero-copy NCHW -> (N, C, 8, HW/8); no wrapper-side dtype cast (saves an HBM trip).
    x4 = x.reshape(N, C, SUB, hwd8)
    y4 = y.reshape(N, C, SUB, hwd8)

    in_map = lambda c, s, n, t: (s * nh + n, c, 0, t)
    out_map = lambda c, s, n, t: (c, s, 0, 0, 0)

    # VMEM limit derived from the actual buffer sizes (inputs double-buffered +
    # bf16 one-hot intermediates), clamped to stay portable on v7x's smaller VMEM.
    itemsize = jnp.dtype(x.dtype).itemsize
    est_vmem = (2 * 2 * SUB * lb * itemsize
                + 2 * SUB * (NC + NF) * lb * 2
                + (4 << 20))
    vmem_limit = int(min(max(2 * est_vmem, 16 << 20), 32 << 20))

    counts = pl.pallas_call(
        _hist_kernel,
        out_shape=jax.ShapeDtypeStruct((C, split, 2, NC, NF), jnp.float32),
        grid_spec=pltpu.PrefetchScalarGridSpec(
            num_scalar_prefetch=0,
            grid=(C, split, nh, nt),
            in_specs=[
                pl.BlockSpec((1, 1, SUB, lb), in_map),
                pl.BlockSpec((1, 1, SUB, lb), in_map),
            ],
            out_specs=pl.BlockSpec((1, 1, 2, NC, NF), out_map),
            scratch_shapes=[pltpu.VMEM((NC, NF), jnp.float32),
                            pltpu.VMEM((NC, NF), jnp.float32)],
        ),
        compiler_params=pltpu.CompilerParams(
            dimension_semantics=("parallel", "parallel", "arbitrary", "arbitrary"),
            vmem_limit_bytes=vmem_limit,
        ),
    )(y4, x4)

    # Tiny epilogue on (C, split, 2, 256) counts: combine per-core partials,
    # normalize to probabilities, KL.
    hist = jnp.sum(counts, axis=1)                       # (C, 2, NC, NF)
    total = float(N * hw)
    hy = hist[:, 0].reshape(C, num_bins) / total
    hx = hist[:, 1].reshape(C, num_bins) / total
    # TODO(synk): the torch reference does not guard empty bins (NaN for empty y-bins);
    # here 0*log(0) is treated as its limit 0 (empty x-bins with non-empty y-bins still
    # give +inf, matching torch).
    per_bin = jnp.where(hy > 0, hy * jnp.log(hy / hx), 0.0)
    return jnp.sum(per_bin)


def _reference_loss(x, y, num_bins=NUM_BINS):
    """Plain-JAX reference (torch.bincount-style) for the correctness check."""
    def channel_hists(img):
        v = jnp.clip(img, 0.0, 1.0)
        b = (v * (num_bins - 1)).astype(jnp.int32)
        b = jnp.transpose(b, (1, 0, 2, 3)).reshape(img.shape[1], -1)
        h = jnp.stack(
            [jnp.bincount(b[c], length=num_bins) for c in range(img.shape[1])]
        )
        return h.astype(jnp.float32) / b.shape[1]

    hy = channel_hists(y)
    hx = channel_hists(x)
    return jnp.sum(hy * jnp.log(hy / hx))


if __name__ == "__main__":
    key = jax.random.PRNGKey(0)
    kx, ky = jax.random.split(key)
    # Small RGB batch.  Range [-0.1, 1.1] exercises the clamp and guarantees every bin
    # (including 0 and 255) is populated -> finite KL, like the reference module assumes.
    shape = (2, 3, 64, 64)
    x = jax.random.uniform(kx, shape, jnp.float32, minval=-0.1, maxval=1.1)
    y = jax.random.uniform(ky, shape, jnp.float32, minval=-0.1, maxval=1.1)

    loss = histogram_loss(x, y)
    loss = jax.block_until_ready(loss)

    ref = _reference_loss(x, y)
    assert loss.shape == (), loss.shape
    assert bool(jnp.isfinite(loss)), loss
    assert abs(float(loss) - float(ref)) < 1e-4, (float(loss), float(ref))
    print("KERNEL_OK")
</pallas_src>

<mosaic_0001>
module attributes {stable_mosaic.version = 11 : i64} {
  func.func @_hist_kernel(%arg0: i32, %arg1: i32, %arg2: i32, %arg3: i32, %arg4: memref<1x1x8x512xf32, #tpu.memory_space<vmem>>, %arg5: memref<1x1x8x512xf32, #tpu.memory_space<vmem>>, %arg6: memref<1x1x2x8x32xf32, #tpu.memory_space<vmem>>, %arg7: memref<8x32xf32, #tpu.memory_space<vmem>>, %arg8: memref<8x32xf32, #tpu.memory_space<vmem>>) attributes {dimension_semantics = [#tpu.dimension_semantics<parallel>, #tpu.dimension_semantics<parallel>, #tpu.dimension_semantics<arbitrary>, #tpu.dimension_semantics<arbitrary>], iteration_bounds = array<i64: 3, 2, 1, 1>, scalar_prefetch = 0 : i64, scratch_operands = 2 : i64, tpu.core_type = #tpu.core_type<tc>, window_params = [{transform_indices = @transform_0, window_bounds = array<i64: 1, 1, 8, 512>}, {transform_indices = @transform_1, window_bounds = array<i64: 1, 1, 8, 512>}, {transform_indices = @transform_2, window_bounds = array<i64: 1, 1, 2, 8, 32>}]} {
    %c0_i32 = arith.constant 0 : i32
    %0 = arith.cmpi eq, %arg2, %c0_i32 : i32
    %c0_i32_0 = arith.constant 0 : i32
    %1 = arith.cmpi eq, %arg3, %c0_i32_0 : i32
    %2 = arith.andi %0, %1 : i1
    %c0_i32_1 = arith.constant 0 : i32
    %3 = arith.cmpi eq, %arg2, %c0_i32_1 : i32
    %c0_i32_2 = arith.constant 0 : i32
    %4 = arith.cmpi eq, %arg3, %c0_i32_2 : i32
    %5 = arith.andi %3, %4 : i1
    %6 = arith.extui %2 : i1 to i32
    %c0_i32_3 = arith.constant 0 : i32
    %7 = arith.cmpi ne, %6, %c0_i32_3 : i32
    scf.if %7 {
      %cst_31 = arith.constant 0.000000e+00 : f32
      %72 = vector.broadcast %cst_31 : f32 to vector<8x32xf32>
      %c0_32 = arith.constant 0 : index
      %c0_33 = arith.constant 0 : index
      %73 = vector.load %arg7[%c0_32, %c0_33] : memref<8x32xf32, #tpu.memory_space<vmem>>, vector<8x32xf32>
      tpu.vector_store %arg7[%c0_32, %c0_33], %72 {strides = array<i32>} : memref<8x32xf32, #tpu.memory_space<vmem>>, vector<8x32xf32>,
      %cst_34 = arith.constant 0.000000e+00 : f32
      %74 = vector.broadcast %cst_34 : f32 to vector<8x32xf32>
      %c0_35 = arith.constant 0 : index
      %c0_36 = arith.constant 0 : index
      %75 = vector.load %arg8[%c0_35, %c0_36] : memref<8x32xf32, #tpu.memory_space<vmem>>, vector<8x32xf32>
      tpu.vector_store %arg8[%c0_35, %c0_36], %74 {strides = array<i32>} : memref<8x32xf32, #tpu.memory_space<vmem>>, vector<8x32xf32>,
    } else {
    }
    %8 = tpu.iota {dimensions = array<i32: 1>} : vector<8x8x512xi32>
    %9 = tpu.iota {dimensions = array<i32: 1>} : vector<8x32x512xi32>
    %c0 = arith.constant 0 : index
    %c0_4 = arith.constant 0 : index
    %10 = vector.load %arg7[%c0, %c0_4] : memref<8x32xf32, #tpu.memory_space<vmem>>, vector<8x32xf32>
    %c0_5 = arith.constant 0 : index
    %c0_6 = arith.constant 0 : index
    %c0_7 = arith.constant 0 : index
    %c0_8 = arith.constant 0 : index
    %11 = vector.load %arg4[%c0_5, %c0_6, %c0_7, %c0_8] : memref<1x1x8x512xf32, #tpu.memory_space<vmem>>, vector<1x1x8x512xf32>
    %12 = vector.shape_cast %11 : vector<1x1x8x512xf32> to vector<8x512xf32>
    %cst = arith.constant 0.000000e+00 : f32
    %cst_9 = arith.constant 1.000000e+00 : f32
    %13 = vector.broadcast %cst : f32 to vector<8x512xf32>
    %14 = arith.maximumf %13, %12 : vector<8x512xf32>
    %15 = vector.broadcast %cst_9 : f32 to vector<8x512xf32>
    %16 = arith.minimumf %15, %14 : vector<8x512xf32>
    %cst_10 = arith.constant 2.550000e+02 : f32
    %17 = vector.broadcast %cst_10 : f32 to vector<8x512xf32>
    %18 = arith.mulf %16, %17 : vector<8x512xf32>
    %19 = arith.fptosi %18 : vector<8x512xf32> to vector<8x512xi32>
    %c5_i32 = arith.constant 5 : i32
    %20 = vector.broadcast %c5_i32 : i32 to vector<8x512xi32>
    %21 = arith.shrsi %19, %20 : vector<8x512xi32>
    %c31_i32 = arith.constant 31 : i32
    %22 = vector.broadcast %c31_i32 : i32 to vector<8x512xi32>
    %23 = arith.andi %19, %22 : vector<8x512xi32>
    %24 = vector.shape_cast %21 : vector<8x512xi32> to vector<8x1x512xi32>
    %25 = vector.broadcast %24 : vector<8x1x512xi32> to vector<8x8x512xi32>
    %26 = arith.cmpi eq, %25, %8 : vector<8x8x512xi32>
    %27 = arith.extui %26 : vector<8x8x512xi1> to vector<8x8x512xi32>
    %28 = arith.sitofp %27 : vector<8x8x512xi32> to vector<8x8x512xf32>
    %29 = arith.truncf %28 : vector<8x8x512xf32> to vector<8x8x512xbf16>
    %30 = vector.shape_cast %23 : vector<8x512xi32> to vector<8x1x512xi32>
    %31 = vector.broadcast %30 : vector<8x1x512xi32> to vector<8x32x512xi32>
    %32 = arith.cmpi eq, %31, %9 : vector<8x32x512xi32>
    %33 = arith.extui %32 : vector<8x32x512xi1> to vector<8x32x512xi32>
    %34 = arith.sitofp %33 : vector<8x32x512xi32> to vector<8x32x512xf32>
    %35 = arith.truncf %34 : vector<8x32x512xf32> to vector<8x32x512xbf16>
    "tpu.trace_start"() <{level = 10 : i32, message = "rcl,rfl->rcf"}> : () -> ()
    %cst_11 = arith.constant dense<0.000000e+00> : vector<8x8x32xf32>
    %36 = tpu.matmul %29, %35, %cst_11 {dimension_numbers = #tpu.dot_dimension_numbers<[2], [2], [1], [1], [0, 0, 0, 1, 1, 1], [0], [0]>} : vector<8x8x512xbf16>, vector<8x32x512xbf16>, vector<8x8x32xf32> -> vector<8x8x32xf32>
    "tpu.trace_stop"() : () -> ()
    %cst_12 = arith.constant dense<0.000000e+00> : vector<8x32xf32>
    %37 = vector.multi_reduction <add>, %36, %cst_12 [0] : vector<8x8x32xf32> to vector<8x32xf32>
    %38 = arith.addf %10, %37 : vector<8x32xf32>
    %c0_13 = arith.constant 0 : index
    %c0_14 = arith.constant 0 : index
    %39 = vector.load %arg7[%c0_13, %c0_14] : memref<8x32xf32, #tpu.memory_space<vmem>>, vector<8x32xf32>
    tpu.vector_store %arg7[%c0_13, %c0_14], %38 {strides = array<i32>} : memref<8x32xf32, #tpu.memory_space<vmem>>, vector<8x32xf32>,
    %c0_15 = arith.constant 0 : index
    %c0_16 = arith.constant 0 : index
    %40 = vector.load %arg8[%c0_15, %c0_16] : memref<8x32xf32, #tpu.memory_space<vmem>>, vector<8x32xf32>
    %c0_17 = arith.constant 0 : index
    %c0_18 = arith.constant 0 : index
    %c0_19 = arith.constant 0 : index
    %c0_20 = arith.constant 0 : index
    %41 = vector.load %arg5[%c0_17, %c0_18, %c0_19, %c0_20] : memref<1x1x8x512xf32, #tpu.memory_space<vmem>>, vector<1x1x8x512xf32>
    %42 = vector.shape_cast %41 : vector<1x1x8x512xf32> to vector<8x512xf32>
    %cst_21 = arith.constant 0.000000e+00 : f32
    %cst_22 = arith.constant 1.000000e+00 : f32
    %43 = vector.broadcast %cst_21 : f32 to vector<8x512xf32>
    %44 = arith.maximumf %43, %42 : vector<8x512xf32>
    %45 = vector.broadcast %cst_22 : f32 to vector<8x512xf32>
    %46 = arith.minimumf %45, %44 : vector<8x512xf32>
    %cst_23 = arith.constant 2.550000e+02 : f32
    %47 = vector.broadcast %cst_23 : f32 to vector<8x512xf32>
    %48 = arith.mulf %46, %47 : vector<8x512xf32>
    %49 = arith.fptosi %48 : vector<8x512xf32> to vector<8x512xi32>
    %c5_i32_24 = arith.constant 5 : i32
    %50 = vector.broadcast %c5_i32_24 : i32 to vector<8x512xi32>
    %51 = arith.shrsi %49, %50 : vector<8x512xi32>
    %c31_i32_25 = arith.constant 31 : i32
    %52 = vector.broadcast %c31_i32_25 : i32 to vector<8x512xi32>
    %53 = arith.andi %49, %52 : vector<8x512xi32>
    %54 = vector.shape_cast %51 : vector<8x512xi32> to vector<8x1x512xi32>
    %55 = vector.broadcast %54 : vector<8x1x512xi32> to vector<8x8x512xi32>
    %56 = arith.cmpi eq, %55, %8 : vector<8x8x512xi32>
    %57 = arith.extui %56 : vector<8x8x512xi1> to vector<8x8x512xi32>
    %58 = arith.sitofp %57 : vector<8x8x512xi32> to vector<8x8x512xf32>
    %59 = arith.truncf %58 : vector<8x8x512xf32> to vector<8x8x512xbf16>
    %60 = vector.shape_cast %53 : vector<8x512xi32> to vector<8x1x512xi32>
    %61 = vector.broadcast %60 : vector<8x1x512xi32> to vector<8x32x512xi32>
    %62 = arith.cmpi eq, %61, %9 : vector<8x32x512xi32>
    %63 = arith.extui %62 : vector<8x32x512xi1> to vector<8x32x512xi32>
    %64 = arith.sitofp %63 : vector<8x32x512xi32> to vector<8x32x512xf32>
    %65 = arith.truncf %64 : vector<8x32x512xf32> to vector<8x32x512xbf16>
    "tpu.trace_start"() <{level = 10 : i32, message = "rcl,rfl->rcf"}> : () -> ()
    %cst_26 = arith.constant dense<0.000000e+00> : vector<8x8x32xf32>
    %66 = tpu.matmul %59, %65, %cst_26 {dimension_numbers = #tpu.dot_dimension_numbers<[2], [2], [1], [1], [0, 0, 0, 1, 1, 1], [0], [0]>} : vector<8x8x512xbf16>, vector<8x32x512xbf16>, vector<8x8x32xf32> -> vector<8x8x32xf32>
    "tpu.trace_stop"() : () -> ()
    %cst_27 = arith.constant dense<0.000000e+00> : vector<8x32xf32>
    %67 = vector.multi_reduction <add>, %66, %cst_27 [0] : vector<8x8x32xf32> to vector<8x32xf32>
    %68 = arith.addf %40, %67 : vector<8x32xf32>
    %c0_28 = arith.constant 0 : index
    %c0_29 = arith.constant 0 : index
    %69 = vector.load %arg8[%c0_28, %c0_29] : memref<8x32xf32, #tpu.memory_space<vmem>>, vector<8x32xf32>
    tpu.vector_store %arg8[%c0_28, %c0_29], %68 {strides = array<i32>} : memref<8x32xf32, #tpu.memory_space<vmem>>, vector<8x32xf32>,
    %70 = arith.extui %5 : i1 to i32
    %c0_i32_30 = arith.constant 0 : i32
    %71 = arith.cmpi ne, %70, %c0_i32_30 : i32
    scf.if %71 {
      %c0_31 = arith.constant 0 : index
      %c0_32 = arith.constant 0 : index
      %72 = vector.load %arg7[%c0_31, %c0_32] : memref<8x32xf32, #tpu.memory_space<vmem>>, vector<8x32xf32>
      %c0_33 = arith.constant 0 : index
      %c0_34 = arith.constant 0 : index
      %73 = vector.load %arg8[%c0_33, %c0_34] : memref<8x32xf32, #tpu.memory_space<vmem>>, vector<8x32xf32>
      %74 = vector.shape_cast %72 : vector<8x32xf32> to vector<1x8x32xf32>
      %75 = vector.shape_cast %73 : vector<8x32xf32> to vector<1x8x32xf32>
      %76 = tpu.concatenate %74, %75 in 0 : vector<1x8x32xf32>, vector<1x8x32xf32> -> vector<2x8x32xf32>
      %77 = vector.shape_cast %76 : vector<2x8x32xf32> to vector<1x1x2x8x32xf32>
      %c0_35 = arith.constant 0 : index
      %c0_36 = arith.constant 0 : index
      %c0_37 = arith.constant 0 : index
      %c0_38 = arith.constant 0 : index
      %c0_39 = arith.constant 0 : index
      %78 = vector.load %arg6[%c0_35, %c0_36, %c0_37, %c0_38, %c0_39] : memref<1x1x2x8x32xf32, #tpu.memory_space<vmem>>, vector<1x1x2x8x32xf32>
      tpu.vector_store %arg6[%c0_35, %c0_36, %c0_37, %c0_38, %c0_39], %77 {strides = array<i32>} : memref<1x1x2x8x32xf32, #tpu.memory_space<vmem>>, vector<1x1x2x8x32xf32>,
    } else {
    }
    return
  }
  func.func @transform_0(%arg0: i32, %arg1: i32, %arg2: i32, %arg3: i32) -> (i32, i32, i32, i32) {
    %c1_i32 = arith.constant 1 : i32
    %0 = arith.muli %arg1, %c1_i32 : i32
    %1 = arith.addi %0, %arg2 : i32
    %c0_i32 = arith.constant 0 : i32
    %c0_i32_0 = arith.constant 0 : i32
    return %1, %arg0, %c0_i32, %arg3 : i32, i32, i32, i32
  }
  func.func @transform_1(%arg0: i32, %arg1: i32, %arg2: i32, %arg3: i32) -> (i32, i32, i32, i32) {
    %c1_i32 = arith.constant 1 : i32
    %0 = arith.muli %arg1, %c1_i32 : i32
    %1 = arith.addi %0, %arg2 : i32
    %c0_i32 = arith.constant 0 : i32
    %c0_i32_0 = arith.constant 0 : i32
    return %1, %arg0, %c0_i32, %arg3 : i32, i32, i32, i32
  }
  func.func @transform_2(%arg0: i32, %arg1: i32, %arg2: i32, %arg3: i32) -> (i32, i32, i32, i32, i32) {
    %c0_i32 = arith.constant 0 : i32
    %c0_i32_0 = arith.constant 0 : i32
    %c0_i32_1 = arith.constant 0 : i32
    %c0_i32_2 = arith.constant 0 : i32
    return %arg0, %arg1, %c0_i32, %c0_i32_0, %c0_i32_1 : i32, i32, i32, i32, i32
  }
}

</mosaic_0001>

<llo_original>
// kernel: tpu_custom_call.1
$region0: #{tpu_custom_call.1}
  #allocation0 [shape = 'u32[]', space=smem, size = 0x4, offset = 0x4, fixed_abs, tag = 'smem constant byte address 0x4 - core index']
  #allocation1 [shape = 'u32[144,128]{1,0:T(1,128)}', space=vmem, size = 0x12000, scoped, tag = 'internal scratch']
  #allocation2 [shape = 'f32[8,32]{1,0:T(8,128)}', space=vmem, size = 0x1000, scoped, tag = 'scratch operand']
  #allocation3 [shape = 'f32[8,32]{1,0:T(8,128)}', space=vmem, size = 0x1000, scoped, tag = 'scratch operand']
  %s0 = inlined_call_operand.hbm [shape: f32[2,3,8,512], index: 0, kind: input, shape index: {}]
  %s1 = inlined_call_operand.hbm [shape: f32[2,3,8,512], index: 1, kind: input, shape index: {}]
  %s2 = inlined_call_operand.hbm [shape: f32[3,2,2,8,32], index: 2, kind: output, shape index: {}]
  %s3 = sld [smem:[#allocation0]]
  $region57: #{tpu_custom_call.1} parent=0
    _
  %s5 = ssub.s32 1, %s3
  %s6 = scalar_select 0, %s5, %s3
  $region1: #{tpu_custom_call.1} parent=0
    #allocation4 [shape = 'u8[32768]{0}', space=vmem, size = 0x8000, scoped, tag = 'input window, operand 0']
    #allocation5 [shape = 's32[2]{0}', space=sflag, size = 0x8, scoped, tag = 'scoped memory for tpu_custom_call.1']
    #allocation6 [shape = 's32[2]{0}', space=sflag, size = 0x8, scoped, tag = 'scoped memory for tpu_custom_call.1']
    #allocation7 [shape = 'u8[32768]{0}', space=vmem, size = 0x8000, scoped, tag = 'input window, operand 1']
    #allocation8 [shape = 's32[2]{0}', space=sflag, size = 0x8, scoped, tag = 'scoped memory for tpu_custom_call.1']
    #allocation9 [shape = 'u8[16384]{0}', space=vmem, size = 0x4000, scoped, tag = 'output window, operand 0']
    %7 = vsyncpa [#allocation5], 0
    %s8 = scalar_lea.sflag [#allocation5], 1
    %9 = vsyncpa %s8, 0
    %10 = vsyncpa [#allocation8], 0
    %s11 = scalar_lea.sflag [#allocation8], 1
    %12 = vsyncpa %s11, 0
    %13 = vsyncpa [#allocation6], 0
    %s14 = scalar_lea.sflag [#allocation6], 1
    %15 = vsyncpa %s14, 0
    loop: start=0, step=1, limit=8
    $region2: #{tpu_custom_call.1} parent=1 // loop_pre_header
      _
    $region3: #{tpu_custom_call.1} parent=1 // loop_header
      %s17 = sphi 0, %s21
      %p18 = scmp.ge.s32.totalorder %s17, 8
      %s24 = sphi 0, %s50
      %s25 = sphi 0, %s46
      %s26 = sphi 0, %s42
      %s27 = sphi 0, %s38
      %s28 = sphi 0, %s24
      %s29 = sphi 0, %s25
      %s30 = sphi 0, %s26
      %s31 = sphi 0, %s27
      %s32 = sphi 0, %s28
      %s33 = sphi 0, %s29
      %s34 = sphi 0, %s30
      %s35 = sphi 0, %s31
      %s59 = sphi 0, %s61
      %s62 = sphi 0, %s59
      %s63 = sphi 0, %s62
      %s79 = sphi 0, %s63
      %s91 = sphi 0, %s93
      %s94 = sphi 0, %s91
      %s95 = sphi 0, %s94
      %s111 = sphi 0, %s95
      %s119 = sphi 0, %s121
      %s122 = sphi 0, %s119
      %s123 = sphi 0, %s122
      %s139 = sphi 0, %s123
    $region4: #{tpu_custom_call.1} parent=1 // loop_header_branch
      %20 = sbr.rel (%p18) target = $region8
    $region5: #{tpu_custom_call.1} parent=1 // loop_body
      %s22 = ssub.s32 %s17, 1
      %s23 = ssub.s32 %s17, 2
      %s36 = sadd.s32 1, %s27
      %p37 = scmp.ge.s32.totalorder %s36, 1
      %s38 = scalar_select %p37, 0, %s36
      %s39 = sadd.s32 1, %s26
      %s40 = scalar_select %p37, %s39, %s26
      %p41 = scmp.ge.s32.totalorder %s40, 1
      %s42 = scalar_select %p41, 0, %s40
      %s43 = sadd.s32 1, %s25
      %s44 = scalar_select %p41, %s43, %s25
      %p45 = scmp.ge.s32.totalorder %s44, 2
      %s46 = scalar_select %p45, 0, %s44
      %s47 = sadd.s32 1, %s24
      %s48 = scalar_select %p45, %s47, %s24
      %p49 = scmp.ge.s32.totalorder %s48, 3
      %s50 = scalar_select %p49, 0, %s48
      %s51 = sadd.s32 %s25, %s26
      %s52 = sadd.s32 %s46, %s42
      %s53 = ssub.s32 %s51, %s52
      %s54 = ssub.s32 %s24, %s50
      %s55 = sor.u32 %s53, %s54
      %s56 = ssub.s32 %s27, %s38
      %s57 = sor.u32 %s55, %s56
      %p58 = scmp.eq.s32.totalorder %s57, 0
      %s60 = sadd.s32 %s59, 1
      %s61 = scalar_select %p58, %s59, %s60
      %p64 = pneg %p58
      %p65 = scmp.eq.s32.totalorder %s17, 5
      %p66 = por %p64, %p65
      %p67 = scmp.ne.s32.totalorder %s59, %s62
      %p68 = scmp.eq.s32.totalorder %s17, 0
      %p69 = por %p67, %p68
      %p70 = scmp.ne.s32.totalorder %s59, %s62
      %p71 = scmp.eq.s32.totalorder %s22, 5
      %p72 = por %p70, %p71
      %p73 = scmp.ne.s32.totalorder %s62, %s63
      %p74 = scmp.eq.s32.totalorder %s22, 0
      %p75 = por %p73, %p74
      %p76 = scmp.ne.s32.totalorder %s62, %s63
      %p77 = scmp.eq.s32.totalorder %s23, 5
      %p78 = por %p76, %p77
      %p80 = scmp.ne.s32.totalorder %s63, %s79
      %p81 = scmp.eq.s32.totalorder %s23, 0
      %p82 = por %p80, %p81
      %s83 = sadd.s32 %s25, %s26
      %s84 = sadd.s32 %s46, %s42
      %s85 = ssub.s32 %s83, %s84
      %s86 = ssub.s32 %s24, %s50
      %s87 = sor.u32 %s85, %s86
      %s88 = ssub.s32 %s27, %s38
      %s89 = sor.u32 %s87, %s88
      %p90 = scmp.eq.s32.totalorder %s89, 0
      %s92 = sadd.s32 %s91, 1
      %s93 = scalar_select %p90, %s91, %s92
      %p96 = pneg %p90
      %p97 = scmp.eq.s32.totalorder %s17, 5
      %p98 = por %p96, %p97
      %p99 = scmp.ne.s32.totalorder %s91, %s94
      %p100 = scmp.eq.s32.totalorder %s17, 0
      %p101 = por %p99, %p100
      %p102 = scmp.ne.s32.totalorder %s91, %s94
      %p103 = scmp.eq.s32.totalorder %s22, 5
      %p104 = por %p102, %p103
      %p105 = scmp.ne.s32.totalorder %s94, %s95
      %p106 = scmp.eq.s32.totalorder %s22, 0
      %p107 = por %p105, %p106
      %p108 = scmp.ne.s32.totalorder %s94, %s95
      %p109 = scmp.eq.s32.totalorder %s23, 5
      %p110 = por %p108, %p109
      %p112 = scmp.ne.s32.totalorder %s95, %s111
      %p113 = scmp.eq.s32.totalorder %s23, 0
      %p114 = por %p112, %p113
      %s115 = ssub.s32 %s24, %s50
      %s116 = ssub.s32 %s25, %s46
      %s117 = sor.u32 %s115, %s116
      %p118 = scmp.eq.s32.totalorder %s117, 0
      %s120 = sadd.s32 %s119, 1
      %s121 = scalar_select %p118, %s119, %s120
      %p124 = pneg %p118
      %p125 = scmp.eq.s32.totalorder %s17, 5
      %p126 = por %p124, %p125
      %p127 = scmp.ne.s32.totalorder %s119, %s122
      %p128 = scmp.eq.s32.totalorder %s17, 0
      %p129 = por %p127, %p128
      %p130 = scmp.ne.s32.totalorder %s119, %s122
      %p131 = scmp.eq.s32.totalorder %s22, 5
      %p132 = por %p130, %p131
      %p133 = scmp.ne.s32.totalorder %s122, %s123
      %p134 = scmp.eq.s32.totalorder %s22, 0
      %p135 = por %p133, %p134
      %p136 = scmp.ne.s32.totalorder %s122, %s123
      %p137 = scmp.eq.s32.totalorder %s23, 5
      %p138 = por %p136, %p137
      %p140 = scmp.ne.s32.totalorder %s123, %s139
      %p141 = scmp.eq.s32.totalorder %s23, 0
      %p142 = por %p140, %p141
      %p143 = scmp.le.s32.totalorder 1, %s17
      %p144 = scmp.lt.s32.totalorder %s17, 7
      %p145 = pnand %p143, %p144
      %p146 = pneg %p145
      // Predicated region
      $region9: #{tpu_custom_call.1} parent=5 // pred_check
        _
      $region10: #{tpu_custom_call.1} parent=5 // pred_check_branch
        %148 = sbr.rel (%p145) target = $region12
      $region11: #{tpu_custom_call.1} parent=5 // pred_region
        %s149 = ssub.s32 %s17, 1
      $region12: #{tpu_custom_call.1} parent=5 // pred_fallthru
        _
      %p150 = scmp.lt.s32.totalorder %s17, 6
      // Predicated region
      $region13: #{tpu_custom_call.1} parent=5 // pred_check
        %p151 = pneg %p150
      $region14: #{tpu_custom_call.1} parent=5 // pred_check_branch
        %153 = sbr.rel (%p151) target = $region16
      $region15: #{tpu_custom_call.1} parent=5 // pred_region
        // Predicated region
        $region17: #{tpu_custom_call.1} parent=15 // pred_check
          %p154 = pneg %p69
        $region18: #{tpu_custom_call.1} parent=15 // pred_check_branch
          %156 = sbr.rel (%p154) target = $region20
        $region19: #{tpu_custom_call.1} parent=15 // pred_region
          %s157 = sand.u32 %s59, 1
          %s158 = scalar_lea.sflag [#allocation5], %s157
          %s159 = sand.u32 %s59, 1
          %s160 = smul.addr %s159, 32
          %s161 = scalar_lea.vmem [#allocation4], %s160
          %s162 = sadd.s32 %s25, %s26
          %s163 = smul.u32 4, %s27
          %s165 = ssub.s32 512, 512
          %166 = vsyncadd %s158, %s165
          %s167 = smul.addr %s24, 4
          %s168 = sadd.s32 %s163, %s167
          %s169 = smul.addr %s162, 12
          %s170 = sadd.s32 %s168, %s169
          %s171 = smul.addr %s170, 128
          %s172 = scalar_lea.hbm %s0, %s171
          %s174 = sshll.u32 %s161, 4
          %s175 = int_to_ptr.vmem [resolvable:$true] %s174
          %177 = dma.hbm_to_vmem [thread:$0]  %s172, 512, %s175, %s158
        $region20: #{tpu_custom_call.1} parent=15 // pred_fallthru
          _
        // Predicated region
        $region21: #{tpu_custom_call.1} parent=15 // pred_check
          %p178 = pneg %p101
        $region22: #{tpu_custom_call.1} parent=15 // pred_check_branch
          %180 = sbr.rel (%p178) target = $region24
        $region23: #{tpu_custom_call.1} parent=15 // pred_region
          %s181 = sand.u32 %s91, 1
          %s182 = scalar_lea.sflag [#allocation8], %s181
          %s183 = sand.u32 %s91, 1
          %s184 = smul.addr %s183, 32
          %s185 = scalar_lea.vmem [#allocation7], %s184
          %s186 = sadd.s32 %s25, %s26
          %s187 = smul.u32 4, %s27
          %s189 = ssub.s32 512, 512
          %190 = vsyncadd %s182, %s189
          %s191 = smul.addr %s24, 4
          %s192 = sadd.s32 %s187, %s191
          %s193 = smul.addr %s186, 12
          %s194 = sadd.s32 %s192, %s193
          %s195 = smul.addr %s194, 128
          %s196 = scalar_lea.hbm %s1, %s195
          %s198 = sshll.u32 %s185, 4
          %s199 = int_to_ptr.vmem [resolvable:$true] %s198
          %201 = dma.hbm_to_vmem [thread:$0]  %s196, 512, %s199, %s182
        $region24: #{tpu_custom_call.1} parent=15 // pred_fallthru
          _
      $region16: #{tpu_custom_call.1} parent=5 // pred_fallthru
        _
      %p202 = scmp.le.s32.totalorder 1, %s17
      %p203 = scmp.lt.s32.totalorder %s17, 7
      %p204 = pnand %p202, %p203
      %p205 = pneg %p204
      // Predicated region
      $region25: #{tpu_custom_call.1} parent=5 // pred_check
        _
      $region26: #{tpu_custom_call.1} parent=5 // pred_check_branch
        %207 = sbr.rel (%p204) target = $region28
      $region27: #{tpu_custom_call.1} parent=5 // pred_region
        %s208 = ssub.s32 %s17, 1
        %s209 = sand.u32 %s62, 1
        %s210 = scalar_lea.sflag [#allocation5], %s209
        %s211 = sand.u32 %s62, 1
        %s212 = smul.addr %s211, 32
        %s213 = scalar_lea.vmem [#allocation4], %s212
        // Predicated region
        $region29: #{tpu_custom_call.1} parent=27 // pred_check
          %p214 = pneg %p75
        $region30: #{tpu_custom_call.1} parent=27 // pred_check_branch
          %216 = sbr.rel (%p214) target = $region32
        $region31: #{tpu_custom_call.1} parent=27 // pred_region
          %217 = dma.done %s210, 512
        $region32: #{tpu_custom_call.1} parent=27 // pred_fallthru
          _
        %s218 = sand.u32 %s94, 1
        %s219 = scalar_lea.sflag [#allocation8], %s218
        %s220 = sand.u32 %s94, 1
        %s221 = smul.addr %s220, 32
        %s222 = scalar_lea.vmem [#allocation7], %s221
        // Predicated region
        $region33: #{tpu_custom_call.1} parent=27 // pred_check
          %p223 = pneg %p107
        $region34: #{tpu_custom_call.1} parent=27 // pred_check_branch
          %225 = sbr.rel (%p223) target = $region36
        $region35: #{tpu_custom_call.1} parent=27 // pred_region
          %226 = dma.done %s219, 512
        $region36: #{tpu_custom_call.1} parent=27 // pred_fallthru
          _
        %s227 = sand.u32 %s62, 1
        %s228 = scalar_lea.sflag [#allocation5], %s227
        %s229 = sand.u32 %s62, 1
        %s230 = smul.addr %s229, 32
        %s231 = scalar_lea.vmem [#allocation4], %s230
        %p232 = pneg %p75
        %p233 = pneg %p72
        %s234 = sand.u32 %s94, 1
        %s235 = scalar_lea.sflag [#allocation8], %s234
        %s236 = sand.u32 %s94, 1
        %s237 = smul.addr %s236, 32
        %s238 = scalar_lea.vmem [#allocation7], %s237
        %p239 = pneg %p107
        %p240 = pneg %p104
        %p241 = pneg %p135
        %p242 = pneg %p132
        %s243 = sand.u32 %s122, 1
        %s244 = scalar_lea.sflag [#allocation6], %s243
        %s245 = sand.u32 %s122, 1
        %s246 = smul.addr %s245, 16
        %s247 = scalar_lea.vmem [#allocation9], %s246
        %s248 = sadd.s32 %s29, %s30
        %s249 = smul.u32 4, %s31
        %s250 = sadd.s32 %s29, %s30
        %s251 = smul.u32 4, %s31
        %p253 = scmp.eq.s32.totalorder %s30, 0
        %p254 = scmp.eq.s32.totalorder %s31, 0
        %p255 = pnand %p253, %p254
        %p256 = pneg %p255
        // Predicated region
        $region37: #{tpu_custom_call.1} parent=27 // pred_check
          _
        $region38: #{tpu_custom_call.1} parent=27 // pred_check_branch
          %258 = sbr.rel (%p255) target = $region40
        $region39: #{tpu_custom_call.1} parent=27 // pred_region
          %vm259 = vcmask 261120
          %260 = vst.msk [vmem:[#allocation2] sm:$0xff] %vm259, 0.0
          %261 = vst.msk [vmem:[#allocation3] sm:$0xff] %vm259, 0.0
        $region40: #{tpu_custom_call.1} parent=27 // pred_fallthru
          _
        %v262 = vlaneseq
        %v263 = vshrl.u32 %v262, 7
        %v264 = vadd.s32 %v263, 8
        %v265 = vadd.s32 %v263, 16
        %v266 = vadd.s32 %v263, 24
        %v267 = vld [vmem:[#allocation2] sm:$0xff]
        %v268 = vld [vmem:[%s213] sm:$0xff]
        %v269 = vld [vmem:[%s213 + $0x8] sm:$0xff]
        %v270 = vld [vmem:[%s213 + $0x10] sm:$0xff]
        %v271 = vld [vmem:[%s213 + $0x18] sm:$0xff]
        %v272 = vmax.f32 %v268, 0.0
        %v273 = vmax.f32 %v269, 0.0
        %v274 = vmax.f32 %v270, 0.0
        %v275 = vmax.f32 %v271, 0.0
        %v276 = vmin.f32 %v272, 1.0
        %v277 = vmin.f32 %v273, 1.0
        %v278 = vmin.f32 %v274, 1.0
        %v279 = vmin.f32 %v275, 1.0
        %v280 = vmul.f32 %v276, 255.0
        %v281 = vmul.f32 %v277, 255.0
        %v282 = vmul.f32 %v278, 255.0
        %v283 = vmul.f32 %v279, 255.0
        %v284 = vcvt.f32.s32.to.zero.pseudo %v280
        %v285 = vcvt.f32.s32.to.zero.pseudo %v281
        %v286 = vcvt.f32.s32.to.zero.pseudo %v282
        %v287 = vcvt.f32.s32.to.zero.pseudo %v283
        %v288 = vshra.s32 %v284, 5
        %v289 = vshra.s32 %v285, 5
        %v290 = vshra.s32 %v286, 5
        %v291 = vshra.s32 %v287, 5
        %v292 = vand.u32 %v284, 31
        %v293 = vand.u32 %v285, 31
        %v294 = vand.u32 %v286, 31
        %v295 = vand.u32 %v287, 31
        %v296 = vcombine.low %v288, %v289
        %v297 = vcombine.high %v288, %v289
        %v298 = vcombine.low %v290, %v291
        %v299 = vcombine.high %v290, %v291
        %v301 = vunpack.c.l.s4 1966171168
        %v302 = vunpack.c.0.s8 %v301
        %v303 = vlaneseq
        %v304 = vshrl.u32 %v303, 7
        %v305 = vsub.s32 %v302, %v304
        %v306 = vrot.slane %v296, %v305
        %v308 = vunpack.c.l.s4 1966171168
        %v309 = vunpack.c.0.s8 %v308
        %v310 = vlaneseq
        %v311 = vshrl.u32 %v310, 7
        %v312 = vsub.s32 %v309, %v311
        %v313 = vrot.slane %v297, %v312
        %v315 = vunpack.c.l.s4 1966171168
        %v316 = vunpack.c.0.s8 %v315
        %v317 = vlaneseq
        %v318 = vshrl.u32 %v317, 7
        %v319 = vsub.s32 %v316, %v318
        %v320 = vrot.slane %v298, %v319
        %v322 = vunpack.c.l.s4 1966171168
        %v323 = vunpack.c.0.s8 %v322
        %v324 = vlaneseq
        %v325 = vshrl.u32 %v324, 7
        %v326 = vsub.s32 %v323, %v325
        %v327 = vrot.slane %v299, %v326
        %v328 = vcombine.low %v306, %v320
        %v329 = vcombine.high %v306, %v320
        %v330 = vcombine.low %v313, %v327
        %v331 = vcombine.high %v313, %v327
        %v333 = vunpack.c.l.s4 1966171168
        %v334 = vunpack.c.0.s8 %v333
        %v335 = vlaneseq
        %v336 = vshrl.u32 %v335, 7
        %v337 = vsub.s32 %v334, %v336
        %v338 = vrot.slane %v328, %v337
        %v340 = vunpack.c.l.s4 1966171168
        %v341 = vunpack.c.0.s8 %v340
        %v342 = vlaneseq
        %v343 = vshrl.u32 %v342, 7
        %v344 = vsub.s32 %v341, %v343
        %v345 = vrot.slane %v330, %v344
        %v347 = vunpack.c.l.s4 1966171168
        %v348 = vunpack.c.0.s8 %v347
        %v349 = vlaneseq
        %v350 = vshrl.u32 %v349, 7
        %v351 = vsub.s32 %v348, %v350
        %v352 = vrot.slane %v329, %v351
        %v354 = vunpack.c.l.s4 1966171168
        %v355 = vunpack.c.0.s8 %v354
        %v356 = vlaneseq
        %v357 = vshrl.u32 %v356, 7
        %v358 = vsub.s32 %v355, %v357
        %v359 = vrot.slane %v331, %v358
        %v360 = vcombine.high %v338, %v338
        %v361 = vcombine.high %v345, %v345
        %v362 = vcombine.high %v352, %v352
        %v363 = vcombine.high %v359, %v359
        %v364 = vlaneseq
        %v365 = vshrl.u32 %v364, 7
        %v366 = vsub.s32 0, %v365
        %v367 = vrot.slane %v338, %v366
        %v368 = vlaneseq
        %v369 = vshrl.u32 %v368, 7
        %v370 = vsub.s32 1, %v369
        %v371 = vrot.slane %v338, %v370
        %v372 = vlaneseq
        %v373 = vshrl.u32 %v372, 7
        %v374 = vsub.s32 2, %v373
        %v375 = vrot.slane %v338, %v374
        %v376 = vlaneseq
        %v377 = vshrl.u32 %v376, 7
        %v378 = vsub.s32 3, %v377
        %v379 = vrot.slane %v338, %v378
        %v380 = vlaneseq
        %v381 = vshrl.u32 %v380, 7
        %v382 = vsub.s32 0, %v381
        %v383 = vrot.slane %v352, %v382
        %v384 = vlaneseq
        %v385 = vshrl.u32 %v384, 7
        %v386 = vsub.s32 1, %v385
        %v387 = vrot.slane %v352, %v386
        %v388 = vlaneseq
        %v389 = vshrl.u32 %v388, 7
        %v390 = vsub.s32 2, %v389
        %v391 = vrot.slane %v352, %v390
        %v392 = vlaneseq
        %v393 = vshrl.u32 %v392, 7
        %v394 = vsub.s32 3, %v393
        %v395 = vrot.slane %v352, %v394
        %v396 = vlaneseq
        %v397 = vshrl.u32 %v396, 7
        %v398 = vsub.s32 0, %v397
        %v399 = vrot.slane %v360, %v398
        %v400 = vlaneseq
        %v401 = vshrl.u32 %v400, 7
        %v402 = vsub.s32 1, %v401
        %v403 = vrot.slane %v360, %v402
        %v404 = vlaneseq
        %v405 = vshrl.u32 %v404, 7
        %v406 = vsub.s32 2, %v405
        %v407 = vrot.slane %v360, %v406
        %v408 = vlaneseq
        %v409 = vshrl.u32 %v408, 7
        %v410 = vsub.s32 3, %v409
        %v411 = vrot.slane %v360, %v410
        %v412 = vlaneseq
        %v413 = vshrl.u32 %v412, 7
        %v414 = vsub.s32 0, %v413
        %v415 = vrot.slane %v362, %v414
        %v416 = vlaneseq
        %v417 = vshrl.u32 %v416, 7
        %v418 = vsub.s32 1, %v417
        %v419 = vrot.slane %v362, %v418
        %v420 = vlaneseq
        %v421 = vshrl.u32 %v420, 7
        %v422 = vsub.s32 2, %v421
        %v423 = vrot.slane %v362, %v422
        %v424 = vlaneseq
        %v425 = vshrl.u32 %v424, 7
        %v426 = vsub.s32 3, %v425
        %v427 = vrot.slane %v362, %v426
        %v428 = vlaneseq
        %v429 = vshrl.u32 %v428, 7
        %v430 = vsub.s32 0, %v429
        %v431 = vrot.slane %v345, %v430
        %v432 = vlaneseq
        %v433 = vshrl.u32 %v432, 7
        %v434 = vsub.s32 1, %v433
        %v435 = vrot.slane %v345, %v434
        %v436 = vlaneseq
        %v437 = vshrl.u32 %v436, 7
        %v438 = vsub.s32 2, %v437
        %v439 = vrot.slane %v345, %v438
        %v440 = vlaneseq
        %v441 = vshrl.u32 %v440, 7
        %v442 = vsub.s32 3, %v441
        %v443 = vrot.slane %v345, %v442
        %v444 = vlaneseq
        %v445 = vshrl.u32 %v444, 7
        %v446 = vsub.s32 0, %v445
        %v447 = vrot.slane %v359, %v446
        %v448 = vlaneseq
        %v449 = vshrl.u32 %v448, 7
        %v450 = vsub.s32 1, %v449
        %v451 = vrot.slane %v359, %v450
        %v452 = vlaneseq
        %v453 = vshrl.u32 %v452, 7
        %v454 = vsub.s32 2, %v453
        %v455 = vrot.slane %v359, %v454
        %v456 = vlaneseq
        %v457 = vshrl.u32 %v456, 7
        %v458 = vsub.s32 3, %v457
        %v459 = vrot.slane %v359, %v458
        %v460 = vlaneseq
        %v461 = vshrl.u32 %v460, 7
        %v462 = vsub.s32 0, %v461
        %v463 = vrot.slane %v361, %v462
        %v464 = vlaneseq
        %v465 = vshrl.u32 %v464, 7
        %v466 = vsub.s32 1, %v465
        %v467 = vrot.slane %v361, %v466
        %v468 = vlaneseq
        %v469 = vshrl.u32 %v468, 7
        %v470 = vsub.s32 2, %v469
        %v471 = vrot.slane %v361, %v470
        %v472 = vlaneseq
        %v473 = vshrl.u32 %v472, 7
        %v474 = vsub.s32 3, %v473
        %v475 = vrot.slane %v361, %v474
        %v476 = vlaneseq
        %v477 = vshrl.u32 %v476, 7
        %v478 = vsub.s32 0, %v477
        %v479 = vrot.slane %v363, %v478
        %v480 = vlaneseq
        %v481 = vshrl.u32 %v480, 7
        %v482 = vsub.s32 1, %v481
        %v483 = vrot.slane %v363, %v482
        %v484 = vlaneseq
        %v485 = vshrl.u32 %v484, 7
        %v486 = vsub.s32 2, %v485
        %v487 = vrot.slane %v363, %v486
        %v488 = vlaneseq
        %v489 = vshrl.u32 %v488, 7
        %v490 = vsub.s32 3, %v489
        %v491 = vrot.slane %v363, %v490
        %vm492 = vcmp.eq.s32.totalorder %v367, %v263
        %vm493 = vcmp.eq.s32.totalorder %v371, %v263
        %vm494 = vcmp.eq.s32.totalorder %v375, %v263
        %vm495 = vcmp.eq.s32.totalorder %v379, %v263
        %vm496 = vcmp.eq.s32.totalorder %v383, %v263
        %vm497 = vcmp.eq.s32.totalorder %v387, %v263
        %vm498 = vcmp.eq.s32.totalorder %v391, %v263
        %vm499 = vcmp.eq.s32.totalorder %v395, %v263
        %vm500 = vcmp.eq.s32.totalorder %v399, %v263
        %vm501 = vcmp.eq.s32.totalorder %v403, %v263
        %vm502 = vcmp.eq.s32.totalorder %v407, %v263
        %vm503 = vcmp.eq.s32.totalorder %v411, %v263
        %vm504 = vcmp.eq.s32.totalorder %v415, %v263
        %vm505 = vcmp.eq.s32.totalorder %v419, %v263
        %vm506 = vcmp.eq.s32.totalorder %v423, %v263
        %vm507 = vcmp.eq.s32.totalorder %v427, %v263
        %vm508 = vcmp.eq.s32.totalorder %v431, %v263
        %vm509 = vcmp.eq.s32.totalorder %v435, %v263
        %vm510 = vcmp.eq.s32.totalorder %v439, %v263
        %vm511 = vcmp.eq.s32.totalorder %v443, %v263
        %vm512 = vcmp.eq.s32.totalorder %v447, %v263
        %vm513 = vcmp.eq.s32.totalorder %v451, %v263
        %vm514 = vcmp.eq.s32.totalorder %v455, %v263
        %vm515 = vcmp.eq.s32.totalorder %v459, %v263
        %vm516 = vcmp.eq.s32.totalorder %v463, %v263
        %vm517 = vcmp.eq.s32.totalorder %v467, %v263
        %vm518 = vcmp.eq.s32.totalorder %v471, %v263
        %vm519 = vcmp.eq.s32.totalorder %v475, %v263
        %vm520 = vcmp.eq.s32.totalorder %v479, %v263
        %vm521 = vcmp.eq.s32.totalorder %v483, %v263
        %vm522 = vcmp.eq.s32.totalorder %v487, %v263
        %vm523 = vcmp.eq.s32.totalorder %v491, %v263
        %v524 = vsel %vm492, 1, 0
        %v525 = vsel %vm493, 1, 0
        %v526 = vsel %vm494, 1, 0
        %v527 = vsel %vm495, 1, 0
        %v528 = vsel %vm496, 1, 0
        %v529 = vsel %vm497, 1, 0
        %v530 = vsel %vm498, 1, 0
        %v531 = vsel %vm499, 1, 0
        %v532 = vsel %vm500, 1, 0
        %v533 = vsel %vm501, 1, 0
        %v534 = vsel %vm502, 1, 0
        %v535 = vsel %vm503, 1, 0
        %v536 = vsel %vm504, 1, 0
        %v537 = vsel %vm505, 1, 0
        %v538 = vsel %vm506, 1, 0
        %v539 = vsel %vm507, 1, 0
        %v540 = vsel %vm508, 1, 0
        %v541 = vsel %vm509, 1, 0
        %v542 = vsel %vm510, 1, 0
        %v543 = vsel %vm511, 1, 0
        %v544 = vsel %vm512, 1, 0
        %v545 = vsel %vm513, 1, 0
        %v546 = vsel %vm514, 1, 0
        %v547 = vsel %vm515, 1, 0
        %v548 = vsel %vm516, 1, 0
        %v549 = vsel %vm517, 1, 0
        %v550 = vsel %vm518, 1, 0
        %v551 = vsel %vm519, 1, 0
        %v552 = vsel %vm520, 1, 0
        %v553 = vsel %vm521, 1, 0
        %v554 = vsel %vm522, 1, 0
        %v555 = vsel %vm523, 1, 0
        %v556 = vcvt.s32.f32 %v524
        %v557 = vcvt.s32.f32 %v525
        %v558 = vcvt.s32.f32 %v526
        %v559 = vcvt.s32.f32 %v527
        %v560 = vcvt.s32.f32 %v528
        %v561 = vcvt.s32.f32 %v529
        %v562 = vcvt.s32.f32 %v530
        %v563 = vcvt.s32.f32 %v531
        %v564 = vcvt.s32.f32 %v532
        %v565 = vcvt.s32.f32 %v533
        %v566 = vcvt.s32.f32 %v534
        %v567 = vcvt.s32.f32 %v535
        %v568 = vcvt.s32.f32 %v536
        %v569 = vcvt.s32.f32 %v537
        %v570 = vcvt.s32.f32 %v538
        %v571 = vcvt.s32.f32 %v539
        %v572 = vcvt.s32.f32 %v540
        %v573 = vcvt.s32.f32 %v541
        %v574 = vcvt.s32.f32 %v542
        %v575 = vcvt.s32.f32 %v543
        %v576 = vcvt.s32.f32 %v544
        %v577 = vcvt.s32.f32 %v545
        %v578 = vcvt.s32.f32 %v546
        %v579 = vcvt.s32.f32 %v547
        %v580 = vcvt.s32.f32 %v548
        %v581 = vcvt.s32.f32 %v549
        %v582 = vcvt.s32.f32 %v550
        %v583 = vcvt.s32.f32 %v551
        %v584 = vcvt.s32.f32 %v552
        %v585 = vcvt.s32.f32 %v553
        %v586 = vcvt.s32.f32 %v554
        %v587 = vcvt.s32.f32 %v555
        %v588 = vpack.c.bf16 %v556, %v556
        %v589 = vpack.c.bf16 %v557, %v557
        %v590 = vpack.c.bf16 %v558, %v558
        %v591 = vpack.c.bf16 %v559, %v559
        %v592 = vpack.c.bf16 %v560, %v560
        %v593 = vpack.c.bf16 %v561, %v561
        %v594 = vpack.c.bf16 %v562, %v562
        %v595 = vpack.c.bf16 %v563, %v563
        %v596 = vpack.c.bf16 %v564, %v564
        %v597 = vpack.c.bf16 %v565, %v565
        %v598 = vpack.c.bf16 %v566, %v566
        %v599 = vpack.c.bf16 %v567, %v567
        %v600 = vpack.c.bf16 %v568, %v568
        %v601 = vpack.c.bf16 %v569, %v569
        %v602 = vpack.c.bf16 %v570, %v570
        %v603 = vpack.c.bf16 %v571, %v571
        %v604 = vpack.c.bf16 %v572, %v572
        %v605 = vpack.c.bf16 %v573, %v573
        %v606 = vpack.c.bf16 %v574, %v574
        %v607 = vpack.c.bf16 %v575, %v575
        %v608 = vpack.c.bf16 %v576, %v576
        %v609 = vpack.c.bf16 %v577, %v577
        %v610 = vpack.c.bf16 %v578, %v578
        %v611 = vpack.c.bf16 %v579, %v579
        %v612 = vpack.c.bf16 %v580, %v580
        %v613 = vpack.c.bf16 %v581, %v581
        %v614 = vpack.c.bf16 %v582, %v582
        %v615 = vpack.c.bf16 %v583, %v583
        %v616 = vpack.c.bf16 %v584, %v584
        %v617 = vpack.c.bf16 %v585, %v585
        %v618 = vpack.c.bf16 %v586, %v586
        %v619 = vpack.c.bf16 %v587, %v587
        %v620 = vcombine.low %v292, %v293
        %v621 = vcombine.high %v292, %v293
        %v622 = vcombine.low %v294, %v295
        %v623 = vcombine.high %v294, %v295
        %v625 = vunpack.c.l.s4 1966171168
        %v626 = vunpack.c.0.s8 %v625
        %v627 = vlaneseq
        %v628 = vshrl.u32 %v627, 7
        %v629 = vsub.s32 %v626, %v628
        %v630 = vrot.slane %v620, %v629
        %v632 = vunpack.c.l.s4 1966171168
        %v633 = vunpack.c.0.s8 %v632
        %v634 = vlaneseq
        %v635 = vshrl.u32 %v634, 7
        %v636 = vsub.s32 %v633, %v635
        %v637 = vrot.slane %v621, %v636
        %v639 = vunpack.c.l.s4 1966171168
        %v640 = vunpack.c.0.s8 %v639
        %v641 = vlaneseq
        %v642 = vshrl.u32 %v641, 7
        %v643 = vsub.s32 %v640, %v642
        %v644 = vrot.slane %v622, %v643
        %v646 = vunpack.c.l.s4 1966171168
        %v647 = vunpack.c.0.s8 %v646
        %v648 = vlaneseq
        %v649 = vshrl.u32 %v648, 7
        %v650 = vsub.s32 %v647, %v649
        %v651 = vrot.slane %v623, %v650
        %v652 = vcombine.low %v630, %v644
        %v653 = vcombine.high %v630, %v644
        %v654 = vcombine.low %v637, %v651
        %v655 = vcombine.high %v637, %v651
        %v657 = vunpack.c.l.s4 1966171168
        %v658 = vunpack.c.0.s8 %v657
        %v659 = vlaneseq
        %v660 = vshrl.u32 %v659, 7
        %v661 = vsub.s32 %v658, %v660
        %v662 = vrot.slane %v652, %v661
        %v664 = vunpack.c.l.s4 1966171168
        %v665 = vunpack.c.0.s8 %v664
        %v666 = vlaneseq
        %v667 = vshrl.u32 %v666, 7
        %v668 = vsub.s32 %v665, %v667
        %v669 = vrot.slane %v654, %v668
        %v671 = vunpack.c.l.s4 1966171168
        %v672 = vunpack.c.0.s8 %v671
        %v673 = vlaneseq
        %v674 = vshrl.u32 %v673, 7
        %v675 = vsub.s32 %v672, %v674
        %v676 = vrot.slane %v653, %v675
        %v678 = vunpack.c.l.s4 1966171168
        %v679 = vunpack.c.0.s8 %v678
        %v680 = vlaneseq
        %v681 = vshrl.u32 %v680, 7
        %v682 = vsub.s32 %v679, %v681
        %v683 = vrot.slane %v655, %v682
        %v684 = vcombine.high %v662, %v662
        %v685 = vcombine.high %v669, %v669
        %v686 = vcombine.high %v676, %v676
        %v687 = vcombine.high %v683, %v683
        %v688 = vlaneseq
        %v689 = vshrl.u32 %v688, 7
        %v690 = vsub.s32 0, %v689
        %v691 = vrot.slane %v662, %v690
        %v692 = vlaneseq
        %v693 = vshrl.u32 %v692, 7
        %v694 = vsub.s32 1, %v693
        %v695 = vrot.slane %v662, %v694
        %v696 = vlaneseq
        %v697 = vshrl.u32 %v696, 7
        %v698 = vsub.s32 2, %v697
        %v699 = vrot.slane %v662, %v698
        %v700 = vlaneseq
        %v701 = vshrl.u32 %v700, 7
        %v702 = vsub.s32 3, %v701
        %v703 = vrot.slane %v662, %v702
        %v704 = vlaneseq
        %v705 = vshrl.u32 %v704, 7
        %v706 = vsub.s32 0, %v705
        %v707 = vrot.slane %v676, %v706
        %v708 = vlaneseq
        %v709 = vshrl.u32 %v708, 7
        %v710 = vsub.s32 1, %v709
        %v711 = vrot.slane %v676, %v710
        %v712 = vlaneseq
        %v713 = vshrl.u32 %v712, 7
        %v714 = vsub.s32 2, %v713
        %v715 = vrot.slane %v676, %v714
        %v716 = vlaneseq
        %v717 = vshrl.u32 %v716, 7
        %v718 = vsub.s32 3, %v717
        %v719 = vrot.slane %v676, %v718
        %v720 = vlaneseq
        %v721 = vshrl.u32 %v720, 7
        %v722 = vsub.s32 0, %v721
        %v723 = vrot.slane %v684, %v722
        %v724 = vlaneseq
        %v725 = vshrl.u32 %v724, 7
        %v726 = vsub.s32 1, %v725
        %v727 = vrot.slane %v684, %v726
        %v728 = vlaneseq
        %v729 = vshrl.u32 %v728, 7
        %v730 = vsub.s32 2, %v729
        %v731 = vrot.slane %v684, %v730
        %v732 = vlaneseq
        %v733 = vshrl.u32 %v732, 7
        %v734 = vsub.s32 3, %v733
        %v735 = vrot.slane %v684, %v734
        %v736 = vlaneseq
        %v737 = vshrl.u32 %v736, 7
        %v738 = vsub.s32 0, %v737
        %v739 = vrot.slane %v686, %v738
        %v740 = vlaneseq
        %v741 = vshrl.u32 %v740, 7
        %v742 = vsub.s32 1, %v741
        %v743 = vrot.slane %v686, %v742
        %v744 = vlaneseq
        %v745 = vshrl.u32 %v744, 7
        %v746 = vsub.s32 2, %v745
        %v747 = vrot.slane %v686, %v746
        %v748 = vlaneseq
        %v749 = vshrl.u32 %v748, 7
        %v750 = vsub.s32 3, %v749
        %v751 = vrot.slane %v686, %v750
        %v752 = vlaneseq
        %v753 = vshrl.u32 %v752, 7
        %v754 = vsub.s32 0, %v753
        %v755 = vrot.slane %v669, %v754
        %v756 = vlaneseq
        %v757 = vshrl.u32 %v756, 7
        %v758 = vsub.s32 1, %v757
        %v759 = vrot.slane %v669, %v758
        %v760 = vlaneseq
        %v761 = vshrl.u32 %v760, 7
        %v762 = vsub.s32 2, %v761
        %v763 = vrot.slane %v669, %v762
        %v764 = vlaneseq
        %v765 = vshrl.u32 %v764, 7
        %v766 = vsub.s32 3, %v765
        %v767 = vrot.slane %v669, %v766
        %v768 = vlaneseq
        %v769 = vshrl.u32 %v768, 7
        %v770 = vsub.s32 0, %v769
        %v771 = vrot.slane %v683, %v770
        %v772 = vlaneseq
        %v773 = vshrl.u32 %v772, 7
        %v774 = vsub.s32 1, %v773
        %v775 = vrot.slane %v683, %v774
        %v776 = vlaneseq
        %v777 = vshrl.u32 %v776, 7
        %v778 = vsub.s32 2, %v777
        %v779 = vrot.slane %v683, %v778
        %v780 = vlaneseq
        %v781 = vshrl.u32 %v780, 7
        %v782 = vsub.s32 3, %v781
        %v783 = vrot.slane %v683, %v782
        %v784 = vlaneseq
        %v785 = vshrl.u32 %v784, 7
        %v786 = vsub.s32 0, %v785
        %v787 = vrot.slane %v685, %v786
        %v788 = vlaneseq
        %v789 = vshrl.u32 %v788, 7
        %v790 = vsub.s32 1, %v789
        %v791 = vrot.slane %v685, %v790
        %v792 = vlaneseq
        %v793 = vshrl.u32 %v792, 7
        %v794 = vsub.s32 2, %v793
        %v795 = vrot.slane %v685, %v794
        %v796 = vlaneseq
        %v797 = vshrl.u32 %v796, 7
        %v798 = vsub.s32 3, %v797
        %v799 = vrot.slane %v685, %v798
        %v800 = vlaneseq
        %v801 = vshrl.u32 %v800, 7
        %v802 = vsub.s32 0, %v801
        %v803 = vrot.slane %v687, %v802
        %v804 = vlaneseq
        %v805 = vshrl.u32 %v804, 7
        %v806 = vsub.s32 1, %v805
        %v807 = vrot.slane %v687, %v806
        %v808 = vlaneseq
        %v809 = vshrl.u32 %v808, 7
        %v810 = vsub.s32 2, %v809
        %v811 = vrot.slane %v687, %v810
        %v812 = vlaneseq
        %v813 = vshrl.u32 %v812, 7
        %v814 = vsub.s32 3, %v813
        %v815 = vrot.slane %v687, %v814
        %vm816 = vcmp.eq.s32.totalorder %v691, %v263
        %vm817 = vcmp.eq.s32.totalorder %v695, %v263
        %vm818 = vcmp.eq.s32.totalorder %v699, %v263
        %vm819 = vcmp.eq.s32.totalorder %v703, %v263
        %vm820 = vcmp.eq.s32.totalorder %v691, %v264
        %vm821 = vcmp.eq.s32.totalorder %v695, %v264
        %vm822 = vcmp.eq.s32.totalorder %v699, %v264
        %vm823 = vcmp.eq.s32.totalorder %v703, %v264
        %vm824 = vcmp.eq.s32.totalorder %v691, %v265
        %vm825 = vcmp.eq.s32.totalorder %v695, %v265
        %vm826 = vcmp.eq.s32.totalorder %v699, %v265
        %vm827 = vcmp.eq.s32.totalorder %v703, %v265
        %vm828 = vcmp.eq.s32.totalorder %v691, %v266
        %vm829 = vcmp.eq.s32.totalorder %v695, %v266
        %vm830 = vcmp.eq.s32.totalorder %v699, %v266
        %vm831 = vcmp.eq.s32.totalorder %v703, %v266
        %vm832 = vcmp.eq.s32.totalorder %v707, %v263
        %vm833 = vcmp.eq.s32.totalorder %v711, %v263
        %vm834 = vcmp.eq.s32.totalorder %v715, %v263
        %vm835 = vcmp.eq.s32.totalorder %v719, %v263
        %vm836 = vcmp.eq.s32.totalorder %v707, %v264
        %vm837 = vcmp.eq.s32.totalorder %v711, %v264
        %vm838 = vcmp.eq.s32.totalorder %v715, %v264
        %vm839 = vcmp.eq.s32.totalorder %v719, %v264
        %vm840 = vcmp.eq.s32.totalorder %v707, %v265
        %vm841 = vcmp.eq.s32.totalorder %v711, %v265
        %vm842 = vcmp.eq.s32.totalorder %v715, %v265
        %vm843 = vcmp.eq.s32.totalorder %v719, %v265
        %vm844 = vcmp.eq.s32.totalorder %v707, %v266
        %vm845 = vcmp.eq.s32.totalorder %v711, %v266
        %vm846 = vcmp.eq.s32.totalorder %v715, %v266
        %vm847 = vcmp.eq.s32.totalorder %v719, %v266
        %vm848 = vcmp.eq.s32.totalorder %v723, %v263
        %vm849 = vcmp.eq.s32.totalorder %v727, %v263
        %vm850 = vcmp.eq.s32.totalorder %v731, %v263
        %vm851 = vcmp.eq.s32.totalorder %v735, %v263
        %vm852 = vcmp.eq.s32.totalorder %v723, %v264
        %vm853 = vcmp.eq.s32.totalorder %v727, %v264
        %vm854 = vcmp.eq.s32.totalorder %v731, %v264
        %vm855 = vcmp.eq.s32.totalorder %v735, %v264
        %vm856 = vcmp.eq.s32.totalorder %v723, %v265
        %vm857 = vcmp.eq.s32.totalorder %v727, %v265
        %vm858 = vcmp.eq.s32.totalorder %v731, %v265
        %vm859 = vcmp.eq.s32.totalorder %v735, %v265
        %vm860 = vcmp.eq.s32.totalorder %v723, %v266
        %vm861 = vcmp.eq.s32.totalorder %v727, %v266
        %vm862 = vcmp.eq.s32.totalorder %v731, %v266
        %vm863 = vcmp.eq.s32.totalorder %v735, %v266
        %vm864 = vcmp.eq.s32.totalorder %v739, %v263
        %vm865 = vcmp.eq.s32.totalorder %v743, %v263
        %vm866 = vcmp.eq.s32.totalorder %v747, %v263
        %vm867 = vcmp.eq.s32.totalorder %v751, %v263
        %vm868 = vcmp.eq.s32.totalorder %v739, %v264
        %vm869 = vcmp.eq.s32.totalorder %v743, %v264
        %vm870 = vcmp.eq.s32.totalorder %v747, %v264
        %vm871 = vcmp.eq.s32.totalorder %v751, %v264
        %vm872 = vcmp.eq.s32.totalorder %v739, %v265
        %vm873 = vcmp.eq.s32.totalorder %v743, %v265
        %vm874 = vcmp.eq.s32.totalorder %v747, %v265
        %vm875 = vcmp.eq.s32.totalorder %v751, %v265
        %vm876 = vcmp.eq.s32.totalorder %v739, %v266
        %vm877 = vcmp.eq.s32.totalorder %v743, %v266
        %vm878 = vcmp.eq.s32.totalorder %v747, %v266
        %vm879 = vcmp.eq.s32.totalorder %v751, %v266
        %vm880 = vcmp.eq.s32.totalorder %v755, %v263
        %vm881 = vcmp.eq.s32.totalorder %v759, %v263
        %vm882 = vcmp.eq.s32.totalorder %v763, %v263
        %vm883 = vcmp.eq.s32.totalorder %v767, %v263
        %vm884 = vcmp.eq.s32.totalorder %v755, %v264
        %vm885 = vcmp.eq.s32.totalorder %v759, %v264
        %vm886 = vcmp.eq.s32.totalorder %v763, %v264
        %vm887 = vcmp.eq.s32.totalorder %v767, %v264
        %vm888 = vcmp.eq.s32.totalorder %v755, %v265
        %vm889 = vcmp.eq.s32.totalorder %v759, %v265
        %vm890 = vcmp.eq.s32.totalorder %v763, %v265
        %vm891 = vcmp.eq.s32.totalorder %v767, %v265
        %vm892 = vcmp.eq.s32.totalorder %v755, %v266
        %vm893 = vcmp.eq.s32.totalorder %v759, %v266
        %vm894 = vcmp.eq.s32.totalorder %v763, %v266
        %vm895 = vcmp.eq.s32.totalorder %v767, %v266
        %vm896 = vcmp.eq.s32.totalorder %v771, %v263
        %vm897 = vcmp.eq.s32.totalorder %v775, %v263
        %vm898 = vcmp.eq.s32.totalorder %v779, %v263
        %vm899 = vcmp.eq.s32.totalorder %v783, %v263
        %vm900 = vcmp.eq.s32.totalorder %v771, %v264
        %vm901 = vcmp.eq.s32.totalorder %v775, %v264
        %vm902 = vcmp.eq.s32.totalorder %v779, %v264
        %vm903 = vcmp.eq.s32.totalorder %v783, %v264
        %vm904 = vcmp.eq.s32.totalorder %v771, %v265
        %vm905 = vcmp.eq.s32.totalorder %v775, %v265
        %vm906 = vcmp.eq.s32.totalorder %v779, %v265
        %vm907 = vcmp.eq.s32.totalorder %v783, %v265
        %vm908 = vcmp.eq.s32.totalorder %v771, %v266
        %vm909 = vcmp.eq.s32.totalorder %v775, %v266
        %vm910 = vcmp.eq.s32.totalorder %v779, %v266
        %vm911 = vcmp.eq.s32.totalorder %v783, %v266
        %vm912 = vcmp.eq.s32.totalorder %v787, %v263
        %vm913 = vcmp.eq.s32.totalorder %v791, %v263
        %vm914 = vcmp.eq.s32.totalorder %v795, %v263
        %vm915 = vcmp.eq.s32.totalorder %v799, %v263
        %vm916 = vcmp.eq.s32.totalorder %v787, %v264
        %vm917 = vcmp.eq.s32.totalorder %v791, %v264
        %vm918 = vcmp.eq.s32.totalorder %v795, %v264
        %vm919 = vcmp.eq.s32.totalorder %v799, %v264
        %vm920 = vcmp.eq.s32.totalorder %v787, %v265
        %vm921 = vcmp.eq.s32.totalorder %v791, %v265
        %vm922 = vcmp.eq.s32.totalorder %v795, %v265
        %vm923 = vcmp.eq.s32.totalorder %v799, %v265
        %vm924 = vcmp.eq.s32.totalorder %v787, %v266
        %vm925 = vcmp.eq.s32.totalorder %v791, %v266
        %vm926 = vcmp.eq.s32.totalorder %v795, %v266
        %vm927 = vcmp.eq.s32.totalorder %v799, %v266
        %vm928 = vcmp.eq.s32.totalorder %v803, %v263
        %vm929 = vcmp.eq.s32.totalorder %v807, %v263
        %vm930 = vcmp.eq.s32.totalorder %v811, %v263
        %vm931 = vcmp.eq.s32.totalorder %v815, %v263
        %vm932 = vcmp.eq.s32.totalorder %v803, %v264
        %vm933 = vcmp.eq.s32.totalorder %v807, %v264
        %vm934 = vcmp.eq.s32.totalorder %v811, %v264
        %vm935 = vcmp.eq.s32.totalorder %v815, %v264
        %vm936 = vcmp.eq.s32.totalorder %v803, %v265
        %vm937 = vcmp.eq.s32.totalorder %v807, %v265
        %vm938 = vcmp.eq.s32.totalorder %v811, %v265
        %vm939 = vcmp.eq.s32.totalorder %v815, %v265
        %vm940 = vcmp.eq.s32.totalorder %v803, %v266
        %vm941 = vcmp.eq.s32.totalorder %v807, %v266
        %vm942 = vcmp.eq.s32.totalorder %v811, %v266
        %vm943 = vcmp.eq.s32.totalorder %v815, %v266
        %v944 = vsel %vm816, 1, 0
        %v945 = vsel %vm817, 1, 0
        %v946 = vsel %vm818, 1, 0
        %v947 = vsel %vm819, 1, 0
        %v948 = vsel %vm820, 1, 0
        %v949 = vsel %vm821, 1, 0
        %v950 = vsel %vm822, 1, 0
        %v951 = vsel %vm823, 1, 0
        %v952 = vsel %vm824, 1, 0
        %v953 = vsel %vm825, 1, 0
        %v954 = vsel %vm826, 1, 0
        %v955 = vsel %vm827, 1, 0
        %v956 = vsel %vm828, 1, 0
        %v957 = vsel %vm829, 1, 0
        %v958 = vsel %vm830, 1, 0
        %v959 = vsel %vm831, 1, 0
        %v960 = vsel %vm832, 1, 0
        %v961 = vsel %vm833, 1, 0
        %v962 = vsel %vm834, 1, 0
        %v963 = vsel %vm835, 1, 0
        %v964 = vsel %vm836, 1, 0
        %v965 = vsel %vm837, 1, 0
        %v966 = vsel %vm838, 1, 0
        %v967 = vsel %vm839, 1, 0
        %v968 = vsel %vm840, 1, 0
        %v969 = vsel %vm841, 1, 0
        %v970 = vsel %vm842, 1, 0
        %v971 = vsel %vm843, 1, 0
        %v972 = vsel %vm844, 1, 0
        %v973 = vsel %vm845, 1, 0
        %v974 = vsel %vm846, 1, 0
        %v975 = vsel %vm847, 1, 0
        %v976 = vsel %vm848, 1, 0
        %v977 = vsel %vm849, 1, 0
        %v978 = vsel %vm850, 1, 0
        %v979 = vsel %vm851, 1, 0
        %v980 = vsel %vm852, 1, 0
        %v981 = vsel %vm853, 1, 0
        %v982 = vsel %vm854, 1, 0
        %v983 = vsel %vm855, 1, 0
        %v984 = vsel %vm856, 1, 0
        %v985 = vsel %vm857, 1, 0
        %v986 = vsel %vm858, 1, 0
        %v987 = vsel %vm859, 1, 0
        %v988 = vsel %vm860, 1, 0
        %v989 = vsel %vm861, 1, 0
        %v990 = vsel %vm862, 1, 0
        %v991 = vsel %vm863, 1, 0
        %v992 = vsel %vm864, 1, 0
        %v993 = vsel %vm865, 1, 0
        %v994 = vsel %vm866, 1, 0
        %v995 = vsel %vm867, 1, 0
        %v996 = vsel %vm868, 1, 0
        %v997 = vsel %vm869, 1, 0
        %v998 = vsel %vm870, 1, 0
        %v999 = vsel %vm871, 1, 0
        %v1000 = vsel %vm872, 1, 0
        %v1001 = vsel %vm873, 1, 0
        %v1002 = vsel %vm874, 1, 0
        %v1003 = vsel %vm875, 1, 0
        %v1004 = vsel %vm876, 1, 0
        %v1005 = vsel %vm877, 1, 0
        %v1006 = vsel %vm878, 1, 0
        %v1007 = vsel %vm879, 1, 0
        %v1008 = vsel %vm880, 1, 0
        %v1009 = vsel %vm881, 1, 0
        %v1010 = vsel %vm882, 1, 0
        %v1011 = vsel %vm883, 1, 0
        %v1012 = vsel %vm884, 1, 0
        %v1013 = vsel %vm885, 1, 0
        %v1014 = vsel %vm886, 1, 0
        %v1015 = vsel %vm887, 1, 0
        %v1016 = vsel %vm888, 1, 0
        %v1017 = vsel %vm889, 1, 0
        %v1018 = vsel %vm890, 1, 0
        %v1019 = vsel %vm891, 1, 0
        %v1020 = vsel %vm892, 1, 0
        %v1021 = vsel %vm893, 1, 0
        %v1022 = vsel %vm894, 1, 0
        %v1023 = vsel %vm895, 1, 0
        %v1024 = vsel %vm896, 1, 0
        %v1025 = vsel %vm897, 1, 0
        %v1026 = vsel %vm898, 1, 0
        %v1027 = vsel %vm899, 1, 0
        %v1028 = vsel %vm900, 1, 0
        %v1029 = vsel %vm901, 1, 0
        %v1030 = vsel %vm902, 1, 0
        %v1031 = vsel %vm903, 1, 0
        %v1032 = vsel %vm904, 1, 0
        %v1033 = vsel %vm905, 1, 0
        %v1034 = vsel %vm906, 1, 0
        %v1035 = vsel %vm907, 1, 0
        %v1036 = vsel %vm908, 1, 0
        %v1037 = vsel %vm909, 1, 0
        %v1038 = vsel %vm910, 1, 0
        %v1039 = vsel %vm911, 1, 0
        %v1040 = vsel %vm912, 1, 0
        %v1041 = vsel %vm913, 1, 0
        %v1042 = vsel %vm914, 1, 0
        %v1043 = vsel %vm915, 1, 0
        %v1044 = vsel %vm916, 1, 0
        %v1045 = vsel %vm917, 1, 0
        %v1046 = vsel %vm918, 1, 0
        %v1047 = vsel %vm919, 1, 0
        %v1048 = vsel %vm920, 1, 0
        %v1049 = vsel %vm921, 1, 0
        %v1050 = vsel %vm922, 1, 0
        %v1051 = vsel %vm923, 1, 0
        %v1052 = vsel %vm924, 1, 0
        %v1053 = vsel %vm925, 1, 0
        %v1054 = vsel %vm926, 1, 0
        %v1055 = vsel %vm927, 1, 0
        %v1056 = vsel %vm928, 1, 0
        %v1057 = vsel %vm929, 1, 0
        %v1058 = vsel %vm930, 1, 0
        %v1059 = vsel %vm931, 1, 0
        %v1060 = vsel %vm932, 1, 0
        %v1061 = vsel %vm933, 1, 0
        %v1062 = vsel %vm934, 1, 0
        %v1063 = vsel %vm935, 1, 0
        %v1064 = vsel %vm936, 1, 0
        %v1065 = vsel %vm937, 1, 0
        %v1066 = vsel %vm938, 1, 0
        %v1067 = vsel %vm939, 1, 0
        %v1068 = vsel %vm940, 1, 0
        %v1069 = vsel %vm941, 1, 0
        %v1070 = vsel %vm942, 1, 0
        %v1071 = vsel %vm943, 1, 0
        %v1072 = vcvt.s32.f32 %v944
        %v1073 = vcvt.s32.f32 %v945
        %v1074 = vcvt.s32.f32 %v946
        %v1075 = vcvt.s32.f32 %v947
        %v1076 = vcvt.s32.f32 %v948
        %v1077 = vcvt.s32.f32 %v949
        %v1078 = vcvt.s32.f32 %v950
        %v1079 = vcvt.s32.f32 %v951
        %v1080 = vcvt.s32.f32 %v952
        %v1081 = vcvt.s32.f32 %v953
        %v1082 = vcvt.s32.f32 %v954
        %v1083 = vcvt.s32.f32 %v955
        %v1084 = vcvt.s32.f32 %v956
        %v1085 = vcvt.s32.f32 %v957
        %v1086 = vcvt.s32.f32 %v958
        %v1087 = vcvt.s32.f32 %v959
        %v1088 = vcvt.s32.f32 %v960
        %v1089 = vcvt.s32.f32 %v961
        %v1090 = vcvt.s32.f32 %v962
        %v1091 = vcvt.s32.f32 %v963
        %v1092 = vcvt.s32.f32 %v964
        %v1093 = vcvt.s32.f32 %v965
        %v1094 = vcvt.s32.f32 %v966
        %v1095 = vcvt.s32.f32 %v967
        %v1096 = vcvt.s32.f32 %v968
        %v1097 = vcvt.s32.f32 %v969
        %v1098 = vcvt.s32.f32 %v970
        %v1099 = vcvt.s32.f32 %v971
        %v1100 = vcvt.s32.f32 %v972
        %v1101 = vcvt.s32.f32 %v973
        %v1102 = vcvt.s32.f32 %v974
        %v1103 = vcvt.s32.f32 %v975
        %v1104 = vcvt.s32.f32 %v976
        %v1105 = vcvt.s32.f32 %v977
        %v1106 = vcvt.s32.f32 %v978
        %v1107 = vcvt.s32.f32 %v979
        %v1108 = vcvt.s32.f32 %v980
        %v1109 = vcvt.s32.f32 %v981
        %v1110 = vcvt.s32.f32 %v982
        %v1111 = vcvt.s32.f32 %v983
        %v1112 = vcvt.s32.f32 %v984
        %v1113 = vcvt.s32.f32 %v985
        %v1114 = vcvt.s32.f32 %v986
        %v1115 = vcvt.s32.f32 %v987
        %v1116 = vcvt.s32.f32 %v988
        %v1117 = vcvt.s32.f32 %v989
        %v1118 = vcvt.s32.f32 %v990
        %v1119 = vcvt.s32.f32 %v991
        %v1120 = vcvt.s32.f32 %v992
        %v1121 = vcvt.s32.f32 %v993
        %v1122 = vcvt.s32.f32 %v994
        %v1123 = vcvt.s32.f32 %v995
        %v1124 = vcvt.s32.f32 %v996
        %v1125 = vcvt.s32.f32 %v997
        %v1126 = vcvt.s32.f32 %v998
        %v1127 = vcvt.s32.f32 %v999
        %v1128 = vcvt.s32.f32 %v1000
        %v1129 = vcvt.s32.f32 %v1001
        %v1130 = vcvt.s32.f32 %v1002
        %v1131 = vcvt.s32.f32 %v1003
        %v1132 = vcvt.s32.f32 %v1004
        %v1133 = vcvt.s32.f32 %v1005
        %v1134 = vcvt.s32.f32 %v1006
        %v1135 = vcvt.s32.f32 %v1007
        %v1136 = vcvt.s32.f32 %v1008
        %v1137 = vcvt.s32.f32 %v1009
        %v1138 = vcvt.s32.f32 %v1010
        %v1139 = vcvt.s32.f32 %v1011
        %v1140 = vcvt.s32.f32 %v1012
        %v1141 = vcvt.s32.f32 %v1013
        %v1142 = vcvt.s32.f32 %v1014
        %v1143 = vcvt.s32.f32 %v1015
        %v1144 = vcvt.s32.f32 %v1016
        %v1145 = vcvt.s32.f32 %v1017
        %v1146 = vcvt.s32.f32 %v1018
        %v1147 = vcvt.s32.f32 %v1019
        %v1148 = vcvt.s32.f32 %v1020
        %v1149 = vcvt.s32.f32 %v1021
        %v1150 = vcvt.s32.f32 %v1022
        %v1151 = vcvt.s32.f32 %v1023
        %v1152 = vcvt.s32.f32 %v1024
        %v1153 = vcvt.s32.f32 %v1025
        %v1154 = vcvt.s32.f32 %v1026
        %v1155 = vcvt.s32.f32 %v1027
        %v1156 = vcvt.s32.f32 %v1028
        %v1157 = vcvt.s32.f32 %v1029
        %v1158 = vcvt.s32.f32 %v1030
        %v1159 = vcvt.s32.f32 %v1031
        %v1160 = vcvt.s32.f32 %v1032
        %v1161 = vcvt.s32.f32 %v1033
        %v1162 = vcvt.s32.f32 %v1034
        %v1163 = vcvt.s32.f32 %v1035
        %v1164 = vcvt.s32.f32 %v1036
        %v1165 = vcvt.s32.f32 %v1037
        %v1166 = vcvt.s32.f32 %v1038
        %v1167 = vcvt.s32.f32 %v1039
        %v1168 = vcvt.s32.f32 %v1040
        %v1169 = vcvt.s32.f32 %v1041
        %v1170 = vcvt.s32.f32 %v1042
        %v1171 = vcvt.s32.f32 %v1043
        %v1172 = vcvt.s32.f32 %v1044
        %v1173 = vcvt.s32.f32 %v1045
        %v1174 = vcvt.s32.f32 %v1046
        %v1175 = vcvt.s32.f32 %v1047
        %v1176 = vcvt.s32.f32 %v1048
        %v1177 = vcvt.s32.f32 %v1049
        %v1178 = vcvt.s32.f32 %v1050
        %v1179 = vcvt.s32.f32 %v1051
        %v1180 = vcvt.s32.f32 %v1052
        %v1181 = vcvt.s32.f32 %v1053
        %v1182 = vcvt.s32.f32 %v1054
        %v1183 = vcvt.s32.f32 %v1055
        %v1184 = vcvt.s32.f32 %v1056
        %v1185 = vcvt.s32.f32 %v1057
        %v1186 = vcvt.s32.f32 %v1058
        %v1187 = vcvt.s32.f32 %v1059
        %v1188 = vcvt.s32.f32 %v1060
        %v1189 = vcvt.s32.f32 %v1061
        %v1190 = vcvt.s32.f32 %v1062
        %v1191 = vcvt.s32.f32 %v1063
        %v1192 = vcvt.s32.f32 %v1064
        %v1193 = vcvt.s32.f32 %v1065
        %v1194 = vcvt.s32.f32 %v1066
        %v1195 = vcvt.s32.f32 %v1067
        %v1196 = vcvt.s32.f32 %v1068
        %v1197 = vcvt.s32.f32 %v1069
        %v1198 = vcvt.s32.f32 %v1070
        %v1199 = vcvt.s32.f32 %v1071
        %v1200 = vpack.c.bf16 %v1076, %v1072
        %v1201 = vpack.c.bf16 %v1077, %v1073
        %v1202 = vpack.c.bf16 %v1078, %v1074
        %v1203 = vpack.c.bf16 %v1079, %v1075
        %v1204 = vpack.c.bf16 %v1084, %v1080
        %v1205 = vpack.c.bf16 %v1085, %v1081
        %v1206 = vpack.c.bf16 %v1086, %v1082
        %v1207 = vpack.c.bf16 %v1087, %v1083
        %v1208 = vpack.c.bf16 %v1092, %v1088
        %v1209 = vpack.c.bf16 %v1093, %v1089
        %v1210 = vpack.c.bf16 %v1094, %v1090
        %v1211 = vpack.c.bf16 %v1095, %v1091
        %v1212 = vpack.c.bf16 %v1100, %v1096
        %v1213 = vpack.c.bf16 %v1101, %v1097
        %v1214 = vpack.c.bf16 %v1102, %v1098
        %v1215 = vpack.c.bf16 %v1103, %v1099
        %v1216 = vpack.c.bf16 %v1108, %v1104
        %v1217 = vpack.c.bf16 %v1109, %v1105
        %v1218 = vpack.c.bf16 %v1110, %v1106
        %v1219 = vpack.c.bf16 %v1111, %v1107
        %v1220 = vpack.c.bf16 %v1116, %v1112
        %v1221 = vpack.c.bf16 %v1117, %v1113
        %v1222 = vpack.c.bf16 %v1118, %v1114
        %v1223 = vpack.c.bf16 %v1119, %v1115
        %v1224 = vpack.c.bf16 %v1124, %v1120
        %v1225 = vpack.c.bf16 %v1125, %v1121
        %v1226 = vpack.c.bf16 %v1126, %v1122
        %v1227 = vpack.c.bf16 %v1127, %v1123
        %v1228 = vpack.c.bf16 %v1132, %v1128
        %v1229 = vpack.c.bf16 %v1133, %v1129
        %v1230 = vpack.c.bf16 %v1134, %v1130
        %v1231 = vpack.c.bf16 %v1135, %v1131
        %v1232 = vpack.c.bf16 %v1140, %v1136
        %v1233 = vpack.c.bf16 %v1141, %v1137
        %v1234 = vpack.c.bf16 %v1142, %v1138
        %v1235 = vpack.c.bf16 %v1143, %v1139
        %v1236 = vpack.c.bf16 %v1148, %v1144
        %v1237 = vpack.c.bf16 %v1149, %v1145
        %v1238 = vpack.c.bf16 %v1150, %v1146
        %v1239 = vpack.c.bf16 %v1151, %v1147
        %v1240 = vpack.c.bf16 %v1156, %v1152
        %v1241 = vpack.c.bf16 %v1157, %v1153
        %v1242 = vpack.c.bf16 %v1158, %v1154
        %v1243 = vpack.c.bf16 %v1159, %v1155
        %v1244 = vpack.c.bf16 %v1164, %v1160
        %v1245 = vpack.c.bf16 %v1165, %v1161
        %v1246 = vpack.c.bf16 %v1166, %v1162
        %v1247 = vpack.c.bf16 %v1167, %v1163
        %v1248 = vpack.c.bf16 %v1172, %v1168
        %v1249 = vpack.c.bf16 %v1173, %v1169
        %v1250 = vpack.c.bf16 %v1174, %v1170
        %v1251 = vpack.c.bf16 %v1175, %v1171
        %v1252 = vpack.c.bf16 %v1180, %v1176
        %v1253 = vpack.c.bf16 %v1181, %v1177
        %v1254 = vpack.c.bf16 %v1182, %v1178
        %v1255 = vpack.c.bf16 %v1183, %v1179
        %v1256 = vpack.c.bf16 %v1188, %v1184
        %v1257 = vpack.c.bf16 %v1189, %v1185
        %v1258 = vpack.c.bf16 %v1190, %v1186
        %v1259 = vpack.c.bf16 %v1191, %v1187
        %v1260 = vpack.c.bf16 %v1196, %v1192
        %v1261 = vpack.c.bf16 %v1197, %v1193
        %v1262 = vpack.c.bf16 %v1198, %v1194
        %v1263 = vpack.c.bf16 %v1199, %v1195
        %1264 = vmatprep.subr.bf16.mxu0 %v1201
        %1265 = vmatpush1.bf16.xpose.msra.mxu0 %v1200
        %1266 = vmatprep.subr.bf16.mxu0 %v1205
        %1267 = vmatpush1.bf16.xpose.msra.mxu0 %v1204
        %1268 = vmatprep.subr.bf16.mxu0 0
        %1269 = vmatpush1.bf16.xpose.msra.mxu0 0
        %1270 = vmatprep.subr.bf16.mxu0 0
        %1271 = vmatpush1.bf16.xpose.msra.mxu0 0
        %1272 = vmatprep.subr.bf16.mxu0 0
        %1273 = vmatpush1.bf16.xpose.msra.mxu0 0
        %1274 = vmatprep.subr.bf16.mxu0 0
        %1275 = vmatpush1.bf16.xpose.msra.mxu0 0
        %1276 = vmatprep.subr.bf16.mxu0 0
        %1277 = vmatpush1.bf16.xpose.msra.mxu0 0
        %1278 = vmatprep.subr.bf16.mxu0 0
        %1279 = vmatpush1.bf16.xpose.msra.mxu0 0
        %1280 = vmatprep.subr.bf16.mxu0 0
        %1281 = vmatpush1.bf16.xpose.msra.mxu0 0
        %1282 = vmatprep.subr.bf16.mxu0 0
        %1283 = vmatpush1.bf16.xpose.msra.mxu0 0
        %1284 = vmatprep.subr.bf16.mxu0 0
        %1285 = vmatpush1.bf16.xpose.msra.mxu0 0
        %1286 = vmatprep.subr.bf16.mxu0 0
        %1287 = vmatpush1.bf16.xpose.msra.mxu0 0
        %1288 = vmatprep.subr.bf16.mxu0 0
        %1289 = vmatpush1.bf16.xpose.msra.mxu0 0
        %1290 = vmatprep.subr.bf16.mxu0 0
        %1291 = vmatpush1.bf16.xpose.msra.mxu0 0
        %1292 = vmatprep.subr.bf16.mxu0 0
        %1293 = vmatpush1.bf16.xpose.msra.mxu0 0
        %1294 = vmatprep.subr.bf16.mxu0 0
        %1295 = vmatpush1.bf16.xpose.msra.mxu0 0
        %1296 = vmatprep.mubr.bf16.mxu0 %v589
        %1297 = vmatmul.mubr.bf16.gmra.mrb[0].mxu0 %v588
        %v1298 = vpop.f32.mrb[0].mxu0
        %v1299 = vadd.f32 0.0, %v1298
        %v1300 = vpop.f32.mrb[0].mxu0
        %v1301 = vpop.f32.mrb[0].mxu0
        %v1302 = vpop.f32.mrb[0].mxu0
        %1303 = vdwg.mxu0
        %1304 = vmatprep.subr.bf16.mxu0 %v1203
        %1305 = vmatpush1.bf16.xpose.msra.mxu0 %v1202
        %1306 = vmatprep.subr.bf16.mxu0 %v1207
        %1307 = vmatpush1.bf16.xpose.msra.mxu0 %v1206
        %1308 = vmatprep.subr.bf16.mxu0 0
        %1309 = vmatpush1.bf16.xpose.msra.mxu0 0
        %1310 = vmatprep.subr.bf16.mxu0 0
        %1311 = vmatpush1.bf16.xpose.msra.mxu0 0
        %1312 = vmatprep.subr.bf16.mxu0 0
        %1313 = vmatpush1.bf16.xpose.msra.mxu0 0
        %1314 = vmatprep.subr.bf16.mxu0 0
        %1315 = vmatpush1.bf16.xpose.msra.mxu0 0
        %1316 = vmatprep.subr.bf16.mxu0 0
        %1317 = vmatpush1.bf16.xpose.msra.mxu0 0
        %1318 = vmatprep.subr.bf16.mxu0 0
        %1319 = vmatpush1.bf16.xpose.msra.mxu0 0
        %1320 = vmatprep.subr.bf16.mxu0 0
        %1321 = vmatpush1.bf16.xpose.msra.mxu0 0
        %1322 = vmatprep.subr.bf16.mxu0 0
        %1323 = vmatpush1.bf16.xpose.msra.mxu0 0
        %1324 = vmatprep.subr.bf16.mxu0 0
        %1325 = vmatpush1.bf16.xpose.msra.mxu0 0
        %1326 = vmatprep.subr.bf16.mxu0 0
        %1327 = vmatpush1.bf16.xpose.msra.mxu0 0
        %1328 = vmatprep.subr.bf16.mxu0 0
        %1329 = vmatpush1.bf16.xpose.msra.mxu0 0
        %1330 = vmatprep.subr.bf16.mxu0 0
        %1331 = vmatpush1.bf16.xpose.msra.mxu0 0
        %1332 = vmatprep.subr.bf16.mxu0 0
        %1333 = vmatpush1.bf16.xpose.msra.mxu0 0
        %1334 = vmatprep.subr.bf16.mxu0 0
        %1335 = vmatpush1.bf16.xpose.msra.mxu0 0
        %1336 = vmatprep.mubr.bf16.mxu0 %v591
        %1337 = vmatmul.mubr.bf16.gmra.mrb[0].mxu0 %v590
        %v1338 = vpop.f32.mrb[0].mxu0
        %v1339 = vadd.f32 %v1299, %v1338
        %v1340 = vpop.f32.mrb[0].mxu0
        %v1341 = vpop.f32.mrb[0].mxu0
        %v1342 = vpop.f32.mrb[0].mxu0
        %1343 = vdwg.mxu0
        %1344 = vmatprep.subr.bf16.mxu0 %v1209
        %1345 = vmatpush1.bf16.xpose.msra.mxu0 %v1208
        %1346 = vmatprep.subr.bf16.mxu0 %v1213
        %1347 = vmatpush1.bf16.xpose.msra.mxu0 %v1212
        %1348 = vmatprep.subr.bf16.mxu0 0
        %1349 = vmatpush1.bf16.xpose.msra.mxu0 0
        %1350 = vmatprep.subr.bf16.mxu0 0
        %1351 = vmatpush1.bf16.xpose.msra.mxu0 0
        %1352 = vmatprep.subr.bf16.mxu0 0
        %1353 = vmatpush1.bf16.xpose.msra.mxu0 0
        %1354 = vmatprep.subr.bf16.mxu0 0
        %1355 = vmatpush1.bf16.xpose.msra.mxu0 0
        %1356 = vmatprep.subr.bf16.mxu0 0
        %1357 = vmatpush1.bf16.xpose.msra.mxu0 0
        %1358 = vmatprep.subr.bf16.mxu0 0
        %1359 = vmatpush1.bf16.xpose.msra.mxu0 0
        %1360 = vmatprep.subr.bf16.mxu0 0
        %1361 = vmatpush1.bf16.xpose.msra.mxu0 0
        %1362 = vmatprep.subr.bf16.mxu0 0
        %1363 = vmatpush1.bf16.xpose.msra.mxu0 0
        %1364 = vmatprep.subr.bf16.mxu0 0
        %1365 = vmatpush1.bf16.xpose.msra.mxu0 0
        %1366 = vmatprep.subr.bf16.mxu0 0
        %1367 = vmatpush1.bf16.xpose.msra.mxu0 0
        %1368 = vmatprep.subr.bf16.mxu0 0
        %1369 = vmatpush1.bf16.xpose.msra.mxu0 0
        %1370 = vmatprep.subr.bf16.mxu0 0
        %1371 = vmatpush1.bf16.xpose.msra.mxu0 0
        %1372 = vmatprep.subr.bf16.mxu0 0
        %1373 = vmatpush1.bf16.xpose.msra.mxu0 0
        %1374 = vmatprep.subr.bf16.mxu0 0
        %1375 = vmatpush1.bf16.xpose.msra.mxu0 0
        %1376 = vmatprep.mubr.bf16.mxu0 %v593
        %1377 = vmatmul.mubr.bf16.gmra.mrb[0].mxu0 %v592
        %v1378 = vpop.f32.mrb[0].mxu0
        %v1379 = vadd.f32 0.0, %v1378
        %v1380 = vpop.f32.mrb[0].mxu0
        %v1381 = vpop.f32.mrb[0].mxu0
        %v1382 = vpop.f32.mrb[0].mxu0
        %1383 = vdwg.mxu0
        %1384 = vmatprep.subr.bf16.mxu0 %v1211
        %1385 = vmatpush1.bf16.xpose.msra.mxu0 %v1210
        %1386 = vmatprep.subr.bf16.mxu0 %v1215
        %1387 = vmatpush1.bf16.xpose.msra.mxu0 %v1214
        %1388 = vmatprep.subr.bf16.mxu0 0
        %1389 = vmatpush1.bf16.xpose.msra.mxu0 0
        %1390 = vmatprep.subr.bf16.mxu0 0
        %1391 = vmatpush1.bf16.xpose.msra.mxu0 0
        %1392 = vmatprep.subr.bf16.mxu0 0
        %1393 = vmatpush1.bf16.xpose.msra.mxu0 0
        %1394 = vmatprep.subr.bf16.mxu0 0
        %1395 = vmatpush1.bf16.xpose.msra.mxu0 0
        %1396 = vmatprep.subr.bf16.mxu0 0
        %1397 = vmatpush1.bf16.xpose.msra.mxu0 0
        %1398 = vmatprep.subr.bf16.mxu0 0
        %1399 = vmatpush1.bf16.xpose.msra.mxu0 0
        %1400 = vmatprep.subr.bf16.mxu0 0
        %1401 = vmatpush1.bf16.xpose.msra.mxu0 0
        %1402 = vmatprep.subr.bf16.mxu0 0
        %1403 = vmatpush1.bf16.xpose.msra.mxu0 0
        %1404 = vmatprep.subr.bf16.mxu0 0
        %1405 = vmatpush1.bf16.xpose.msra.mxu0 0
        %1406 = vmatprep.subr.bf16.mxu0 0
        %1407 = vmatpush1.bf16.xpose.msra.mxu0 0
        %1408 = vmatprep.subr.bf16.mxu0 0
        %1409 = vmatpush1.bf16.xpose.msra.mxu0 0
        %1410 = vmatprep.subr.bf16.mxu0 0
        %1411 = vmatpush1.bf16.xpose.msra.mxu0 0
        %1412 = vmatprep.subr.bf16.mxu0 0
        %1413 = vmatpush1.bf16.xpose.msra.mxu0 0
        %1414 = vmatprep.subr.bf16.mxu0 0
        %1415 = vmatpush1.bf16.xpose.msra.mxu0 0
        %1416 = vmatprep.mubr.bf16.mxu0 %v595
        %1417 = vmatmul.mubr.bf16.gmra.mrb[0].mxu0 %v594
        %v1418 = vpop.f32.mrb[0].mxu0
        %v1419 = vadd.f32 %v1379, %v1418
        %v1420 = vpop.f32.mrb[0].mxu0
        %v1421 = vpop.f32.mrb[0].mxu0
        %v1422 = vpop.f32.mrb[0].mxu0
        %1423 = vdwg.mxu0
        %1424 = vmatprep.subr.bf16.mxu0 %v1217
        %1425 = vmatpush1.bf16.xpose.msra.mxu0 %v1216
        %1426 = vmatprep.subr.bf16.mxu0 %v1221
        %1427 = vmatpush1.bf16.xpose.msra.mxu0 %v1220
        %1428 = vmatprep.subr.bf16.mxu0 0
        %1429 = vmatpush1.bf16.xpose.msra.mxu0 0
        %1430 = vmatprep.subr.bf16.mxu0 0
        %1431 = vmatpush1.bf16.xpose.msra.mxu0 0
        %1432 = vmatprep.subr.bf16.mxu0 0
        %1433 = vmatpush1.bf16.xpose.msra.mxu0 0
        %1434 = vmatprep.subr.bf16.mxu0 0
        %1435 = vmatpush1.bf16.xpose.msra.mxu0 0
        %1436 = vmatprep.subr.bf16.mxu0 0
        %1437 = vmatpush1.bf16.xpose.msra.mxu0 0
        %1438 = vmatprep.subr.bf16.mxu0 0
        %1439 = vmatpush1.bf16.xpose.msra.mxu0 0
        %1440 = vmatprep.subr.bf16.mxu0 0
        %1441 = vmatpush1.bf16.xpose.msra.mxu0 0
        %1442 = vmatprep.subr.bf16.mxu0 0
        %1443 = vmatpush1.bf16.xpose.msra.mxu0 0
        %1444 = vmatprep.subr.bf16.mxu0 0
        %1445 = vmatpush1.bf16.xpose.msra.mxu0 0
        %1446 = vmatprep.subr.bf16.mxu0 0
        %1447 = vmatpush1.bf16.xpose.msra.mxu0 0
        %1448 = vmatprep.subr.bf16.mxu0 0
        %1449 = vmatpush1.bf16.xpose.msra.mxu0 0
        %1450 = vmatprep.subr.bf16.mxu0 0
        %1451 = vmatpush1.bf16.xpose.msra.mxu0 0
        %1452 = vmatprep.subr.bf16.mxu0 0
        %1453 = vmatpush1.bf16.xpose.msra.mxu0 0
        %1454 = vmatprep.subr.bf16.mxu0 0
        %1455 = vmatpush1.bf16.xpose.msra.mxu0 0
        %1456 = vmatprep.mubr.bf16.mxu0 %v597
        %1457 = vmatmul.mubr.bf16.gmra.mrb[0].mxu0 %v596
        %v1458 = vpop.f32.mrb[0].mxu0
        %v1459 = vadd.f32 0.0, %v1458
        %v1460 = vpop.f32.mrb[0].mxu0
        %v1461 = vpop.f32.mrb[0].mxu0
        %v1462 = vpop.f32.mrb[0].mxu0
        %1463 = vdwg.mxu0
        %1464 = vmatprep.subr.bf16.mxu0 %v1219
        %1465 = vmatpush1.bf16.xpose.msra.mxu0 %v1218
        %1466 = vmatprep.subr.bf16.mxu0 %v1223
        %1467 = vmatpush1.bf16.xpose.msra.mxu0 %v1222
        %1468 = vmatprep.subr.bf16.mxu0 0
        %1469 = vmatpush1.bf16.xpose.msra.mxu0 0
        %1470 = vmatprep.subr.bf16.mxu0 0
        %1471 = vmatpush1.bf16.xpose.msra.mxu0 0
        %1472 = vmatprep.subr.bf16.mxu0 0
        %1473 = vmatpush1.bf16.xpose.msra.mxu0 0
        %1474 = vmatprep.subr.bf16.mxu0 0
        %1475 = vmatpush1.bf16.xpose.msra.mxu0 0
        %1476 = vmatprep.subr.bf16.mxu0 0
        %1477 = vmatpush1.bf16.xpose.msra.mxu0 0
        %1478 = vmatprep.subr.bf16.mxu0 0
        %1479 = vmatpush1.bf16.xpose.msra.mxu0 0
        %1480 = vmatprep.subr.bf16.mxu0 0
        %1481 = vmatpush1.bf16.xpose.msra.mxu0 0
        %1482 = vmatprep.subr.bf16.mxu0 0
        %1483 = vmatpush1.bf16.xpose.msra.mxu0 0
        %1484 = vmatprep.subr.bf16.mxu0 0
        %1485 = vmatpush1.bf16.xpose.msra.mxu0 0
        %1486 = vmatprep.subr.bf16.mxu0 0
        %1487 = vmatpush1.bf16.xpose.msra.mxu0 0
        %1488 = vmatprep.subr.bf16.mxu0 0
        %1489 = vmatpush1.bf16.xpose.msra.mxu0 0
        %1490 = vmatprep.subr.bf16.mxu0 0
        %1491 = vmatpush1.bf16.xpose.msra.mxu0 0
        %1492 = vmatprep.subr.bf16.mxu0 0
        %1493 = vmatpush1.bf16.xpose.msra.mxu0 0
        %1494 = vmatprep.subr.bf16.mxu0 0
        %1495 = vmatpush1.bf16.xpose.msra.mxu0 0
        %1496 = vmatprep.mubr.bf16.mxu0 %v599
        %1497 = vmatmul.mubr.bf16.gmra.mrb[0].mxu0 %v598
        %v1498 = vpop.f32.mrb[0].mxu0
        %v1499 = vadd.f32 %v1459, %v1498
        %v1500 = vpop.f32.mrb[0].mxu0
        %v1501 = vpop.f32.mrb[0].mxu0
        %v1502 = vpop.f32.mrb[0].mxu0
        %1503 = vdwg.mxu0
        %1504 = vmatprep.subr.bf16.mxu0 %v1225
        %1505 = vmatpush1.bf16.xpose.msra.mxu0 %v1224
        %1506 = vmatprep.subr.bf16.mxu0 %v1229
        %1507 = vmatpush1.bf16.xpose.msra.mxu0 %v1228
        %1508 = vmatprep.subr.bf16.mxu0 0
        %1509 = vmatpush1.bf16.xpose.msra.mxu0 0
        %1510 = vmatprep.subr.bf16.mxu0 0
        %1511 = vmatpush1.bf16.xpose.msra.mxu0 0
        %1512 = vmatprep.subr.bf16.mxu0 0
        %1513 = vmatpush1.bf16.xpose.msra.mxu0 0
        %1514 = vmatprep.subr.bf16.mxu0 0
        %1515 = vmatpush1.bf16.xpose.msra.mxu0 0
        %1516 = vmatprep.subr.bf16.mxu0 0
        %1517 = vmatpush1.bf16.xpose.msra.mxu0 0
        %1518 = vmatprep.subr.bf16.mxu0 0
        %1519 = vmatpush1.bf16.xpose.msra.mxu0 0
        %1520 = vmatprep.subr.bf16.mxu0 0
        %1521 = vmatpush1.bf16.xpose.msra.mxu0 0
        %1522 = vmatprep.subr.bf16.mxu0 0
        %1523 = vmatpush1.bf16.xpose.msra.mxu0 0
        %1524 = vmatprep.subr.bf16.mxu0 0
        %1525 = vmatpush1.bf16.xpose.msra.mxu0 0
        %1526 = vmatprep.subr.bf16.mxu0 0
        %1527 = vmatpush1.bf16.xpose.msra.mxu0 0
        %1528 = vmatprep.subr.bf16.mxu0 0
        %1529 = vmatpush1.bf16.xpose.msra.mxu0 0
        %1530 = vmatprep.subr.bf16.mxu0 0
        %1531 = vmatpush1.bf16.xpose.msra.mxu0 0
        %1532 = vmatprep.subr.bf16.mxu0 0
        %1533 = vmatpush1.bf16.xpose.msra.mxu0 0
        %1534 = vmatprep.subr.bf16.mxu0 0
        %1535 = vmatpush1.bf16.xpose.msra.mxu0 0
        %1536 = vmatprep.mubr.bf16.mxu0 %v601
        %1537 = vmatmul.mubr.bf16.gmra.mrb[0].mxu0 %v600
        %v1538 = vpop.f32.mrb[0].mxu0
        %v1539 = vadd.f32 0.0, %v1538
        %v1540 = vpop.f32.mrb[0].mxu0
        %v1541 = vpop.f32.mrb[0].mxu0
        %v1542 = vpop.f32.mrb[0].mxu0
        %1543 = vdwg.mxu0
        %1544 = vmatprep.subr.bf16.mxu0 %v1227
        %1545 = vmatpush1.bf16.xpose.msra.mxu0 %v1226
        %1546 = vmatprep.subr.bf16.mxu0 %v1231
        %1547 = vmatpush1.bf16.xpose.msra.mxu0 %v1230
        %1548 = vmatprep.subr.bf16.mxu0 0
        %1549 = vmatpush1.bf16.xpose.msra.mxu0 0
        %1550 = vmatprep.subr.bf16.mxu0 0
        %1551 = vmatpush1.bf16.xpose.msra.mxu0 0
        %1552 = vmatprep.subr.bf16.mxu0 0
        %1553 = vmatpush1.bf16.xpose.msra.mxu0 0
        %1554 = vmatprep.subr.bf16.mxu0 0
        %1555 = vmatpush1.bf16.xpose.msra.mxu0 0
        %1556 = vmatprep.subr.bf16.mxu0 0
        %1557 = vmatpush1.bf16.xpose.msra.mxu0 0
        %1558 = vmatprep.subr.bf16.mxu0 0
        %1559 = vmatpush1.bf16.xpose.msra.mxu0 0
        %1560 = vmatprep.subr.bf16.mxu0 0
        %1561 = vmatpush1.bf16.xpose.msra.mxu0 0
        %1562 = vmatprep.subr.bf16.mxu0 0
        %1563 = vmatpush1.bf16.xpose.msra.mxu0 0
        %1564 = vmatprep.subr.bf16.mxu0 0
        %1565 = vmatpush1.bf16.xpose.msra.mxu0 0
        %1566 = vmatprep.subr.bf16.mxu0 0
        %1567 = vmatpush1.bf16.xpose.msra.mxu0 0
        %1568 = vmatprep.subr.bf16.mxu0 0
        %1569 = vmatpush1.bf16.xpose.msra.mxu0 0
        %1570 = vmatprep.subr.bf16.mxu0 0
        %1571 = vmatpush1.bf16.xpose.msra.mxu0 0
        %1572 = vmatprep.subr.bf16.mxu0 0
        %1573 = vmatpush1.bf16.xpose.msra.mxu0 0
        %1574 = vmatprep.subr.bf16.mxu0 0
        %1575 = vmatpush1.bf16.xpose.msra.mxu0 0
        %1576 = vmatprep.mubr.bf16.mxu0 %v603
        %1577 = vmatmul.mubr.bf16.gmra.mrb[0].mxu0 %v602
        %v1578 = vpop.f32.mrb[0].mxu0
        %v1579 = vadd.f32 %v1539, %v1578
        %v1580 = vpop.f32.mrb[0].mxu0
        %v1581 = vpop.f32.mrb[0].mxu0
        %v1582 = vpop.f32.mrb[0].mxu0
        %1583 = vdwg.mxu0
        %1584 = vmatprep.subr.bf16.mxu0 %v1233
        %1585 = vmatpush1.bf16.xpose.msra.mxu0 %v1232
        %1586 = vmatprep.subr.bf16.mxu0 %v1237
        %1587 = vmatpush1.bf16.xpose.msra.mxu0 %v1236
        %1588 = vmatprep.subr.bf16.mxu0 0
        %1589 = vmatpush1.bf16.xpose.msra.mxu0 0
        %1590 = vmatprep.subr.bf16.mxu0 0
        %1591 = vmatpush1.bf16.xpose.msra.mxu0 0
        %1592 = vmatprep.subr.bf16.mxu0 0
        %1593 = vmatpush1.bf16.xpose.msra.mxu0 0
        %1594 = vmatprep.subr.bf16.mxu0 0
        %1595 = vmatpush1.bf16.xpose.msra.mxu0 0
        %1596 = vmatprep.subr.bf16.mxu0 0
        %1597 = vmatpush1.bf16.xpose.msra.mxu0 0
        %1598 = vmatprep.subr.bf16.mxu0 0
        %1599 = vmatpush1.bf16.xpose.msra.mxu0 0
        %1600 = vmatprep.subr.bf16.mxu0 0
        %1601 = vmatpush1.bf16.xpose.msra.mxu0 0
        %1602 = vmatprep.subr.bf16.mxu0 0
        %1603 = vmatpush1.bf16.xpose.msra.mxu0 0
        %1604 = vmatprep.subr.bf16.mxu0 0
        %1605 = vmatpush1.bf16.xpose.msra.mxu0 0
        %1606 = vmatprep.subr.bf16.mxu0 0
        %1607 = vmatpush1.bf16.xpose.msra.mxu0 0
        %1608 = vmatprep.subr.bf16.mxu0 0
        %1609 = vmatpush1.bf16.xpose.msra.mxu0 0
        %1610 = vmatprep.subr.bf16.mxu0 0
        %1611 = vmatpush1.bf16.xpose.msra.mxu0 0
        %1612 = vmatprep.subr.bf16.mxu0 0
        %1613 = vmatpush1.bf16.xpose.msra.mxu0 0
        %1614 = vmatprep.subr.bf16.mxu0 0
        %1615 = vmatpush1.bf16.xpose.msra.mxu0 0
        %1616 = vmatprep.mubr.bf16.mxu0 %v605
        %1617 = vmatmul.mubr.bf16.gmra.mrb[0].mxu0 %v604
        %v1618 = vpop.f32.mrb[0].mxu0
        %v1619 = vadd.f32 0.0, %v1618
        %v1620 = vpop.f32.mrb[0].mxu0
        %v1621 = vpop.f32.mrb[0].mxu0
        %v1622 = vpop.f32.mrb[0].mxu0
        %1623 = vdwg.mxu0
        %1624 = vmatprep.subr.bf16.mxu0 %v1235
        %1625 = vmatpush1.bf16.xpose.msra.mxu0 %v1234
        %1626 = vmatprep.subr.bf16.mxu0 %v1239
        %1627 = vmatpush1.bf16.xpose.msra.mxu0 %v1238
        %1628 = vmatprep.subr.bf16.mxu0 0
        %1629 = vmatpush1.bf16.xpose.msra.mxu0 0
        %1630 = vmatprep.subr.bf16.mxu0 0
        %1631 = vmatpush1.bf16.xpose.msra.mxu0 0
        %1632 = vmatprep.subr.bf16.mxu0 0
        %1633 = vmatpush1.bf16.xpose.msra.mxu0 0
        %1634 = vmatprep.subr.bf16.mxu0 0
        %1635 = vmatpush1.bf16.xpose.msra.mxu0 0
        %1636 = vmatprep.subr.bf16.mxu0 0
        %1637 = vmatpush1.bf16.xpose.msra.mxu0 0
        %1638 = vmatprep.subr.bf16.mxu0 0
        %1639 = vmatpush1.bf16.xpose.msra.mxu0 0
        %1640 = vmatprep.subr.bf16.mxu0 0
        %1641 = vmatpush1.bf16.xpose.msra.mxu0 0
        %1642 = vmatprep.subr.bf16.mxu0 0
        %1643 = vmatpush1.bf16.xpose.msra.mxu0 0
        %1644 = vmatprep.subr.bf16.mxu0 0
        %1645 = vmatpush1.bf16.xpose.msra.mxu0 0
        %1646 = vmatprep.subr.bf16.mxu0 0
        %1647 = vmatpush1.bf16.xpose.msra.mxu0 0
        %1648 = vmatprep.subr.bf16.mxu0 0
        %1649 = vmatpush1.bf16.xpose.msra.mxu0 0
        %1650 = vmatprep.subr.bf16.mxu0 0
        %1651 = vmatpush1.bf16.xpose.msra.mxu0 0
        %1652 = vmatprep.subr.bf16.mxu0 0
        %1653 = vmatpush1.bf16.xpose.msra.mxu0 0
        %1654 = vmatprep.subr.bf16.mxu0 0
        %1655 = vmatpush1.bf16.xpose.msra.mxu0 0
        %1656 = vmatprep.mubr.bf16.mxu0 %v607
        %1657 = vmatmul.mubr.bf16.gmra.mrb[0].mxu0 %v606
        %v1658 = vpop.f32.mrb[0].mxu0
        %v1659 = vadd.f32 %v1619, %v1658
        %v1660 = vpop.f32.mrb[0].mxu0
        %v1661 = vpop.f32.mrb[0].mxu0
        %v1662 = vpop.f32.mrb[0].mxu0
        %1663 = vdwg.mxu0
        %1664 = vmatprep.subr.bf16.mxu0 %v1241
        %1665 = vmatpush1.bf16.xpose.msra.mxu0 %v1240
        %1666 = vmatprep.subr.bf16.mxu0 %v1245
        %1667 = vmatpush1.bf16.xpose.msra.mxu0 %v1244
        %1668 = vmatprep.subr.bf16.mxu0 0
        %1669 = vmatpush1.bf16.xpose.msra.mxu0 0
        %1670 = vmatprep.subr.bf16.mxu0 0
        %1671 = vmatpush1.bf16.xpose.msra.mxu0 0
        %1672 = vmatprep.subr.bf16.mxu0 0
        %1673 = vmatpush1.bf16.xpose.msra.mxu0 0
        %1674 = vmatprep.subr.bf16.mxu0 0
        %1675 = vmatpush1.bf16.xpose.msra.mxu0 0
        %1676 = vmatprep.subr.bf16.mxu0 0
        %1677 = vmatpush1.bf16.xpose.msra.mxu0 0
        %1678 = vmatprep.subr.bf16.mxu0 0
        %1679 = vmatpush1.bf16.xpose.msra.mxu0 0
        %1680 = vmatprep.subr.bf16.mxu0 0
        %1681 = vmatpush1.bf16.xpose.msra.mxu0 0
        %1682 = vmatprep.subr.bf16.mxu0 0
        %1683 = vmatpush1.bf16.xpose.msra.mxu0 0
        %1684 = vmatprep.subr.bf16.mxu0 0
        %1685 = vmatpush1.bf16.xpose.msra.mxu0 0
        %1686 = vmatprep.subr.bf16.mxu0 0
        %1687 = vmatpush1.bf16.xpose.msra.mxu0 0
        %1688 = vmatprep.subr.bf16.mxu0 0
        %1689 = vmatpush1.bf16.xpose.msra.mxu0 0
        %1690 = vmatprep.subr.bf16.mxu0 0
        %1691 = vmatpush1.bf16.xpose.msra.mxu0 0
        %1692 = vmatprep.subr.bf16.mxu0 0
        %1693 = vmatpush1.bf16.xpose.msra.mxu0 0
        %1694 = vmatprep.subr.bf16.mxu0 0
        %1695 = vmatpush1.bf16.xpose.msra.mxu0 0
        %1696 = vmatprep.mubr.bf16.mxu0 %v609
        %1697 = vmatmul.mubr.bf16.gmra.mrb[0].mxu0 %v608
        %v1698 = vpop.f32.mrb[0].mxu0
        %v1699 = vadd.f32 0.0, %v1698
        %v1700 = vpop.f32.mrb[0].mxu0
        %v1701 = vpop.f32.mrb[0].mxu0
        %v1702 = vpop.f32.mrb[0].mxu0
        %1703 = vdwg.mxu0
        %1704 = vmatprep.subr.bf16.mxu0 %v1243
        %1705 = vmatpush1.bf16.xpose.msra.mxu0 %v1242
        %1706 = vmatprep.subr.bf16.mxu0 %v1247
        %1707 = vmatpush1.bf16.xpose.msra.mxu0 %v1246
        %1708 = vmatprep.subr.bf16.mxu0 0
        %1709 = vmatpush1.bf16.xpose.msra.mxu0 0
        %1710 = vmatprep.subr.bf16.mxu0 0
        %1711 = vmatpush1.bf16.xpose.msra.mxu0 0
        %1712 = vmatprep.subr.bf16.mxu0 0
        %1713 = vmatpush1.bf16.xpose.msra.mxu0 0
        %1714 = vmatprep.subr.bf16.mxu0 0
        %1715 = vmatpush1.bf16.xpose.msra.mxu0 0
        %1716 = vmatprep.subr.bf16.mxu0 0
        %1717 = vmatpush1.bf16.xpose.msra.mxu0 0
        %1718 = vmatprep.subr.bf16.mxu0 0
        %1719 = vmatpush1.bf16.xpose.msra.mxu0 0
        %1720 = vmatprep.subr.bf16.mxu0 0
        %1721 = vmatpush1.bf16.xpose.msra.mxu0 0
        %1722 = vmatprep.subr.bf16.mxu0 0
        %1723 = vmatpush1.bf16.xpose.msra.mxu0 0
        %1724 = vmatprep.subr.bf16.mxu0 0
        %1725 = vmatpush1.bf16.xpose.msra.mxu0 0
        %1726 = vmatprep.subr.bf16.mxu0 0
        %1727 = vmatpush1.bf16.xpose.msra.mxu0 0
        %1728 = vmatprep.subr.bf16.mxu0 0
        %1729 = vmatpush1.bf16.xpose.msra.mxu0 0
        %1730 = vmatprep.subr.bf16.mxu0 0
        %1731 = vmatpush1.bf16.xpose.msra.mxu0 0
        %1732 = vmatprep.subr.bf16.mxu0 0
        %1733 = vmatpush1.bf16.xpose.msra.mxu0 0
        %1734 = vmatprep.subr.bf16.mxu0 0
        %1735 = vmatpush1.bf16.xpose.msra.mxu0 0
        %1736 = vmatprep.mubr.bf16.mxu0 %v611
        %1737 = vmatmul.mubr.bf16.gmra.mrb[0].mxu0 %v610
        %v1738 = vpop.f32.mrb[0].mxu0
        %v1739 = vadd.f32 %v1699, %v1738
        %v1740 = vpop.f32.mrb[0].mxu0
        %v1741 = vpop.f32.mrb[0].mxu0
        %v1742 = vpop.f32.mrb[0].mxu0
        %1743 = vdwg.mxu0
        %1744 = vmatprep.subr.bf16.mxu0 %v1249
        %1745 = vmatpush1.bf16.xpose.msra.mxu0 %v1248
        %1746 = vmatprep.subr.bf16.mxu0 %v1253
        %1747 = vmatpush1.bf16.xpose.msra.mxu0 %v1252
        %1748 = vmatprep.subr.bf16.mxu0 0
        %1749 = vmatpush1.bf16.xpose.msra.mxu0 0
        %1750 = vmatprep.subr.bf16.mxu0 0
        %1751 = vmatpush1.bf16.xpose.msra.mxu0 0
        %1752 = vmatprep.subr.bf16.mxu0 0
        %1753 = vmatpush1.bf16.xpose.msra.mxu0 0
        %1754 = vmatprep.subr.bf16.mxu0 0
        %1755 = vmatpush1.bf16.xpose.msra.mxu0 0
        %1756 = vmatprep.subr.bf16.mxu0 0
        %1757 = vmatpush1.bf16.xpose.msra.mxu0 0
        %1758 = vmatprep.subr.bf16.mxu0 0
        %1759 = vmatpush1.bf16.xpose.msra.mxu0 0
        %1760 = vmatprep.subr.bf16.mxu0 0
        %1761 = vmatpush1.bf16.xpose.msra.mxu0 0
        %1762 = vmatprep.subr.bf16.mxu0 0
        %1763 = vmatpush1.bf16.xpose.msra.mxu0 0
        %1764 = vmatprep.subr.bf16.mxu0 0
        %1765 = vmatpush1.bf16.xpose.msra.mxu0 0
        %1766 = vmatprep.subr.bf16.mxu0 0
        %1767 = vmatpush1.bf16.xpose.msra.mxu0 0
        %1768 = vmatprep.subr.bf16.mxu0 0
        %1769 = vmatpush1.bf16.xpose.msra.mxu0 0
        %1770 = vmatprep.subr.bf16.mxu0 0
        %1771 = vmatpush1.bf16.xpose.msra.mxu0 0
        %1772 = vmatprep.subr.bf16.mxu0 0
        %1773 = vmatpush1.bf16.xpose.msra.mxu0 0
        %1774 = vmatprep.subr.bf16.mxu0 0
        %1775 = vmatpush1.bf16.xpose.msra.mxu0 0
        %1776 = vmatprep.mubr.bf16.mxu0 %v613
        %1777 = vmatmul.mubr.bf16.gmra.mrb[0].mxu0 %v612
        %v1778 = vpop.f32.mrb[0].mxu0
        %v1779 = vadd.f32 0.0, %v1778
        %v1780 = vpop.f32.mrb[0].mxu0
        %v1781 = vpop.f32.mrb[0].mxu0
        %v1782 = vpop.f32.mrb[0].mxu0
        %1783 = vdwg.mxu0
        %1784 = vmatprep.subr.bf16.mxu0 %v1251
        %1785 = vmatpush1.bf16.xpose.msra.mxu0 %v1250
        %1786 = vmatprep.subr.bf16.mxu0 %v1255
        %1787 = vmatpush1.bf16.xpose.msra.mxu0 %v1254
        %1788 = vmatprep.subr.bf16.mxu0 0
        %1789 = vmatpush1.bf16.xpose.msra.mxu0 0
        %1790 = vmatprep.subr.bf16.mxu0 0
        %1791 = vmatpush1.bf16.xpose.msra.mxu0 0
        %1792 = vmatprep.subr.bf16.mxu0 0
        %1793 = vmatpush1.bf16.xpose.msra.mxu0 0
        %1794 = vmatprep.subr.bf16.mxu0 0
        %1795 = vmatpush1.bf16.xpose.msra.mxu0 0
        %1796 = vmatprep.subr.bf16.mxu0 0
        %1797 = vmatpush1.bf16.xpose.msra.mxu0 0
        %1798 = vmatprep.subr.bf16.mxu0 0
        %1799 = vmatpush1.bf16.xpose.msra.mxu0 0
        %1800 = vmatprep.subr.bf16.mxu0 0
        %1801 = vmatpush1.bf16.xpose.msra.mxu0 0
        %1802 = vmatprep.subr.bf16.mxu0 0
        %1803 = vmatpush1.bf16.xpose.msra.mxu0 0
        %1804 = vmatprep.subr.bf16.mxu0 0
        %1805 = vmatpush1.bf16.xpose.msra.mxu0 0
        %1806 = vmatprep.subr.bf16.mxu0 0
        %1807 = vmatpush1.bf16.xpose.msra.mxu0 0
        %1808 = vmatprep.subr.bf16.mxu0 0
        %1809 = vmatpush1.bf16.xpose.msra.mxu0 0
        %1810 = vmatprep.subr.bf16.mxu0 0
        %1811 = vmatpush1.bf16.xpose.msra.mxu0 0
        %1812 = vmatprep.subr.bf16.mxu0 0
        %1813 = vmatpush1.bf16.xpose.msra.mxu0 0
        %1814 = vmatprep.subr.bf16.mxu0 0
        %1815 = vmatpush1.bf16.xpose.msra.mxu0 0
        %1816 = vmatprep.mubr.bf16.mxu0 %v615
        %1817 = vmatmul.mubr.bf16.gmra.mrb[0].mxu0 %v614
        %v1818 = vpop.f32.mrb[0].mxu0
        %v1819 = vadd.f32 %v1779, %v1818
        %v1820 = vpop.f32.mrb[0].mxu0
        %v1821 = vpop.f32.mrb[0].mxu0
        %v1822 = vpop.f32.mrb[0].mxu0
        %1823 = vdwg.mxu0
        %1824 = vmatprep.subr.bf16.mxu0 %v1257
        %1825 = vmatpush1.bf16.xpose.msra.mxu0 %v1256
        %1826 = vmatprep.subr.bf16.mxu0 %v1261
        %1827 = vmatpush1.bf16.xpose.msra.mxu0 %v1260
        %1828 = vmatprep.subr.bf16.mxu0 0
        %1829 = vmatpush1.bf16.xpose.msra.mxu0 0
        %1830 = vmatprep.subr.bf16.mxu0 0
        %1831 = vmatpush1.bf16.xpose.msra.mxu0 0
        %1832 = vmatprep.subr.bf16.mxu0 0
        %1833 = vmatpush1.bf16.xpose.msra.mxu0 0
        %1834 = vmatprep.subr.bf16.mxu0 0
        %1835 = vmatpush1.bf16.xpose.msra.mxu0 0
        %1836 = vmatprep.subr.bf16.mxu0 0
        %1837 = vmatpush1.bf16.xpose.msra.mxu0 0
        %1838 = vmatprep.subr.bf16.mxu0 0
        %1839 = vmatpush1.bf16.xpose.msra.mxu0 0
        %1840 = vmatprep.subr.bf16.mxu0 0
        %1841 = vmatpush1.bf16.xpose.msra.mxu0 0
        %1842 = vmatprep.subr.bf16.mxu0 0
        %1843 = vmatpush1.bf16.xpose.msra.mxu0 0
        %1844 = vmatprep.subr.bf16.mxu0 0
        %1845 = vmatpush1.bf16.xpose.msra.mxu0 0
        %1846 = vmatprep.subr.bf16.mxu0 0
        %1847 = vmatpush1.bf16.xpose.msra.mxu0 0
        %1848 = vmatprep.subr.bf16.mxu0 0
        %1849 = vmatpush1.bf16.xpose.msra.mxu0 0
        %1850 = vmatprep.subr.bf16.mxu0 0
        %1851 = vmatpush1.bf16.xpose.msra.mxu0 0
        %1852 = vmatprep.subr.bf16.mxu0 0
        %1853 = vmatpush1.bf16.xpose.msra.mxu0 0
        %1854 = vmatprep.subr.bf16.mxu0 0
        %1855 = vmatpush1.bf16.xpose.msra.mxu0 0
        %1856 = vmatprep.mubr.bf16.mxu0 %v617
        %1857 = vmatmul.mubr.bf16.gmra.mrb[0].mxu0 %v616
        %v1858 = vpop.f32.mrb[0].mxu0
        %v1859 = vadd.f32 0.0, %v1858
        %v1860 = vpop.f32.mrb[0].mxu0
        %v1861 = vpop.f32.mrb[0].mxu0
        %v1862 = vpop.f32.mrb[0].mxu0
        %1863 = vdwg.mxu0
        %1864 = vmatprep.subr.bf16.mxu0 %v1259
        %1865 = vmatpush1.bf16.xpose.msra.mxu0 %v1258
        %1866 = vmatprep.subr.bf16.mxu0 %v1263
        %1867 = vmatpush1.bf16.xpose.msra.mxu0 %v1262
        %1868 = vmatprep.subr.bf16.mxu0 0
        %1869 = vmatpush1.bf16.xpose.msra.mxu0 0
        %1870 = vmatprep.subr.bf16.mxu0 0
        %1871 = vmatpush1.bf16.xpose.msra.mxu0 0
        %1872 = vmatprep.subr.bf16.mxu0 0
        %1873 = vmatpush1.bf16.xpose.msra.mxu0 0
        %1874 = vmatprep.subr.bf16.mxu0 0
        %1875 = vmatpush1.bf16.xpose.msra.mxu0 0
        %1876 = vmatprep.subr.bf16.mxu0 0
        %1877 = vmatpush1.bf16.xpose.msra.mxu0 0
        %1878 = vmatprep.subr.bf16.mxu0 0
        %1879 = vmatpush1.bf16.xpose.msra.mxu0 0
        %1880 = vmatprep.subr.bf16.mxu0 0
        %1881 = vmatpush1.bf16.xpose.msra.mxu0 0
        %1882 = vmatprep.subr.bf16.mxu0 0
        %1883 = vmatpush1.bf16.xpose.msra.mxu0 0
        %1884 = vmatprep.subr.bf16.mxu0 0
        %1885 = vmatpush1.bf16.xpose.msra.mxu0 0
        %1886 = vmatprep.subr.bf16.mxu0 0
        %1887 = vmatpush1.bf16.xpose.msra.mxu0 0
        %1888 = vmatprep.subr.bf16.mxu0 0
        %1889 = vmatpush1.bf16.xpose.msra.mxu0 0
        %1890 = vmatprep.subr.bf16.mxu0 0
        %1891 = vmatpush1.bf16.xpose.msra.mxu0 0
        %1892 = vmatprep.subr.bf16.mxu0 0
        %1893 = vmatpush1.bf16.xpose.msra.mxu0 0
        %1894 = vmatprep.subr.bf16.mxu0 0
        %1895 = vmatpush1.bf16.xpose.msra.mxu0 0
        %1896 = vmatprep.mubr.bf16.mxu0 %v619
        %1897 = vmatmul.mubr.bf16.gmra.mrb[0].mxu0 %v618
        %v1898 = vpop.f32.mrb[0].mxu0
        %v1899 = vadd.f32 %v1859, %v1898
        %v1900 = vpop.f32.mrb[0].mxu0
        %v1901 = vpop.f32.mrb[0].mxu0
        %v1902 = vpop.f32.mrb[0].mxu0
        %1903 = vdwg.mxu0
        %vm1904 = vcmask 261120
        %v1905 = vsel %vm1904, %v1339, 0.0
        %v1906 = vsel %vm1904, %v1419, 0.0
        %v1907 = vadd.f32 %v1905, %v1906
        %v1908 = vsel %vm1904, %v1499, 0.0
        %v1909 = vadd.f32 %v1907, %v1908
        %v1910 = vsel %vm1904, %v1579, 0.0
        %v1911 = vadd.f32 %v1909, %v1910
        %v1912 = vsel %vm1904, %v1659, 0.0
        %v1913 = vadd.f32 %v1911, %v1912
        %v1914 = vsel %vm1904, %v1739, 0.0
        %v1915 = vadd.f32 %v1913, %v1914
        %v1916 = vsel %vm1904, %v1819, 0.0
        %v1917 = vadd.f32 %v1915, %v1916
        %v1918 = vsel %vm1904, %v1899, 0.0
        %v1919 = vadd.f32 %v1917, %v1918
        %v1920 = vadd.f32 %v267, %v1919
        %1921 = vst.msk [vmem:[#allocation2] sm:$0xff] %vm1904, %v1920
        %v1922 = vld [vmem:[#allocation3] sm:$0xff]
        %v1923 = vld [vmem:[%s222] sm:$0xff]
        %v1924 = vld [vmem:[%s222 + $0x8] sm:$0xff]
        %v1925 = vld [vmem:[%s222 + $0x10] sm:$0xff]
        %v1926 = vld [vmem:[%s222 + $0x18] sm:$0xff]
        %v1927 = vmax.f32 %v1923, 0.0
        %v1928 = vmax.f32 %v1924, 0.0
        %v1929 = vmax.f32 %v1925, 0.0
        %v1930 = vmax.f32 %v1926, 0.0
        %v1931 = vmin.f32 %v1927, 1.0
        %v1932 = vmin.f32 %v1928, 1.0
        %v1933 = vmin.f32 %v1929, 1.0
        %v1934 = vmin.f32 %v1930, 1.0
        %v1935 = vmul.f32 %v1931, 255.0
        %v1936 = vmul.f32 %v1932, 255.0
        %v1937 = vmul.f32 %v1933, 255.0
        %v1938 = vmul.f32 %v1934, 255.0
        %v1939 = vcvt.f32.s32.to.zero.pseudo %v1935
        %v1940 = vcvt.f32.s32.to.zero.pseudo %v1936
        %v1941 = vcvt.f32.s32.to.zero.pseudo %v1937
        %v1942 = vcvt.f32.s32.to.zero.pseudo %v1938
        %v1943 = vshra.s32 %v1939, 5
        %v1944 = vshra.s32 %v1940, 5
        %v1945 = vshra.s32 %v1941, 5
        %v1946 = vshra.s32 %v1942, 5
        %v1947 = vand.u32 %v1939, 31
        %v1948 = vand.u32 %v1940, 31
        %v1949 = vand.u32 %v1941, 31
        %v1950 = vand.u32 %v1942, 31
        %v1951 = vcombine.low %v1943, %v1944
        %v1952 = vcombine.high %v1943, %v1944
        %v1953 = vcombine.low %v1945, %v1946
        %v1954 = vcombine.high %v1945, %v1946
        %v1956 = vunpack.c.l.s4 1966171168
        %v1957 = vunpack.c.0.s8 %v1956
        %v1958 = vlaneseq
        %v1959 = vshrl.u32 %v1958, 7
        %v1960 = vsub.s32 %v1957, %v1959
        %v1961 = vrot.slane %v1951, %v1960
        %v1963 = vunpack.c.l.s4 1966171168
        %v1964 = vunpack.c.0.s8 %v1963
        %v1965 = vlaneseq
        %v1966 = vshrl.u32 %v1965, 7
        %v1967 = vsub.s32 %v1964, %v1966
        %v1968 = vrot.slane %v1952, %v1967
        %v1970 = vunpack.c.l.s4 1966171168
        %v1971 = vunpack.c.0.s8 %v1970
        %v1972 = vlaneseq
        %v1973 = vshrl.u32 %v1972, 7
        %v1974 = vsub.s32 %v1971, %v1973
        %v1975 = vrot.slane %v1953, %v1974
        %v1977 = vunpack.c.l.s4 1966171168
        %v1978 = vunpack.c.0.s8 %v1977
        %v1979 = vlaneseq
        %v1980 = vshrl.u32 %v1979, 7
        %v1981 = vsub.s32 %v1978, %v1980
        %v1982 = vrot.slane %v1954, %v1981
        %v1983 = vcombine.low %v1961, %v1975
        %v1984 = vcombine.high %v1961, %v1975
        %v1985 = vcombine.low %v1968, %v1982
        %v1986 = vcombine.high %v1968, %v1982
        %v1988 = vunpack.c.l.s4 1966171168
        %v1989 = vunpack.c.0.s8 %v1988
        %v1990 = vlaneseq
        %v1991 = vshrl.u32 %v1990, 7
        %v1992 = vsub.s32 %v1989, %v1991
        %v1993 = vrot.slane %v1983, %v1992
        %v1995 = vunpack.c.l.s4 1966171168
        %v1996 = vunpack.c.0.s8 %v1995
        %v1997 = vlaneseq
        %v1998 = vshrl.u32 %v1997, 7
        %v1999 = vsub.s32 %v1996, %v1998
        %v2000 = vrot.slane %v1985, %v1999
        %v2002 = vunpack.c.l.s4 1966171168
        %v2003 = vunpack.c.0.s8 %v2002
        %v2004 = vlaneseq
        %v2005 = vshrl.u32 %v2004, 7
        %v2006 = vsub.s32 %v2003, %v2005
        %v2007 = vrot.slane %v1984, %v2006
        %v2009 = vunpack.c.l.s4 1966171168
        %v2010 = vunpack.c.0.s8 %v2009
        %v2011 = vlaneseq
        %v2012 = vshrl.u32 %v2011, 7
        %v2013 = vsub.s32 %v2010, %v2012
        %v2014 = vrot.slane %v1986, %v2013
        %v2015 = vcombine.high %v1993, %v1993
        %v2016 = vcombine.high %v2000, %v2000
        %v2017 = vcombine.high %v2007, %v2007
        %v2018 = vcombine.high %v2014, %v2014
        %v2019 = vlaneseq
        %v2020 = vshrl.u32 %v2019, 7
        %v2021 = vsub.s32 0, %v2020
        %v2022 = vrot.slane %v1993, %v2021
        %v2023 = vlaneseq
        %v2024 = vshrl.u32 %v2023, 7
        %v2025 = vsub.s32 1, %v2024
        %v2026 = vrot.slane %v1993, %v2025
        %v2027 = vlaneseq
        %v2028 = vshrl.u32 %v2027, 7
        %v2029 = vsub.s32 2, %v2028
        %v2030 = vrot.slane %v1993, %v2029
        %v2031 = vlaneseq
        %v2032 = vshrl.u32 %v2031, 7
        %v2033 = vsub.s32 3, %v2032
        %v2034 = vrot.slane %v1993, %v2033
        %v2035 = vlaneseq
        %v2036 = vshrl.u32 %v2035, 7
        %v2037 = vsub.s32 0, %v2036
        %v2038 = vrot.slane %v2007, %v2037
        %v2039 = vlaneseq
        %v2040 = vshrl.u32 %v2039, 7
        %v2041 = vsub.s32 1, %v2040
        %v2042 = vrot.slane %v2007, %v2041
        %v2043 = vlaneseq
        %v2044 = vshrl.u32 %v2043, 7
        %v2045 = vsub.s32 2, %v2044
        %v2046 = vrot.slane %v2007, %v2045
        %v2047 = vlaneseq
        %v2048 = vshrl.u32 %v2047, 7
        %v2049 = vsub.s32 3, %v2048
        %v2050 = vrot.slane %v2007, %v2049
        %v2051 = vlaneseq
        %v2052 = vshrl.u32 %v2051, 7
        %v2053 = vsub.s32 0, %v2052
        %v2054 = vrot.slane %v2015, %v2053
        %v2055 = vlaneseq
        %v2056 = vshrl.u32 %v2055, 7
        %v2057 = vsub.s32 1, %v2056
        %v2058 = vrot.slane %v2015, %v2057
        %v2059 = vlaneseq
        %v2060 = vshrl.u32 %v2059, 7
        %v2061 = vsub.s32 2, %v2060
        %v2062 = vrot.slane %v2015, %v2061
        %v2063 = vlaneseq
        %v2064 = vshrl.u32 %v2063, 7
        %v2065 = vsub.s32 3, %v2064
        %v2066 = vrot.slane %v2015, %v2065
        %v2067 = vlaneseq
        %v2068 = vshrl.u32 %v2067, 7
        %v2069 = vsub.s32 0, %v2068
        %v2070 = vrot.slane %v2017, %v2069
        %v2071 = vlaneseq
        %v2072 = vshrl.u32 %v2071, 7
        %v2073 = vsub.s32 1, %v2072
        %v2074 = vrot.slane %v2017, %v2073
        %v2075 = vlaneseq
        %v2076 = vshrl.u32 %v2075, 7
        %v2077 = vsub.s32 2, %v2076
        %v2078 = vrot.slane %v2017, %v2077
        %v2079 = vlaneseq
        %v2080 = vshrl.u32 %v2079, 7
        %v2081 = vsub.s32 3, %v2080
        %v2082 = vrot.slane %v2017, %v2081
        %v2083 = vlaneseq
        %v2084 = vshrl.u32 %v2083, 7
        %v2085 = vsub.s32 0, %v2084
        %v2086 = vrot.slane %v2000, %v2085
        %v2087 = vlaneseq
        %v2088 = vshrl.u32 %v2087, 7
        %v2089 = vsub.s32 1, %v2088
        %v2090 = vrot.slane %v2000, %v2089
        %v2091 = vlaneseq
        %v2092 = vshrl.u32 %v2091, 7
        %v2093 = vsub.s32 2, %v2092
        %v2094 = vrot.slane %v2000, %v2093
        %v2095 = vlaneseq
        %v2096 = vshrl.u32 %v2095, 7
        %v2097 = vsub.s32 3, %v2096
        %v2098 = vrot.slane %v2000, %v2097
        %v2099 = vlaneseq
        %v2100 = vshrl.u32 %v2099, 7
        %v2101 = vsub.s32 0, %v2100
        %v2102 = vrot.slane %v2014, %v2101
        %v2103 = vlaneseq
        %v2104 = vshrl.u32 %v2103, 7
        %v2105 = vsub.s32 1, %v2104
        %v2106 = vrot.slane %v2014, %v2105
        %v2107 = vlaneseq
        %v2108 = vshrl.u32 %v2107, 7
        %v2109 = vsub.s32 2, %v2108
        %v2110 = vrot.slane %v2014, %v2109
        %v2111 = vlaneseq
        %v2112 = vshrl.u32 %v2111, 7
        %v2113 = vsub.s32 3, %v2112
        %v2114 = vrot.slane %v2014, %v2113
        %v2115 = vlaneseq
        %v2116 = vshrl.u32 %v2115, 7
        %v2117 = vsub.s32 0, %v2116
        %v2118 = vrot.slane %v2016, %v2117
        %v2119 = vlaneseq
        %v2120 = vshrl.u32 %v2119, 7
        %v2121 = vsub.s32 1, %v2120
        %v2122 = vrot.slane %v2016, %v2121
        %v2123 = vlaneseq
        %v2124 = vshrl.u32 %v2123, 7
        %v2125 = vsub.s32 2, %v2124
        %v2126 = vrot.slane %v2016, %v2125
        %v2127 = vlaneseq
        %v2128 = vshrl.u32 %v2127, 7
        %v2129 = vsub.s32 3, %v2128
        %v2130 = vrot.slane %v2016, %v2129
        %v2131 = vlaneseq
        %v2132 = vshrl.u32 %v2131, 7
        %v2133 = vsub.s32 0, %v2132
        %v2134 = vrot.slane %v2018, %v2133
        %v2135 = vlaneseq
        %v2136 = vshrl.u32 %v2135, 7
        %v2137 = vsub.s32 1, %v2136
        %v2138 = vrot.slane %v2018, %v2137
        %v2139 = vlaneseq
        %v2140 = vshrl.u32 %v2139, 7
        %v2141 = vsub.s32 2, %v2140
        %v2142 = vrot.slane %v2018, %v2141
        %v2143 = vlaneseq
        %v2144 = vshrl.u32 %v2143, 7
        %v2145 = vsub.s32 3, %v2144
        %v2146 = vrot.slane %v2018, %v2145
        %vm2147 = vcmp.eq.s32.totalorder %v2022, %v263
        %vm2148 = vcmp.eq.s32.totalorder %v2026, %v263
        %vm2149 = vcmp.eq.s32.totalorder %v2030, %v263
        %vm2150 = vcmp.eq.s32.totalorder %v2034, %v263
        %vm2151 = vcmp.eq.s32.totalorder %v2038, %v263
        %vm2152 = vcmp.eq.s32.totalorder %v2042, %v263
        %vm2153 = vcmp.eq.s32.totalorder %v2046, %v263
        %vm2154 = vcmp.eq.s32.totalorder %v2050, %v263
        %vm2155 = vcmp.eq.s32.totalorder %v2054, %v263
        %vm2156 = vcmp.eq.s32.totalorder %v2058, %v263
        %vm2157 = vcmp.eq.s32.totalorder %v2062, %v263
        %vm2158 = vcmp.eq.s32.totalorder %v2066, %v263
        %vm2159 = vcmp.eq.s32.totalorder %v2070, %v263
        %vm2160 = vcmp.eq.s32.totalorder %v2074, %v263
        %vm2161 = vcmp.eq.s32.totalorder %v2078, %v263
        %vm2162 = vcmp.eq.s32.totalorder %v2082, %v263
        %vm2163 = vcmp.eq.s32.totalorder %v2086, %v263
        %vm2164 = vcmp.eq.s32.totalorder %v2090, %v263
        %vm2165 = vcmp.eq.s32.totalorder %v2094, %v263
        %vm2166 = vcmp.eq.s32.totalorder %v2098, %v263
        %vm2167 = vcmp.eq.s32.totalorder %v2102, %v263
        %vm2168 = vcmp.eq.s32.totalorder %v2106, %v263
        %vm2169 = vcmp.eq.s32.totalorder %v2110, %v263
        %vm2170 = vcmp.eq.s32.totalorder %v2114, %v263
        %vm2171 = vcmp.eq.s32.totalorder %v2118, %v263
        %vm2172 = vcmp.eq.s32.totalorder %v2122, %v263
        %vm2173 = vcmp.eq.s32.totalorder %v2126, %v263
        %vm2174 = vcmp.eq.s32.totalorder %v2130, %v263
        %vm2175 = vcmp.eq.s32.totalorder %v2134, %v263
        %vm2176 = vcmp.eq.s32.totalorder %v2138, %v263
        %vm2177 = vcmp.eq.s32.totalorder %v2142, %v263
        %vm2178 = vcmp.eq.s32.totalorder %v2146, %v263
        %v2179 = vsel %vm2147, 1, 0
        %v2180 = vsel %vm2148, 1, 0
        %v2181 = vsel %vm2149, 1, 0
        %v2182 = vsel %vm2150, 1, 0
        %v2183 = vsel %vm2151, 1, 0
        %v2184 = vsel %vm2152, 1, 0
        %v2185 = vsel %vm2153, 1, 0
        %v2186 = vsel %vm2154, 1, 0
        %v2187 = vsel %vm2155, 1, 0
        %v2188 = vsel %vm2156, 1, 0
        %v2189 = vsel %vm2157, 1, 0
        %v2190 = vsel %vm2158, 1, 0
        %v2191 = vsel %vm2159, 1, 0
        %v2192 = vsel %vm2160, 1, 0
        %v2193 = vsel %vm2161, 1, 0
        %v2194 = vsel %vm2162, 1, 0
        %v2195 = vsel %vm2163, 1, 0
        %v2196 = vsel %vm2164, 1, 0
        %v2197 = vsel %vm2165, 1, 0
        %v2198 = vsel %vm2166, 1, 0
        %v2199 = vsel %vm2167, 1, 0
        %v2200 = vsel %vm2168, 1, 0
        %v2201 = vsel %vm2169, 1, 0
        %v2202 = vsel %vm2170, 1, 0
        %v2203 = vsel %vm2171, 1, 0
        %v2204 = vsel %vm2172, 1, 0
        %v2205 = vsel %vm2173, 1, 0
        %v2206 = vsel %vm2174, 1, 0
        %v2207 = vsel %vm2175, 1, 0
        %v2208 = vsel %vm2176, 1, 0
        %v2209 = vsel %vm2177, 1, 0
        %v2210 = vsel %vm2178, 1, 0
        %v2211 = vcvt.s32.f32 %v2179
        %v2212 = vcvt.s32.f32 %v2180
        %v2213 = vcvt.s32.f32 %v2181
        %v2214 = vcvt.s32.f32 %v2182
        %v2215 = vcvt.s32.f32 %v2183
        %v2216 = vcvt.s32.f32 %v2184
        %v2217 = vcvt.s32.f32 %v2185
        %v2218 = vcvt.s32.f32 %v2186
        %v2219 = vcvt.s32.f32 %v2187
        %v2220 = vcvt.s32.f32 %v2188
        %v2221 = vcvt.s32.f32 %v2189
        %v2222 = vcvt.s32.f32 %v2190
        %v2223 = vcvt.s32.f32 %v2191
        %v2224 = vcvt.s32.f32 %v2192
        %v2225 = vcvt.s32.f32 %v2193
        %v2226 = vcvt.s32.f32 %v2194
        %v2227 = vcvt.s32.f32 %v2195
        %v2228 = vcvt.s32.f32 %v2196
        %v2229 = vcvt.s32.f32 %v2197
        %v2230 = vcvt.s32.f32 %v2198
        %v2231 = vcvt.s32.f32 %v2199
        %v2232 = vcvt.s32.f32 %v2200
        %v2233 = vcvt.s32.f32 %v2201
        %v2234 = vcvt.s32.f32 %v2202
        %v2235 = vcvt.s32.f32 %v2203
        %v2236 = vcvt.s32.f32 %v2204
        %v2237 = vcvt.s32.f32 %v2205
        %v2238 = vcvt.s32.f32 %v2206
        %v2239 = vcvt.s32.f32 %v2207
        %v2240 = vcvt.s32.f32 %v2208
        %v2241 = vcvt.s32.f32 %v2209
        %v2242 = vcvt.s32.f32 %v2210
        %v2243 = vpack.c.bf16 %v2211, %v2211
        %v2244 = vpack.c.bf16 %v2212, %v2212
        %v2245 = vpack.c.bf16 %v2213, %v2213
        %v2246 = vpack.c.bf16 %v2214, %v2214
        %v2247 = vpack.c.bf16 %v2215, %v2215
        %v2248 = vpack.c.bf16 %v2216, %v2216
        %v2249 = vpack.c.bf16 %v2217, %v2217
        %v2250 = vpack.c.bf16 %v2218, %v2218
        %v2251 = vpack.c.bf16 %v2219, %v2219
        %v2252 = vpack.c.bf16 %v2220, %v2220
        %v2253 = vpack.c.bf16 %v2221, %v2221
        %v2254 = vpack.c.bf16 %v2222, %v2222
        %v2255 = vpack.c.bf16 %v2223, %v2223
        %v2256 = vpack.c.bf16 %v2224, %v2224
        %v2257 = vpack.c.bf16 %v2225, %v2225
        %v2258 = vpack.c.bf16 %v2226, %v2226
        %v2259 = vpack.c.bf16 %v2227, %v2227
        %v2260 = vpack.c.bf16 %v2228, %v2228
        %v2261 = vpack.c.bf16 %v2229, %v2229
        %v2262 = vpack.c.bf16 %v2230, %v2230
        %v2263 = vpack.c.bf16 %v2231, %v2231
        %v2264 = vpack.c.bf16 %v2232, %v2232
        %v2265 = vpack.c.bf16 %v2233, %v2233
        %v2266 = vpack.c.bf16 %v2234, %v2234
        %v2267 = vpack.c.bf16 %v2235, %v2235
        %v2268 = vpack.c.bf16 %v2236, %v2236
        %v2269 = vpack.c.bf16 %v2237, %v2237
        %v2270 = vpack.c.bf16 %v2238, %v2238
        %v2271 = vpack.c.bf16 %v2239, %v2239
        %v2272 = vpack.c.bf16 %v2240, %v2240
        %v2273 = vpack.c.bf16 %v2241, %v2241
        %v2274 = vpack.c.bf16 %v2242, %v2242
        %v2275 = vcombine.low %v1947, %v1948
        %v2276 = vcombine.high %v1947, %v1948
        %v2277 = vcombine.low %v1949, %v1950
        %v2278 = vcombine.high %v1949, %v1950
        %v2280 = vunpack.c.l.s4 1966171168
        %v2281 = vunpack.c.0.s8 %v2280
        %v2282 = vlaneseq
        %v2283 = vshrl.u32 %v2282, 7
        %v2284 = vsub.s32 %v2281, %v2283
        %v2285 = vrot.slane %v2275, %v2284
        %v2287 = vunpack.c.l.s4 1966171168
        %v2288 = vunpack.c.0.s8 %v2287
        %v2289 = vlaneseq
        %v2290 = vshrl.u32 %v2289, 7
        %v2291 = vsub.s32 %v2288, %v2290
        %v2292 = vrot.slane %v2276, %v2291
        %v2294 = vunpack.c.l.s4 1966171168
        %v2295 = vunpack.c.0.s8 %v2294
        %v2296 = vlaneseq
        %v2297 = vshrl.u32 %v2296, 7
        %v2298 = vsub.s32 %v2295, %v2297
        %v2299 = vrot.slane %v2277, %v2298
        %v2301 = vunpack.c.l.s4 1966171168
        %v2302 = vunpack.c.0.s8 %v2301
        %v2303 = vlaneseq
        %v2304 = vshrl.u32 %v2303, 7
        %v2305 = vsub.s32 %v2302, %v2304
        %v2306 = vrot.slane %v2278, %v2305
        %v2307 = vcombine.low %v2285, %v2299
        %v2308 = vcombine.high %v2285, %v2299
        %v2309 = vcombine.low %v2292, %v2306
        %v2310 = vcombine.high %v2292, %v2306
        %v2312 = vunpack.c.l.s4 1966171168
        %v2313 = vunpack.c.0.s8 %v2312
        %v2314 = vlaneseq
        %v2315 = vshrl.u32 %v2314, 7
        %v2316 = vsub.s32 %v2313, %v2315
        %v2317 = vrot.slane %v2307, %v2316
        %v2319 = vunpack.c.l.s4 1966171168
        %v2320 = vunpack.c.0.s8 %v2319
        %v2321 = vlaneseq
        %v2322 = vshrl.u32 %v2321, 7
        %v2323 = vsub.s32 %v2320, %v2322
        %v2324 = vrot.slane %v2309, %v2323
        %v2326 = vunpack.c.l.s4 1966171168
        %v2327 = vunpack.c.0.s8 %v2326
        %v2328 = vlaneseq
        %v2329 = vshrl.u32 %v2328, 7
        %v2330 = vsub.s32 %v2327, %v2329
        %v2331 = vrot.slane %v2308, %v2330
        %v2333 = vunpack.c.l.s4 1966171168
        %v2334 = vunpack.c.0.s8 %v2333
        %v2335 = vlaneseq
        %v2336 = vshrl.u32 %v2335, 7
        %v2337 = vsub.s32 %v2334, %v2336
        %v2338 = vrot.slane %v2310, %v2337
        %v2339 = vcombine.high %v2317, %v2317
        %v2340 = vcombine.high %v2324, %v2324
        %v2341 = vcombine.high %v2331, %v2331
        %v2342 = vcombine.high %v2338, %v2338
        %v2343 = vlaneseq
        %v2344 = vshrl.u32 %v2343, 7
        %v2345 = vsub.s32 0, %v2344
        %v2346 = vrot.slane %v2317, %v2345
        %v2347 = vlaneseq
        %v2348 = vshrl.u32 %v2347, 7
        %v2349 = vsub.s32 1, %v2348
        %v2350 = vrot.slane %v2317, %v2349
        %v2351 = vlaneseq
        %v2352 = vshrl.u32 %v2351, 7
        %v2353 = vsub.s32 2, %v2352
        %v2354 = vrot.slane %v2317, %v2353
        %v2355 = vlaneseq
        %v2356 = vshrl.u32 %v2355, 7
        %v2357 = vsub.s32 3, %v2356
        %v2358 = vrot.slane %v2317, %v2357
        %v2359 = vlaneseq
        %v2360 = vshrl.u32 %v2359, 7
        %v2361 = vsub.s32 0, %v2360
        %v2362 = vrot.slane %v2331, %v2361
        %v2363 = vlaneseq
        %v2364 = vshrl.u32 %v2363, 7
        %v2365 = vsub.s32 1, %v2364
        %v2366 = vrot.slane %v2331, %v2365
        %v2367 = vlaneseq
        %v2368 = vshrl.u32 %v2367, 7
        %v2369 = vsub.s32 2, %v2368
        %v2370 = vrot.slane %v2331, %v2369
        %v2371 = vlaneseq
        %v2372 = vshrl.u32 %v2371, 7
        %v2373 = vsub.s32 3, %v2372
        %v2374 = vrot.slane %v2331, %v2373
        %v2375 = vlaneseq
        %v2376 = vshrl.u32 %v2375, 7
        %v2377 = vsub.s32 0, %v2376
        %v2378 = vrot.slane %v2339, %v2377
        %v2379 = vlaneseq
        %v2380 = vshrl.u32 %v2379, 7
        %v2381 = vsub.s32 1, %v2380
        %v2382 = vrot.slane %v2339, %v2381
        %v2383 = vlaneseq
        %v2384 = vshrl.u32 %v2383, 7
        %v2385 = vsub.s32 2, %v2384
        %v2386 = vrot.slane %v2339, %v2385
        %v2387 = vlaneseq
        %v2388 = vshrl.u32 %v2387, 7
        %v2389 = vsub.s32 3, %v2388
        %v2390 = vrot.slane %v2339, %v2389
        %v2391 = vlaneseq
        %v2392 = vshrl.u32 %v2391, 7
        %v2393 = vsub.s32 0, %v2392
        %v2394 = vrot.slane %v2341, %v2393
        %v2395 = vlaneseq
        %v2396 = vshrl.u32 %v2395, 7
        %v2397 = vsub.s32 1, %v2396
        %v2398 = vrot.slane %v2341, %v2397
        %v2399 = vlaneseq
        %v2400 = vshrl.u32 %v2399, 7
        %v2401 = vsub.s32 2, %v2400
        %v2402 = vrot.slane %v2341, %v2401
        %v2403 = vlaneseq
        %v2404 = vshrl.u32 %v2403, 7
        %v2405 = vsub.s32 3, %v2404
        %v2406 = vrot.slane %v2341, %v2405
        %v2407 = vlaneseq
        %v2408 = vshrl.u32 %v2407, 7
        %v2409 = vsub.s32 0, %v2408
        %v2410 = vrot.slane %v2324, %v2409
        %v2411 = vlaneseq
        %v2412 = vshrl.u32 %v2411, 7
        %v2413 = vsub.s32 1, %v2412
        %v2414 = vrot.slane %v2324, %v2413
        %v2415 = vlaneseq
        %v2416 = vshrl.u32 %v2415, 7
        %v2417 = vsub.s32 2, %v2416
        %v2418 = vrot.slane %v2324, %v2417
        %v2419 = vlaneseq
        %v2420 = vshrl.u32 %v2419, 7
        %v2421 = vsub.s32 3, %v2420
        %v2422 = vrot.slane %v2324, %v2421
        %v2423 = vlaneseq
        %v2424 = vshrl.u32 %v2423, 7
        %v2425 = vsub.s32 0, %v2424
        %v2426 = vrot.slane %v2338, %v2425
        %v2427 = vlaneseq
        %v2428 = vshrl.u32 %v2427, 7
        %v2429 = vsub.s32 1, %v2428
        %v2430 = vrot.slane %v2338, %v2429
        %v2431 = vlaneseq
        %v2432 = vshrl.u32 %v2431, 7
        %v2433 = vsub.s32 2, %v2432
        %v2434 = vrot.slane %v2338, %v2433
        %v2435 = vlaneseq
        %v2436 = vshrl.u32 %v2435, 7
        %v2437 = vsub.s32 3, %v2436
        %v2438 = vrot.slane %v2338, %v2437
        %v2439 = vlaneseq
        %v2440 = vshrl.u32 %v2439, 7
        %v2441 = vsub.s32 0, %v2440
        %v2442 = vrot.slane %v2340, %v2441
        %v2443 = vlaneseq
        %v2444 = vshrl.u32 %v2443, 7
        %v2445 = vsub.s32 1, %v2444
        %v2446 = vrot.slane %v2340, %v2445
        %v2447 = vlaneseq
        %v2448 = vshrl.u32 %v2447, 7
        %v2449 = vsub.s32 2, %v2448
        %v2450 = vrot.slane %v2340, %v2449
        %v2451 = vlaneseq
        %v2452 = vshrl.u32 %v2451, 7
        %v2453 = vsub.s32 3, %v2452
        %v2454 = vrot.slane %v2340, %v2453
        %v2455 = vlaneseq
        %v2456 = vshrl.u32 %v2455, 7
        %v2457 = vsub.s32 0, %v2456
        %v2458 = vrot.slane %v2342, %v2457
        %v2459 = vlaneseq
        %v2460 = vshrl.u32 %v2459, 7
        %v2461 = vsub.s32 1, %v2460
        %v2462 = vrot.slane %v2342, %v2461
        %v2463 = vlaneseq
        %v2464 = vshrl.u32 %v2463, 7
        %v2465 = vsub.s32 2, %v2464
        %v2466 = vrot.slane %v2342, %v2465
        %v2467 = vlaneseq
        %v2468 = vshrl.u32 %v2467, 7
        %v2469 = vsub.s32 3, %v2468
        %v2470 = vrot.slane %v2342, %v2469
        %vm2471 = vcmp.eq.s32.totalorder %v2346, %v263
        %vm2472 = vcmp.eq.s32.totalorder %v2350, %v263
        %vm2473 = vcmp.eq.s32.totalorder %v2354, %v263
        %vm2474 = vcmp.eq.s32.totalorder %v2358, %v263
        %vm2475 = vcmp.eq.s32.totalorder %v2346, %v264
        %vm2476 = vcmp.eq.s32.totalorder %v2350, %v264
        %vm2477 = vcmp.eq.s32.totalorder %v2354, %v264
        %vm2478 = vcmp.eq.s32.totalorder %v2358, %v264
        %vm2479 = vcmp.eq.s32.totalorder %v2346, %v265
        %vm2480 = vcmp.eq.s32.totalorder %v2350, %v265
        %vm2481 = vcmp.eq.s32.totalorder %v2354, %v265
        %vm2482 = vcmp.eq.s32.totalorder %v2358, %v265
        %vm2483 = vcmp.eq.s32.totalorder %v2346, %v266
        %vm2484 = vcmp.eq.s32.totalorder %v2350, %v266
        %vm2485 = vcmp.eq.s32.totalorder %v2354, %v266
        %vm2486 = vcmp.eq.s32.totalorder %v2358, %v266
        %vm2487 = vcmp.eq.s32.totalorder %v2362, %v263
        %vm2488 = vcmp.eq.s32.totalorder %v2366, %v263
        %vm2489 = vcmp.eq.s32.totalorder %v2370, %v263
        %vm2490 = vcmp.eq.s32.totalorder %v2374, %v263
        %vm2491 = vcmp.eq.s32.totalorder %v2362, %v264
        %vm2492 = vcmp.eq.s32.totalorder %v2366, %v264
        %vm2493 = vcmp.eq.s32.totalorder %v2370, %v264
        %vm2494 = vcmp.eq.s32.totalorder %v2374, %v264
        %vm2495 = vcmp.eq.s32.totalorder %v2362, %v265
        %vm2496 = vcmp.eq.s32.totalorder %v2366, %v265
        %vm2497 = vcmp.eq.s32.totalorder %v2370, %v265
        %vm2498 = vcmp.eq.s32.totalorder %v2374, %v265
        %vm2499 = vcmp.eq.s32.totalorder %v2362, %v266
        %vm2500 = vcmp.eq.s32.totalorder %v2366, %v266
        %vm2501 = vcmp.eq.s32.totalorder %v2370, %v266
        %vm2502 = vcmp.eq.s32.totalorder %v2374, %v266
        %vm2503 = vcmp.eq.s32.totalorder %v2378, %v263
        %vm2504 = vcmp.eq.s32.totalorder %v2382, %v263
        %vm2505 = vcmp.eq.s32.totalorder %v2386, %v263
        %vm2506 = vcmp.eq.s32.totalorder %v2390, %v263
        %vm2507 = vcmp.eq.s32.totalorder %v2378, %v264
        %vm2508 = vcmp.eq.s32.totalorder %v2382, %v264
        %vm2509 = vcmp.eq.s32.totalorder %v2386, %v264
        %vm2510 = vcmp.eq.s32.totalorder %v2390, %v264
        %vm2511 = vcmp.eq.s32.totalorder %v2378, %v265
        %vm2512 = vcmp.eq.s32.totalorder %v2382, %v265
        %vm2513 = vcmp.eq.s32.totalorder %v2386, %v265
        %vm2514 = vcmp.eq.s32.totalorder %v2390, %v265
        %vm2515 = vcmp.eq.s32.totalorder %v2378, %v266
        %vm2516 = vcmp.eq.s32.totalorder %v2382, %v266
        %vm2517 = vcmp.eq.s32.totalorder %v2386, %v266
        %vm2518 = vcmp.eq.s32.totalorder %v2390, %v266
        %vm2519 = vcmp.eq.s32.totalorder %v2394, %v263
        %vm2520 = vcmp.eq.s32.totalorder %v2398, %v263
        %vm2521 = vcmp.eq.s32.totalorder %v2402, %v263
        %vm2522 = vcmp.eq.s32.totalorder %v2406, %v263
        %vm2523 = vcmp.eq.s32.totalorder %v2394, %v264
        %vm2524 = vcmp.eq.s32.totalorder %v2398, %v264
        %vm2525 = vcmp.eq.s32.totalorder %v2402, %v264
        %vm2526 = vcmp.eq.s32.totalorder %v2406, %v264
        %vm2527 = vcmp.eq.s32.totalorder %v2394, %v265
        %vm2528 = vcmp.eq.s32.totalorder %v2398, %v265
        %vm2529 = vcmp.eq.s32.totalorder %v2402, %v265
        %vm2530 = vcmp.eq.s32.totalorder %v2406, %v265
        %vm2531 = vcmp.eq.s32.totalorder %v2394, %v266
        %vm2532 = vcmp.eq.s32.totalorder %v2398, %v266
        %vm2533 = vcmp.eq.s32.totalorder %v2402, %v266
        %vm2534 = vcmp.eq.s32.totalorder %v2406, %v266
        %vm2535 = vcmp.eq.s32.totalorder %v2410, %v263
        %vm2536 = vcmp.eq.s32.totalorder %v2414, %v263
        %vm2537 = vcmp.eq.s32.totalorder %v2418, %v263
        %vm2538 = vcmp.eq.s32.totalorder %v2422, %v263
        %vm2539 = vcmp.eq.s32.totalorder %v2410, %v264
        %vm2540 = vcmp.eq.s32.totalorder %v2414, %v264
        %vm2541 = vcmp.eq.s32.totalorder %v2418, %v264
        %vm2542 = vcmp.eq.s32.totalorder %v2422, %v264
        %vm2543 = vcmp.eq.s32.totalorder %v2410, %v265
        %vm2544 = vcmp.eq.s32.totalorder %v2414, %v265
        %vm2545 = vcmp.eq.s32.totalorder %v2418, %v265
        %vm2546 = vcmp.eq.s32.totalorder %v2422, %v265
        %vm2547 = vcmp.eq.s32.totalorder %v2410, %v266
        %vm2548 = vcmp.eq.s32.totalorder %v2414, %v266
        %vm2549 = vcmp.eq.s32.totalorder %v2418, %v266
        %vm2550 = vcmp.eq.s32.totalorder %v2422, %v266
        %vm2551 = vcmp.eq.s32.totalorder %v2426, %v263
        %vm2552 = vcmp.eq.s32.totalorder %v2430, %v263
        %vm2553 = vcmp.eq.s32.totalorder %v2434, %v263
        %vm2554 = vcmp.eq.s32.totalorder %v2438, %v263
        %vm2555 = vcmp.eq.s32.totalorder %v2426, %v264
        %vm2556 = vcmp.eq.s32.totalorder %v2430, %v264
        %vm2557 = vcmp.eq.s32.totalorder %v2434, %v264
        %vm2558 = vcmp.eq.s32.totalorder %v2438, %v264
        %vm2559 = vcmp.eq.s32.totalorder %v2426, %v265
        %vm2560 = vcmp.eq.s32.totalorder %v2430, %v265
        %vm2561 = vcmp.eq.s32.totalorder %v2434, %v265
        %vm2562 = vcmp.eq.s32.totalorder %v2438, %v265
        %vm2563 = vcmp.eq.s32.totalorder %v2426, %v266
        %vm2564 = vcmp.eq.s32.totalorder %v2430, %v266
        %vm2565 = vcmp.eq.s32.totalorder %v2434, %v266
        %vm2566 = vcmp.eq.s32.totalorder %v2438, %v266
        %vm2567 = vcmp.eq.s32.totalorder %v2442, %v263
        %vm2568 = vcmp.eq.s32.totalorder %v2446, %v263
        %vm2569 = vcmp.eq.s32.totalorder %v2450, %v263
        %vm2570 = vcmp.eq.s32.totalorder %v2454, %v263
        %vm2571 = vcmp.eq.s32.totalorder %v2442, %v264
        %vm2572 = vcmp.eq.s32.totalorder %v2446, %v264
        %vm2573 = vcmp.eq.s32.totalorder %v2450, %v264
        %vm2574 = vcmp.eq.s32.totalorder %v2454, %v264
        %vm2575 = vcmp.eq.s32.totalorder %v2442, %v265
        %vm2576 = vcmp.eq.s32.totalorder %v2446, %v265
        %vm2577 = vcmp.eq.s32.totalorder %v2450, %v265
        %vm2578 = vcmp.eq.s32.totalorder %v2454, %v265
        %vm2579 = vcmp.eq.s32.totalorder %v2442, %v266
        %vm2580 = vcmp.eq.s32.totalorder %v2446, %v266
        %vm2581 = vcmp.eq.s32.totalorder %v2450, %v266
        %vm2582 = vcmp.eq.s32.totalorder %v2454, %v266
        %vm2583 = vcmp.eq.s32.totalorder %v2458, %v263
        %vm2584 = vcmp.eq.s32.totalorder %v2462, %v263
        %vm2585 = vcmp.eq.s32.totalorder %v2466, %v263
        %vm2586 = vcmp.eq.s32.totalorder %v2470, %v263
        %vm2587 = vcmp.eq.s32.totalorder %v2458, %v264
        %vm2588 = vcmp.eq.s32.totalorder %v2462, %v264
        %vm2589 = vcmp.eq.s32.totalorder %v2466, %v264
        %vm2590 = vcmp.eq.s32.totalorder %v2470, %v264
        %vm2591 = vcmp.eq.s32.totalorder %v2458, %v265
        %vm2592 = vcmp.eq.s32.totalorder %v2462, %v265
        %vm2593 = vcmp.eq.s32.totalorder %v2466, %v265
        %vm2594 = vcmp.eq.s32.totalorder %v2470, %v265
        %vm2595 = vcmp.eq.s32.totalorder %v2458, %v266
        %vm2596 = vcmp.eq.s32.totalorder %v2462, %v266
        %vm2597 = vcmp.eq.s32.totalorder %v2466, %v266
        %vm2598 = vcmp.eq.s32.totalorder %v2470, %v266
        %v2599 = vsel %vm2471, 1, 0
        %v2600 = vsel %vm2472, 1, 0
        %v2601 = vsel %vm2473, 1, 0
        %v2602 = vsel %vm2474, 1, 0
        %v2603 = vsel %vm2475, 1, 0
        %v2604 = vsel %vm2476, 1, 0
        %v2605 = vsel %vm2477, 1, 0
        %v2606 = vsel %vm2478, 1, 0
        %v2607 = vsel %vm2479, 1, 0
        %v2608 = vsel %vm2480, 1, 0
        %v2609 = vsel %vm2481, 1, 0
        %v2610 = vsel %vm2482, 1, 0
        %v2611 = vsel %vm2483, 1, 0
        %v2612 = vsel %vm2484, 1, 0
        %v2613 = vsel %vm2485, 1, 0
        %v2614 = vsel %vm2486, 1, 0
        %v2615 = vsel %vm2487, 1, 0
        %v2616 = vsel %vm2488, 1, 0
        %v2617 = vsel %vm2489, 1, 0
        %v2618 = vsel %vm2490, 1, 0
        %v2619 = vsel %vm2491, 1, 0
        %v2620 = vsel %vm2492, 1, 0
        %v2621 = vsel %vm2493, 1, 0
        %v2622 = vsel %vm2494, 1, 0
        %v2623 = vsel %vm2495, 1, 0
        %v2624 = vsel %vm2496, 1, 0
        %v2625 = vsel %vm2497, 1, 0
        %v2626 = vsel %vm2498, 1, 0
        %v2627 = vsel %vm2499, 1, 0
        %v2628 = vsel %vm2500, 1, 0
        %v2629 = vsel %vm2501, 1, 0
        %v2630 = vsel %vm2502, 1, 0
        %v2631 = vsel %vm2503, 1, 0
        %v2632 = vsel %vm2504, 1, 0
        %v2633 = vsel %vm2505, 1, 0
        %v2634 = vsel %vm2506, 1, 0
        %v2635 = vsel %vm2507, 1, 0
        %v2636 = vsel %vm2508, 1, 0
        %v2637 = vsel %vm2509, 1, 0
        %v2638 = vsel %vm2510, 1, 0
        %v2639 = vsel %vm2511, 1, 0
        %v2640 = vsel %vm2512, 1, 0
        %v2641 = vsel %vm2513, 1, 0
        %v2642 = vsel %vm2514, 1, 0
        %v2643 = vsel %vm2515, 1, 0
        %v2644 = vsel %vm2516, 1, 0
        %v2645 = vsel %vm2517, 1, 0
        %v2646 = vsel %vm2518, 1, 0
        %v2647 = vsel %vm2519, 1, 0
        %v2648 = vsel %vm2520, 1, 0
        %v2649 = vsel %vm2521, 1, 0
        %v2650 = vsel %vm2522, 1, 0
        %v2651 = vsel %vm2523, 1, 0
        %v2652 = vsel %vm2524, 1, 0
        %v2653 = vsel %vm2525, 1, 0
        %v2654 = vsel %vm2526, 1, 0
        %v2655 = vsel %vm2527, 1, 0
        %v2656 = vsel %vm2528, 1, 0
        %v2657 = vsel %vm2529, 1, 0
        %v2658 = vsel %vm2530, 1, 0
        %v2659 = vsel %vm2531, 1, 0
        %v2660 = vsel %vm2532, 1, 0
        %v2661 = vsel %vm2533, 1, 0
        %v2662 = vsel %vm2534, 1, 0
        %v2663 = vsel %vm2535, 1, 0
        %v2664 = vsel %vm2536, 1, 0
        %v2665 = vsel %vm2537, 1, 0
        %v2666 = vsel %vm2538, 1, 0
        %v2667 = vsel %vm2539, 1, 0
        %v2668 = vsel %vm2540, 1, 0
        %v2669 = vsel %vm2541, 1, 0
        %v2670 = vsel %vm2542, 1, 0
        %v2671 = vsel %vm2543, 1, 0
        %v2672 = vsel %vm2544, 1, 0
        %v2673 = vsel %vm2545, 1, 0
        %v2674 = vsel %vm2546, 1, 0
        %v2675 = vsel %vm2547, 1, 0
        %v2676 = vsel %vm2548, 1, 0
        %v2677 = vsel %vm2549, 1, 0
        %v2678 = vsel %vm2550, 1, 0
        %v2679 = vsel %vm2551, 1, 0
        %v2680 = vsel %vm2552, 1, 0
        %v2681 = vsel %vm2553, 1, 0
        %v2682 = vsel %vm2554, 1, 0
        %v2683 = vsel %vm2555, 1, 0
        %v2684 = vsel %vm2556, 1, 0
        %v2685 = vsel %vm2557, 1, 0
        %v2686 = vsel %vm2558, 1, 0
        %v2687 = vsel %vm2559, 1, 0
        %v2688 = vsel %vm2560, 1, 0
        %v2689 = vsel %vm2561, 1, 0
        %v2690 = vsel %vm2562, 1, 0
        %v2691 = vsel %vm2563, 1, 0
        %v2692 = vsel %vm2564, 1, 0
        %v2693 = vsel %vm2565, 1, 0
        %v2694 = vsel %vm2566, 1, 0
        %v2695 = vsel %vm2567, 1, 0
        %v2696 = vsel %vm2568, 1, 0
        %v2697 = vsel %vm2569, 1, 0
        %v2698 = vsel %vm2570, 1, 0
        %v2699 = vsel %vm2571, 1, 0
        %v2700 = vsel %vm2572, 1, 0
        %v2701 = vsel %vm2573, 1, 0
        %v2702 = vsel %vm2574, 1, 0
        %v2703 = vsel %vm2575, 1, 0
        %v2704 = vsel %vm2576, 1, 0
        %v2705 = vsel %vm2577, 1, 0
        %v2706 = vsel %vm2578, 1, 0
        %v2707 = vsel %vm2579, 1, 0
        %v2708 = vsel %vm2580, 1, 0
        %v2709 = vsel %vm2581, 1, 0
        %v2710 = vsel %vm2582, 1, 0
        %v2711 = vsel %vm2583, 1, 0
        %v2712 = vsel %vm2584, 1, 0
        %v2713 = vsel %vm2585, 1, 0
        %v2714 = vsel %vm2586, 1, 0
        %v2715 = vsel %vm2587, 1, 0
        %v2716 = vsel %vm2588, 1, 0
        %v2717 = vsel %vm2589, 1, 0
        %v2718 = vsel %vm2590, 1, 0
        %v2719 = vsel %vm2591, 1, 0
        %v2720 = vsel %vm2592, 1, 0
        %v2721 = vsel %vm2593, 1, 0
        %v2722 = vsel %vm2594, 1, 0
        %v2723 = vsel %vm2595, 1, 0
        %v2724 = vsel %vm2596, 1, 0
        %v2725 = vsel %vm2597, 1, 0
        %v2726 = vsel %vm2598, 1, 0
        %v2727 = vcvt.s32.f32 %v2599
        %v2728 = vcvt.s32.f32 %v2600
        %v2729 = vcvt.s32.f32 %v2601
        %v2730 = vcvt.s32.f32 %v2602
        %v2731 = vcvt.s32.f32 %v2603
        %v2732 = vcvt.s32.f32 %v2604
        %v2733 = vcvt.s32.f32 %v2605
        %v2734 = vcvt.s32.f32 %v2606
        %v2735 = vcvt.s32.f32 %v2607
        %v2736 = vcvt.s32.f32 %v2608
        %v2737 = vcvt.s32.f32 %v2609
        %v2738 = vcvt.s32.f32 %v2610
        %v2739 = vcvt.s32.f32 %v2611
        %v2740 = vcvt.s32.f32 %v2612
        %v2741 = vcvt.s32.f32 %v2613
        %v2742 = vcvt.s32.f32 %v2614
        %v2743 = vcvt.s32.f32 %v2615
        %v2744 = vcvt.s32.f32 %v2616
        %v2745 = vcvt.s32.f32 %v2617
        %v2746 = vcvt.s32.f32 %v2618
        %v2747 = vcvt.s32.f32 %v2619
        %v2748 = vcvt.s32.f32 %v2620
        %v2749 = vcvt.s32.f32 %v2621
        %v2750 = vcvt.s32.f32 %v2622
        %v2751 = vcvt.s32.f32 %v2623
        %v2752 = vcvt.s32.f32 %v2624
        %v2753 = vcvt.s32.f32 %v2625
        %v2754 = vcvt.s32.f32 %v2626
        %v2755 = vcvt.s32.f32 %v2627
        %v2756 = vcvt.s32.f32 %v2628
        %v2757 = vcvt.s32.f32 %v2629
        %v2758 = vcvt.s32.f32 %v2630
        %v2759 = vcvt.s32.f32 %v2631
        %v2760 = vcvt.s32.f32 %v2632
        %v2761 = vcvt.s32.f32 %v2633
        %v2762 = vcvt.s32.f32 %v2634
        %v2763 = vcvt.s32.f32 %v2635
        %v2764 = vcvt.s32.f32 %v2636
        %v2765 = vcvt.s32.f32 %v2637
        %v2766 = vcvt.s32.f32 %v2638
        %v2767 = vcvt.s32.f32 %v2639
        %v2768 = vcvt.s32.f32 %v2640
        %v2769 = vcvt.s32.f32 %v2641
        %v2770 = vcvt.s32.f32 %v2642
        %v2771 = vcvt.s32.f32 %v2643
        %v2772 = vcvt.s32.f32 %v2644
        %v2773 = vcvt.s32.f32 %v2645
        %v2774 = vcvt.s32.f32 %v2646
        %v2775 = vcvt.s32.f32 %v2647
        %v2776 = vcvt.s32.f32 %v2648
        %v2777 = vcvt.s32.f32 %v2649
        %v2778 = vcvt.s32.f32 %v2650
        %v2779 = vcvt.s32.f32 %v2651
        %v2780 = vcvt.s32.f32 %v2652
        %v2781 = vcvt.s32.f32 %v2653
        %v2782 = vcvt.s32.f32 %v2654
        %v2783 = vcvt.s32.f32 %v2655
        %v2784 = vcvt.s32.f32 %v2656
        %v2785 = vcvt.s32.f32 %v2657
        %v2786 = vcvt.s32.f32 %v2658
        %v2787 = vcvt.s32.f32 %v2659
        %v2788 = vcvt.s32.f32 %v2660
        %v2789 = vcvt.s32.f32 %v2661
        %v2790 = vcvt.s32.f32 %v2662
        %v2791 = vcvt.s32.f32 %v2663
        %v2792 = vcvt.s32.f32 %v2664
        %v2793 = vcvt.s32.f32 %v2665
        %v2794 = vcvt.s32.f32 %v2666
        %v2795 = vcvt.s32.f32 %v2667
        %v2796 = vcvt.s32.f32 %v2668
        %v2797 = vcvt.s32.f32 %v2669
        %v2798 = vcvt.s32.f32 %v2670
        %v2799 = vcvt.s32.f32 %v2671
        %v2800 = vcvt.s32.f32 %v2672
        %v2801 = vcvt.s32.f32 %v2673
        %v2802 = vcvt.s32.f32 %v2674
        %v2803 = vcvt.s32.f32 %v2675
        %v2804 = vcvt.s32.f32 %v2676
        %v2805 = vcvt.s32.f32 %v2677
        %v2806 = vcvt.s32.f32 %v2678
        %v2807 = vcvt.s32.f32 %v2679
        %v2808 = vcvt.s32.f32 %v2680
        %v2809 = vcvt.s32.f32 %v2681
        %v2810 = vcvt.s32.f32 %v2682
        %v2811 = vcvt.s32.f32 %v2683
        %v2812 = vcvt.s32.f32 %v2684
        %v2813 = vcvt.s32.f32 %v2685
        %v2814 = vcvt.s32.f32 %v2686
        %v2815 = vcvt.s32.f32 %v2687
        %v2816 = vcvt.s32.f32 %v2688
        %v2817 = vcvt.s32.f32 %v2689
        %v2818 = vcvt.s32.f32 %v2690
        %v2819 = vcvt.s32.f32 %v2691
        %v2820 = vcvt.s32.f32 %v2692
        %v2821 = vcvt.s32.f32 %v2693
        %v2822 = vcvt.s32.f32 %v2694
        %v2823 = vcvt.s32.f32 %v2695
        %v2824 = vcvt.s32.f32 %v2696
        %v2825 = vcvt.s32.f32 %v2697
        %v2826 = vcvt.s32.f32 %v2698
        %v2827 = vcvt.s32.f32 %v2699
        %v2828 = vcvt.s32.f32 %v2700
        %v2829 = vcvt.s32.f32 %v2701
        %v2830 = vcvt.s32.f32 %v2702
        %v2831 = vcvt.s32.f32 %v2703
        %v2832 = vcvt.s32.f32 %v2704
        %v2833 = vcvt.s32.f32 %v2705
        %v2834 = vcvt.s32.f32 %v2706
        %v2835 = vcvt.s32.f32 %v2707
        %v2836 = vcvt.s32.f32 %v2708
        %v2837 = vcvt.s32.f32 %v2709
        %v2838 = vcvt.s32.f32 %v2710
        %v2839 = vcvt.s32.f32 %v2711
        %v2840 = vcvt.s32.f32 %v2712
        %v2841 = vcvt.s32.f32 %v2713
        %v2842 = vcvt.s32.f32 %v2714
        %v2843 = vcvt.s32.f32 %v2715
        %v2844 = vcvt.s32.f32 %v2716
        %v2845 = vcvt.s32.f32 %v2717
        %v2846 = vcvt.s32.f32 %v2718
        %v2847 = vcvt.s32.f32 %v2719
        %v2848 = vcvt.s32.f32 %v2720
        %v2849 = vcvt.s32.f32 %v2721
        %v2850 = vcvt.s32.f32 %v2722
        %v2851 = vcvt.s32.f32 %v2723
        %v2852 = vcvt.s32.f32 %v2724
        %v2853 = vcvt.s32.f32 %v2725
        %v2854 = vcvt.s32.f32 %v2726
        %v2855 = vpack.c.bf16 %v2731, %v2727
        %v2856 = vpack.c.bf16 %v2732, %v2728
        %v2857 = vpack.c.bf16 %v2733, %v2729
        %v2858 = vpack.c.bf16 %v2734, %v2730
        %v2859 = vpack.c.bf16 %v2739, %v2735
        %v2860 = vpack.c.bf16 %v2740, %v2736
        %v2861 = vpack.c.bf16 %v2741, %v2737
        %v2862 = vpack.c.bf16 %v2742, %v2738
        %v2863 = vpack.c.bf16 %v2747, %v2743
        %v2864 = vpack.c.bf16 %v2748, %v2744
        %v2865 = vpack.c.bf16 %v2749, %v2745
        %v2866 = vpack.c.bf16 %v2750, %v2746
        %v2867 = vpack.c.bf16 %v2755, %v2751
        %v2868 = vpack.c.bf16 %v2756, %v2752
        %v2869 = vpack.c.bf16 %v2757, %v2753
        %v2870 = vpack.c.bf16 %v2758, %v2754
        %v2871 = vpack.c.bf16 %v2763, %v2759
        %v2872 = vpack.c.bf16 %v2764, %v2760
        %v2873 = vpack.c.bf16 %v2765, %v2761
        %v2874 = vpack.c.bf16 %v2766, %v2762
        %v2875 = vpack.c.bf16 %v2771, %v2767
        %v2876 = vpack.c.bf16 %v2772, %v2768
        %v2877 = vpack.c.bf16 %v2773, %v2769
        %v2878 = vpack.c.bf16 %v2774, %v2770
        %v2879 = vpack.c.bf16 %v2779, %v2775
        %v2880 = vpack.c.bf16 %v2780, %v2776
        %v2881 = vpack.c.bf16 %v2781, %v2777
        %v2882 = vpack.c.bf16 %v2782, %v2778
        %v2883 = vpack.c.bf16 %v2787, %v2783
        %v2884 = vpack.c.bf16 %v2788, %v2784
        %v2885 = vpack.c.bf16 %v2789, %v2785
        %v2886 = vpack.c.bf16 %v2790, %v2786
        %v2887 = vpack.c.bf16 %v2795, %v2791
        %v2888 = vpack.c.bf16 %v2796, %v2792
        %v2889 = vpack.c.bf16 %v2797, %v2793
        %v2890 = vpack.c.bf16 %v2798, %v2794
        %v2891 = vpack.c.bf16 %v2803, %v2799
        %v2892 = vpack.c.bf16 %v2804, %v2800
        %v2893 = vpack.c.bf16 %v2805, %v2801
        %v2894 = vpack.c.bf16 %v2806, %v2802
        %v2895 = vpack.c.bf16 %v2811, %v2807
        %v2896 = vpack.c.bf16 %v2812, %v2808
        %v2897 = vpack.c.bf16 %v2813, %v2809
        %v2898 = vpack.c.bf16 %v2814, %v2810
        %v2899 = vpack.c.bf16 %v2819, %v2815
        %v2900 = vpack.c.bf16 %v2820, %v2816
        %v2901 = vpack.c.bf16 %v2821, %v2817
        %v2902 = vpack.c.bf16 %v2822, %v2818
        %v2903 = vpack.c.bf16 %v2827, %v2823
        %v2904 = vpack.c.bf16 %v2828, %v2824
        %v2905 = vpack.c.bf16 %v2829, %v2825
        %v2906 = vpack.c.bf16 %v2830, %v2826
        %v2907 = vpack.c.bf16 %v2835, %v2831
        %v2908 = vpack.c.bf16 %v2836, %v2832
        %v2909 = vpack.c.bf16 %v2837, %v2833
        %v2910 = vpack.c.bf16 %v2838, %v2834
        %v2911 = vpack.c.bf16 %v2843, %v2839
        %v2912 = vpack.c.bf16 %v2844, %v2840
        %v2913 = vpack.c.bf16 %v2845, %v2841
        %v2914 = vpack.c.bf16 %v2846, %v2842
        %v2915 = vpack.c.bf16 %v2851, %v2847
        %v2916 = vpack.c.bf16 %v2852, %v2848
        %v2917 = vpack.c.bf16 %v2853, %v2849
        %v2918 = vpack.c.bf16 %v2854, %v2850
        %2919 = vmatprep.subr.bf16.mxu0 %v2856
        %2920 = vmatpush1.bf16.xpose.msra.mxu0 %v2855
        %2921 = vmatprep.subr.bf16.mxu0 %v2860
        %2922 = vmatpush1.bf16.xpose.msra.mxu0 %v2859
        %2923 = vmatprep.subr.bf16.mxu0 0
        %2924 = vmatpush1.bf16.xpose.msra.mxu0 0
        %2925 = vmatprep.subr.bf16.mxu0 0
        %2926 = vmatpush1.bf16.xpose.msra.mxu0 0
        %2927 = vmatprep.subr.bf16.mxu0 0
        %2928 = vmatpush1.bf16.xpose.msra.mxu0 0
        %2929 = vmatprep.subr.bf16.mxu0 0
        %2930 = vmatpush1.bf16.xpose.msra.mxu0 0
        %2931 = vmatprep.subr.bf16.mxu0 0
        %2932 = vmatpush1.bf16.xpose.msra.mxu0 0
        %2933 = vmatprep.subr.bf16.mxu0 0
        %2934 = vmatpush1.bf16.xpose.msra.mxu0 0
        %2935 = vmatprep.subr.bf16.mxu0 0
        %2936 = vmatpush1.bf16.xpose.msra.mxu0 0
        %2937 = vmatprep.subr.bf16.mxu0 0
        %2938 = vmatpush1.bf16.xpose.msra.mxu0 0
        %2939 = vmatprep.subr.bf16.mxu0 0
        %2940 = vmatpush1.bf16.xpose.msra.mxu0 0
        %2941 = vmatprep.subr.bf16.mxu0 0
        %2942 = vmatpush1.bf16.xpose.msra.mxu0 0
        %2943 = vmatprep.subr.bf16.mxu0 0
        %2944 = vmatpush1.bf16.xpose.msra.mxu0 0
        %2945 = vmatprep.subr.bf16.mxu0 0
        %2946 = vmatpush1.bf16.xpose.msra.mxu0 0
        %2947 = vmatprep.subr.bf16.mxu0 0
        %2948 = vmatpush1.bf16.xpose.msra.mxu0 0
        %2949 = vmatprep.subr.bf16.mxu0 0
        %2950 = vmatpush1.bf16.xpose.msra.mxu0 0
        %2951 = vmatprep.mubr.bf16.mxu0 %v2244
        %2952 = vmatmul.mubr.bf16.gmra.mrb[0].mxu0 %v2243
        %v2953 = vpop.f32.mrb[0].mxu0
        %v2954 = vadd.f32 0.0, %v2953
        %v2955 = vpop.f32.mrb[0].mxu0
        %v2956 = vpop.f32.mrb[0].mxu0
        %v2957 = vpop.f32.mrb[0].mxu0
        %2958 = vdwg.mxu0
        %2959 = vmatprep.subr.bf16.mxu0 %v2858
        %2960 = vmatpush1.bf16.xpose.msra.mxu0 %v2857
        %2961 = vmatprep.subr.bf16.mxu0 %v2862
        %2962 = vmatpush1.bf16.xpose.msra.mxu0 %v2861
        %2963 = vmatprep.subr.bf16.mxu0 0
        %2964 = vmatpush1.bf16.xpose.msra.mxu0 0
        %2965 = vmatprep.subr.bf16.mxu0 0
        %2966 = vmatpush1.bf16.xpose.msra.mxu0 0
        %2967 = vmatprep.subr.bf16.mxu0 0
        %2968 = vmatpush1.bf16.xpose.msra.mxu0 0
        %2969 = vmatprep.subr.bf16.mxu0 0
        %2970 = vmatpush1.bf16.xpose.msra.mxu0 0
        %2971 = vmatprep.subr.bf16.mxu0 0
        %2972 = vmatpush1.bf16.xpose.msra.mxu0 0
        %2973 = vmatprep.subr.bf16.mxu0 0
        %2974 = vmatpush1.bf16.xpose.msra.mxu0 0
        %2975 = vmatprep.subr.bf16.mxu0 0
        %2976 = vmatpush1.bf16.xpose.msra.mxu0 0
        %2977 = vmatprep.subr.bf16.mxu0 0
        %2978 = vmatpush1.bf16.xpose.msra.mxu0 0
        %2979 = vmatprep.subr.bf16.mxu0 0
        %2980 = vmatpush1.bf16.xpose.msra.mxu0 0
        %2981 = vmatprep.subr.bf16.mxu0 0
        %2982 = vmatpush1.bf16.xpose.msra.mxu0 0
        %2983 = vmatprep.subr.bf16.mxu0 0
        %2984 = vmatpush1.bf16.xpose.msra.mxu0 0
        %2985 = vmatprep.subr.bf16.mxu0 0
        %2986 = vmatpush1.bf16.xpose.msra.mxu0 0
        %2987 = vmatprep.subr.bf16.mxu0 0
        %2988 = vmatpush1.bf16.xpose.msra.mxu0 0
        %2989 = vmatprep.subr.bf16.mxu0 0
        %2990 = vmatpush1.bf16.xpose.msra.mxu0 0
        %2991 = vmatprep.mubr.bf16.mxu0 %v2246
        %2992 = vmatmul.mubr.bf16.gmra.mrb[0].mxu0 %v2245
        %v2993 = vpop.f32.mrb[0].mxu0
        %v2994 = vadd.f32 %v2954, %v2993
        %v2995 = vpop.f32.mrb[0].mxu0
        %v2996 = vpop.f32.mrb[0].mxu0
        %v2997 = vpop.f32.mrb[0].mxu0
        %2998 = vdwg.mxu0
        %2999 = vmatprep.subr.bf16.mxu0 %v2864
        %3000 = vmatpush1.bf16.xpose.msra.mxu0 %v2863
        %3001 = vmatprep.subr.bf16.mxu0 %v2868
        %3002 = vmatpush1.bf16.xpose.msra.mxu0 %v2867
        %3003 = vmatprep.subr.bf16.mxu0 0
        %3004 = vmatpush1.bf16.xpose.msra.mxu0 0
        %3005 = vmatprep.subr.bf16.mxu0 0
        %3006 = vmatpush1.bf16.xpose.msra.mxu0 0
        %3007 = vmatprep.subr.bf16.mxu0 0
        %3008 = vmatpush1.bf16.xpose.msra.mxu0 0
        %3009 = vmatprep.subr.bf16.mxu0 0
        %3010 = vmatpush1.bf16.xpose.msra.mxu0 0
        %3011 = vmatprep.subr.bf16.mxu0 0
        %3012 = vmatpush1.bf16.xpose.msra.mxu0 0
        %3013 = vmatprep.subr.bf16.mxu0 0
        %3014 = vmatpush1.bf16.xpose.msra.mxu0 0
        %3015 = vmatprep.subr.bf16.mxu0 0
        %3016 = vmatpush1.bf16.xpose.msra.mxu0 0
        %3017 = vmatprep.subr.bf16.mxu0 0
        %3018 = vmatpush1.bf16.xpose.msra.mxu0 0
        %3019 = vmatprep.subr.bf16.mxu0 0
        %3020 = vmatpush1.bf16.xpose.msra.mxu0 0
        %3021 = vmatprep.subr.bf16.mxu0 0
        %3022 = vmatpush1.bf16.xpose.msra.mxu0 0
        %3023 = vmatprep.subr.bf16.mxu0 0
        %3024 = vmatpush1.bf16.xpose.msra.mxu0 0
        %3025 = vmatprep.subr.bf16.mxu0 0
        %3026 = vmatpush1.bf16.xpose.msra.mxu0 0
        %3027 = vmatprep.subr.bf16.mxu0 0
        %3028 = vmatpush1.bf16.xpose.msra.mxu0 0
        %3029 = vmatprep.subr.bf16.mxu0 0
        %3030 = vmatpush1.bf16.xpose.msra.mxu0 0
        %3031 = vmatprep.mubr.bf16.mxu0 %v2248
        %3032 = vmatmul.mubr.bf16.gmra.mrb[0].mxu0 %v2247
        %v3033 = vpop.f32.mrb[0].mxu0
        %v3034 = vadd.f32 0.0, %v3033
        %v3035 = vpop.f32.mrb[0].mxu0
        %v3036 = vpop.f32.mrb[0].mxu0
        %v3037 = vpop.f32.mrb[0].mxu0
        %3038 = vdwg.mxu0
        %3039 = vmatprep.subr.bf16.mxu0 %v2866
        %3040 = vmatpush1.bf16.xpose.msra.mxu0 %v2865
        %3041 = vmatprep.subr.bf16.mxu0 %v2870
        %3042 = vmatpush1.bf16.xpose.msra.mxu0 %v2869
        %3043 = vmatprep.subr.bf16.mxu0 0
        %3044 = vmatpush1.bf16.xpose.msra.mxu0 0
        %3045 = vmatprep.subr.bf16.mxu0 0
        %3046 = vmatpush1.bf16.xpose.msra.mxu0 0
        %3047 = vmatprep.subr.bf16.mxu0 0
        %3048 = vmatpush1.bf16.xpose.msra.mxu0 0
        %3049 = vmatprep.subr.bf16.mxu0 0
        %3050 = vmatpush1.bf16.xpose.msra.mxu0 0
        %3051 = vmatprep.subr.bf16.mxu0 0
        %3052 = vmatpush1.bf16.xpose.msra.mxu0 0
        %3053 = vmatprep.subr.bf16.mxu0 0
        %3054 = vmatpush1.bf16.xpose.msra.mxu0 0
        %3055 = vmatprep.subr.bf16.mxu0 0
        %3056 = vmatpush1.bf16.xpose.msra.mxu0 0
        %3057 = vmatprep.subr.bf16.mxu0 0
        %3058 = vmatpush1.bf16.xpose.msra.mxu0 0
        %3059 = vmatprep.subr.bf16.mxu0 0
        %3060 = vmatpush1.bf16.xpose.msra.mxu0 0
        %3061 = vmatprep.subr.bf16.mxu0 0
        %3062 = vmatpush1.bf16.xpose.msra.mxu0 0
        %3063 = vmatprep.subr.bf16.mxu0 0
        %3064 = vmatpush1.bf16.xpose.msra.mxu0 0
        %3065 = vmatprep.subr.bf16.mxu0 0
        %3066 = vmatpush1.bf16.xpose.msra.mxu0 0
        %3067 = vmatprep.subr.bf16.mxu0 0
        %3068 = vmatpush1.bf16.xpose.msra.mxu0 0
        %3069 = vmatprep.subr.bf16.mxu0 0
        %3070 = vmatpush1.bf16.xpose.msra.mxu0 0
        %3071 = vmatprep.mubr.bf16.mxu0 %v2250
        %3072 = vmatmul.mubr.bf16.gmra.mrb[0].mxu0 %v2249
        %v3073 = vpop.f32.mrb[0].mxu0
        %v3074 = vadd.f32 %v3034, %v3073
        %v3075 = vpop.f32.mrb[0].mxu0
        %v3076 = vpop.f32.mrb[0].mxu0
        %v3077 = vpop.f32.mrb[0].mxu0
        %3078 = vdwg.mxu0
        %3079 = vmatprep.subr.bf16.mxu0 %v2872
        %3080 = vmatpush1.bf16.xpose.msra.mxu0 %v2871
        %3081 = vmatprep.subr.bf16.mxu0 %v2876
        %3082 = vmatpush1.bf16.xpose.msra.mxu0 %v2875
        %3083 = vmatprep.subr.bf16.mxu0 0
        %3084 = vmatpush1.bf16.xpose.msra.mxu0 0
        %3085 = vmatprep.subr.bf16.mxu0 0
        %3086 = vmatpush1.bf16.xpose.msra.mxu0 0
        %3087 = vmatprep.subr.bf16.mxu0 0
        %3088 = vmatpush1.bf16.xpose.msra.mxu0 0
        %3089 = vmatprep.subr.bf16.mxu0 0
        %3090 = vmatpush1.bf16.xpose.msra.mxu0 0
        %3091 = vmatprep.subr.bf16.mxu0 0
        %3092 = vmatpush1.bf16.xpose.msra.mxu0 0
        %3093 = vmatprep.subr.bf16.mxu0 0
        %3094 = vmatpush1.bf16.xpose.msra.mxu0 0
        %3095 = vmatprep.subr.bf16.mxu0 0
        %3096 = vmatpush1.bf16.xpose.msra.mxu0 0
        %3097 = vmatprep.subr.bf16.mxu0 0
        %3098 = vmatpush1.bf16.xpose.msra.mxu0 0
        %3099 = vmatprep.subr.bf16.mxu0 0
        %3100 = vmatpush1.bf16.xpose.msra.mxu0 0
        %3101 = vmatprep.subr.bf16.mxu0 0
        %3102 = vmatpush1.bf16.xpose.msra.mxu0 0
        %3103 = vmatprep.subr.bf16.mxu0 0
        %3104 = vmatpush1.bf16.xpose.msra.mxu0 0
        %3105 = vmatprep.subr.bf16.mxu0 0
        %3106 = vmatpush1.bf16.xpose.msra.mxu0 0
        %3107 = vmatprep.subr.bf16.mxu0 0
        %3108 = vmatpush1.bf16.xpose.msra.mxu0 0
        %3109 = vmatprep.subr.bf16.mxu0 0
        %3110 = vmatpush1.bf16.xpose.msra.mxu0 0
        %3111 = vmatprep.mubr.bf16.mxu0 %v2252
        %3112 = vmatmul.mubr.bf16.gmra.mrb[0].mxu0 %v2251
        %v3113 = vpop.f32.mrb[0].mxu0
        %v3114 = vadd.f32 0.0, %v3113
        %v3115 = vpop.f32.mrb[0].mxu0
        %v3116 = vpop.f32.mrb[0].mxu0
        %v3117 = vpop.f32.mrb[0].mxu0
        %3118 = vdwg.mxu0
        %3119 = vmatprep.subr.bf16.mxu0 %v2874
        %3120 = vmatpush1.bf16.xpose.msra.mxu0 %v2873
        %3121 = vmatprep.subr.bf16.mxu0 %v2878
        %3122 = vmatpush1.bf16.xpose.msra.mxu0 %v2877
        %3123 = vmatprep.subr.bf16.mxu0 0
        %3124 = vmatpush1.bf16.xpose.msra.mxu0 0
        %3125 = vmatprep.subr.bf16.mxu0 0
        %3126 = vmatpush1.bf16.xpose.msra.mxu0 0
        %3127 = vmatprep.subr.bf16.mxu0 0
        %3128 = vmatpush1.bf16.xpose.msra.mxu0 0
        %3129 = vmatprep.subr.bf16.mxu0 0
        %3130 = vmatpush1.bf16.xpose.msra.mxu0 0
        %3131 = vmatprep.subr.bf16.mxu0 0
        %3132 = vmatpush1.bf16.xpose.msra.mxu0 0
        %3133 = vmatprep.subr.bf16.mxu0 0
        %3134 = vmatpush1.bf16.xpose.msra.mxu0 0
        %3135 = vmatprep.subr.bf16.mxu0 0
        %3136 = vmatpush1.bf16.xpose.msra.mxu0 0
        %3137 = vmatprep.subr.bf16.mxu0 0
        %3138 = vmatpush1.bf16.xpose.msra.mxu0 0
        %3139 = vmatprep.subr.bf16.mxu0 0
        %3140 = vmatpush1.bf16.xpose.msra.mxu0 0
        %3141 = vmatprep.subr.bf16.mxu0 0
        %3142 = vmatpush1.bf16.xpose.msra.mxu0 0
        %3143 = vmatprep.subr.bf16.mxu0 0
        %3144 = vmatpush1.bf16.xpose.msra.mxu0 0
        %3145 = vmatprep.subr.bf16.mxu0 0
        %3146 = vmatpush1.bf16.xpose.msra.mxu0 0
        %3147 = vmatprep.subr.bf16.mxu0 0
        %3148 = vmatpush1.bf16.xpose.msra.mxu0 0
        %3149 = vmatprep.subr.bf16.mxu0 0
        %3150 = vmatpush1.bf16.xpose.msra.mxu0 0
        %3151 = vmatprep.mubr.bf16.mxu0 %v2254
        %3152 = vmatmul.mubr.bf16.gmra.mrb[0].mxu0 %v2253
        %v3153 = vpop.f32.mrb[0].mxu0
        %v3154 = vadd.f32 %v3114, %v3153
        %v3155 = vpop.f32.mrb[0].mxu0
        %v3156 = vpop.f32.mrb[0].mxu0
        %v3157 = vpop.f32.mrb[0].mxu0
        %3158 = vdwg.mxu0
        %3159 = vmatprep.subr.bf16.mxu0 %v2880
        %3160 = vmatpush1.bf16.xpose.msra.mxu0 %v2879
        %3161 = vmatprep.subr.bf16.mxu0 %v2884
        %3162 = vmatpush1.bf16.xpose.msra.mxu0 %v2883
        %3163 = vmatprep.subr.bf16.mxu0 0
        %3164 = vmatpush1.bf16.xpose.msra.mxu0 0
        %3165 = vmatprep.subr.bf16.mxu0 0
        %3166 = vmatpush1.bf16.xpose.msra.mxu0 0
        %3167 = vmatprep.subr.bf16.mxu0 0
        %3168 = vmatpush1.bf16.xpose.msra.mxu0 0
        %3169 = vmatprep.subr.bf16.mxu0 0
        %3170 = vmatpush1.bf16.xpose.msra.mxu0 0
        %3171 = vmatprep.subr.bf16.mxu0 0
        %3172 = vmatpush1.bf16.xpose.msra.mxu0 0
        %3173 = vmatprep.subr.bf16.mxu0 0
        %3174 = vmatpush1.bf16.xpose.msra.mxu0 0
        %3175 = vmatprep.subr.bf16.mxu0 0
        %3176 = vmatpush1.bf16.xpose.msra.mxu0 0
        %3177 = vmatprep.subr.bf16.mxu0 0
        %3178 = vmatpush1.bf16.xpose.msra.mxu0 0
        %3179 = vmatprep.subr.bf16.mxu0 0
        %3180 = vmatpush1.bf16.xpose.msra.mxu0 0
        %3181 = vmatprep.subr.bf16.mxu0 0
        %3182 = vmatpush1.bf16.xpose.msra.mxu0 0
        %3183 = vmatprep.subr.bf16.mxu0 0
        %3184 = vmatpush1.bf16.xpose.msra.mxu0 0
        %3185 = vmatprep.subr.bf16.mxu0 0
        %3186 = vmatpush1.bf16.xpose.msra.mxu0 0
        %3187 = vmatprep.subr.bf16.mxu0 0
        %3188 = vmatpush1.bf16.xpose.msra.mxu0 0
        %3189 = vmatprep.subr.bf16.mxu0 0
        %3190 = vmatpush1.bf16.xpose.msra.mxu0 0
        %3191 = vmatprep.mubr.bf16.mxu0 %v2256
        %3192 = vmatmul.mubr.bf16.gmra.mrb[0].mxu0 %v2255
        %v3193 = vpop.f32.mrb[0].mxu0
        %v3194 = vadd.f32 0.0, %v3193
        %v3195 = vpop.f32.mrb[0].mxu0
        %v3196 = vpop.f32.mrb[0].mxu0
        %v3197 = vpop.f32.mrb[0].mxu0
        %3198 = vdwg.mxu0
        %3199 = vmatprep.subr.bf16.mxu0 %v2882
        %3200 = vmatpush1.bf16.xpose.msra.mxu0 %v2881
        %3201 = vmatprep.subr.bf16.mxu0 %v2886
        %3202 = vmatpush1.bf16.xpose.msra.mxu0 %v2885
        %3203 = vmatprep.subr.bf16.mxu0 0
        %3204 = vmatpush1.bf16.xpose.msra.mxu0 0
        %3205 = vmatprep.subr.bf16.mxu0 0
        %3206 = vmatpush1.bf16.xpose.msra.mxu0 0
        %3207 = vmatprep.subr.bf16.mxu0 0
        %3208 = vmatpush1.bf16.xpose.msra.mxu0 0
        %3209 = vmatprep.subr.bf16.mxu0 0
        %3210 = vmatpush1.bf16.xpose.msra.mxu0 0
        %3211 = vmatprep.subr.bf16.mxu0 0
        %3212 = vmatpush1.bf16.xpose.msra.mxu0 0
        %3213 = vmatprep.subr.bf16.mxu0 0
        %3214 = vmatpush1.bf16.xpose.msra.mxu0 0
        %3215 = vmatprep.subr.bf16.mxu0 0
        %3216 = vmatpush1.bf16.xpose.msra.mxu0 0
        %3217 = vmatprep.subr.bf16.mxu0 0
        %3218 = vmatpush1.bf16.xpose.msra.mxu0 0
        %3219 = vmatprep.subr.bf16.mxu0 0
        %3220 = vmatpush1.bf16.xpose.msra.mxu0 0
        %3221 = vmatprep.subr.bf16.mxu0 0
        %3222 = vmatpush1.bf16.xpose.msra.mxu0 0
        %3223 = vmatprep.subr.bf16.mxu0 0
        %3224 = vmatpush1.bf16.xpose.msra.mxu0 0
        %3225 = vmatprep.subr.bf16.mxu0 0
        %3226 = vmatpush1.bf16.xpose.msra.mxu0 0
        %3227 = vmatprep.subr.bf16.mxu0 0
        %3228 = vmatpush1.bf16.xpose.msra.mxu0 0
        %3229 = vmatprep.subr.bf16.mxu0 0
        %3230 = vmatpush1.bf16.xpose.msra.mxu0 0
        %3231 = vmatprep.mubr.bf16.mxu0 %v2258
        %3232 = vmatmul.mubr.bf16.gmra.mrb[0].mxu0 %v2257
        %v3233 = vpop.f32.mrb[0].mxu0
        %v3234 = vadd.f32 %v3194, %v3233
        %v3235 = vpop.f32.mrb[0].mxu0
        %v3236 = vpop.f32.mrb[0].mxu0
        %v3237 = vpop.f32.mrb[0].mxu0
        %3238 = vdwg.mxu0
        %3239 = vmatprep.subr.bf16.mxu0 %v2888
        %3240 = vmatpush1.bf16.xpose.msra.mxu0 %v2887
        %3241 = vmatprep.subr.bf16.mxu0 %v2892
        %3242 = vmatpush1.bf16.xpose.msra.mxu0 %v2891
        %3243 = vmatprep.subr.bf16.mxu0 0
        %3244 = vmatpush1.bf16.xpose.msra.mxu0 0
        %3245 = vmatprep.subr.bf16.mxu0 0
        %3246 = vmatpush1.bf16.xpose.msra.mxu0 0
        %3247 = vmatprep.subr.bf16.mxu0 0
        %3248 = vmatpush1.bf16.xpose.msra.mxu0 0
        %3249 = vmatprep.subr.bf16.mxu0 0
        %3250 = vmatpush1.bf16.xpose.msra.mxu0 0
        %3251 = vmatprep.subr.bf16.mxu0 0
        %3252 = vmatpush1.bf16.xpose.msra.mxu0 0
        %3253 = vmatprep.subr.bf16.mxu0 0
        %3254 = vmatpush1.bf16.xpose.msra.mxu0 0
        %3255 = vmatprep.subr.bf16.mxu0 0
        %3256 = vmatpush1.bf16.xpose.msra.mxu0 0
        %3257 = vmatprep.subr.bf16.mxu0 0
        %3258 = vmatpush1.bf16.xpose.msra.mxu0 0
        %3259 = vmatprep.subr.bf16.mxu0 0
        %3260 = vmatpush1.bf16.xpose.msra.mxu0 0
        %3261 = vmatprep.subr.bf16.mxu0 0
        %3262 = vmatpush1.bf16.xpose.msra.mxu0 0
        %3263 = vmatprep.subr.bf16.mxu0 0
        %3264 = vmatpush1.bf16.xpose.msra.mxu0 0
        %3265 = vmatprep.subr.bf16.mxu0 0
        %3266 = vmatpush1.bf16.xpose.msra.mxu0 0
        %3267 = vmatprep.subr.bf16.mxu0 0
        %3268 = vmatpush1.bf16.xpose.msra.mxu0 0
        %3269 = vmatprep.subr.bf16.mxu0 0
        %3270 = vmatpush1.bf16.xpose.msra.mxu0 0
        %3271 = vmatprep.mubr.bf16.mxu0 %v2260
        %3272 = vmatmul.mubr.bf16.gmra.mrb[0].mxu0 %v2259
        %v3273 = vpop.f32.mrb[0].mxu0
        %v3274 = vadd.f32 0.0, %v3273
        %v3275 = vpop.f32.mrb[0].mxu0
        %v3276 = vpop.f32.mrb[0].mxu0
        %v3277 = vpop.f32.mrb[0].mxu0
        %3278 = vdwg.mxu0
        %3279 = vmatprep.subr.bf16.mxu0 %v2890
        %3280 = vmatpush1.bf16.xpose.msra.mxu0 %v2889
        %3281 = vmatprep.subr.bf16.mxu0 %v2894
        %3282 = vmatpush1.bf16.xpose.msra.mxu0 %v2893
        %3283 = vmatprep.subr.bf16.mxu0 0
        %3284 = vmatpush1.bf16.xpose.msra.mxu0 0
        %3285 = vmatprep.subr.bf16.mxu0 0
        %3286 = vmatpush1.bf16.xpose.msra.mxu0 0
        %3287 = vmatprep.subr.bf16.mxu0 0
        %3288 = vmatpush1.bf16.xpose.msra.mxu0 0
        %3289 = vmatprep.subr.bf16.mxu0 0
        %3290 = vmatpush1.bf16.xpose.msra.mxu0 0
        %3291 = vmatprep.subr.bf16.mxu0 0
        %3292 = vmatpush1.bf16.xpose.msra.mxu0 0
        %3293 = vmatprep.subr.bf16.mxu0 0
        %3294 = vmatpush1.bf16.xpose.msra.mxu0 0
        %3295 = vmatprep.subr.bf16.mxu0 0
        %3296 = vmatpush1.bf16.xpose.msra.mxu0 0
        %3297 = vmatprep.subr.bf16.mxu0 0
        %3298 = vmatpush1.bf16.xpose.msra.mxu0 0
        %3299 = vmatprep.subr.bf16.mxu0 0
        %3300 = vmatpush1.bf16.xpose.msra.mxu0 0
        %3301 = vmatprep.subr.bf16.mxu0 0
        %3302 = vmatpush1.bf16.xpose.msra.mxu0 0
        %3303 = vmatprep.subr.bf16.mxu0 0
        %3304 = vmatpush1.bf16.xpose.msra.mxu0 0
        %3305 = vmatprep.subr.bf16.mxu0 0
        %3306 = vmatpush1.bf16.xpose.msra.mxu0 0
        %3307 = vmatprep.subr.bf16.mxu0 0
        %3308 = vmatpush1.bf16.xpose.msra.mxu0 0
        %3309 = vmatprep.subr.bf16.mxu0 0
        %3310 = vmatpush1.bf16.xpose.msra.mxu0 0
        %3311 = vmatprep.mubr.bf16.mxu0 %v2262
        %3312 = vmatmul.mubr.bf16.gmra.mrb[0].mxu0 %v2261
        %v3313 = vpop.f32.mrb[0].mxu0
        %v3314 = vadd.f32 %v3274, %v3313
        %v3315 = vpop.f32.mrb[0].mxu0
        %v3316 = vpop.f32.mrb[0].mxu0
        %v3317 = vpop.f32.mrb[0].mxu0
        %3318 = vdwg.mxu0
        %3319 = vmatprep.subr.bf16.mxu0 %v2896
        %3320 = vmatpush1.bf16.xpose.msra.mxu0 %v2895
        %3321 = vmatprep.subr.bf16.mxu0 %v2900
        %3322 = vmatpush1.bf16.xpose.msra.mxu0 %v2899
        %3323 = vmatprep.subr.bf16.mxu0 0
        %3324 = vmatpush1.bf16.xpose.msra.mxu0 0
        %3325 = vmatprep.subr.bf16.mxu0 0
        %3326 = vmatpush1.bf16.xpose.msra.mxu0 0
        %3327 = vmatprep.subr.bf16.mxu0 0
        %3328 = vmatpush1.bf16.xpose.msra.mxu0 0
        %3329 = vmatprep.subr.bf16.mxu0 0
        %3330 = vmatpush1.bf16.xpose.msra.mxu0 0
        %3331 = vmatprep.subr.bf16.mxu0 0
        %3332 = vmatpush1.bf16.xpose.msra.mxu0 0
        %3333 = vmatprep.subr.bf16.mxu0 0
        %3334 = vmatpush1.bf16.xpose.msra.mxu0 0
        %3335 = vmatprep.subr.bf16.mxu0 0
        %3336 = vmatpush1.bf16.xpose.msra.mxu0 0
        %3337 = vmatprep.subr.bf16.mxu0 0
        %3338 = vmatpush1.bf16.xpose.msra.mxu0 0
        %3339 = vmatprep.subr.bf16.mxu0 0
        %3340 = vmatpush1.bf16.xpose.msra.mxu0 0
        %3341 = vmatprep.subr.bf16.mxu0 0
        %3342 = vmatpush1.bf16.xpose.msra.mxu0 0
        %3343 = vmatprep.subr.bf16.mxu0 0
        %3344 = vmatpush1.bf16.xpose.msra.mxu0 0
        %3345 = vmatprep.subr.bf16.mxu0 0
        %3346 = vmatpush1.bf16.xpose.msra.mxu0 0
        %3347 = vmatprep.subr.bf16.mxu0 0
        %3348 = vmatpush1.bf16.xpose.msra.mxu0 0
        %3349 = vmatprep.subr.bf16.mxu0 0
        %3350 = vmatpush1.bf16.xpose.msra.mxu0 0
        %3351 = vmatprep.mubr.bf16.mxu0 %v2264
        %3352 = vmatmul.mubr.bf16.gmra.mrb[0].mxu0 %v2263
        %v3353 = vpop.f32.mrb[0].mxu0
        %v3354 = vadd.f32 0.0, %v3353
        %v3355 = vpop.f32.mrb[0].mxu0
        %v3356 = vpop.f32.mrb[0].mxu0
        %v3357 = vpop.f32.mrb[0].mxu0
        %3358 = vdwg.mxu0
        %3359 = vmatprep.subr.bf16.mxu0 %v2898
        %3360 = vmatpush1.bf16.xpose.msra.mxu0 %v2897
        %3361 = vmatprep.subr.bf16.mxu0 %v2902
        %3362 = vmatpush1.bf16.xpose.msra.mxu0 %v2901
        %3363 = vmatprep.subr.bf16.mxu0 0
        %3364 = vmatpush1.bf16.xpose.msra.mxu0 0
        %3365 = vmatprep.subr.bf16.mxu0 0
        %3366 = vmatpush1.bf16.xpose.msra.mxu0 0
        %3367 = vmatprep.subr.bf16.mxu0 0
        %3368 = vmatpush1.bf16.xpose.msra.mxu0 0
        %3369 = vmatprep.subr.bf16.mxu0 0
        %3370 = vmatpush1.bf16.xpose.msra.mxu0 0
        %3371 = vmatprep.subr.bf16.mxu0 0
        %3372 = vmatpush1.bf16.xpose.msra.mxu0 0
        %3373 = vmatprep.subr.bf16.mxu0 0
        %3374 = vmatpush1.bf16.xpose.msra.mxu0 0
        %3375 = vmatprep.subr.bf16.mxu0 0
        %3376 = vmatpush1.bf16.xpose.msra.mxu0 0
        %3377 = vmatprep.subr.bf16.mxu0 0
        %3378 = vmatpush1.bf16.xpose.msra.mxu0 0
        %3379 = vmatprep.subr.bf16.mxu0 0
        %3380 = vmatpush1.bf16.xpose.msra.mxu0 0
        %3381 = vmatprep.subr.bf16.mxu0 0
        %3382 = vmatpush1.bf16.xpose.msra.mxu0 0
        %3383 = vmatprep.subr.bf16.mxu0 0
        %3384 = vmatpush1.bf16.xpose.msra.mxu0 0
        %3385 = vmatprep.subr.bf16.mxu0 0
        %3386 = vmatpush1.bf16.xpose.msra.mxu0 0
        %3387 = vmatprep.subr.bf16.mxu0 0
        %3388 = vmatpush1.bf16.xpose.msra.mxu0 0
        %3389 = vmatprep.subr.bf16.mxu0 0
        %3390 = vmatpush1.bf16.xpose.msra.mxu0 0
        %3391 = vmatprep.mubr.bf16.mxu0 %v2266
        %3392 = vmatmul.mubr.bf16.gmra.mrb[0].mxu0 %v2265
        %v3393 = vpop.f32.mrb[0].mxu0
        %v3394 = vadd.f32 %v3354, %v3393
        %v3395 = vpop.f32.mrb[0].mxu0
        %v3396 = vpop.f32.mrb[0].mxu0
        %v3397 = vpop.f32.mrb[0].mxu0
        %3398 = vdwg.mxu0
        %3399 = vmatprep.subr.bf16.mxu0 %v2904
        %3400 = vmatpush1.bf16.xpose.msra.mxu0 %v2903
        %3401 = vmatprep.subr.bf16.mxu0 %v2908
        %3402 = vmatpush1.bf16.xpose.msra.mxu0 %v2907
        %3403 = vmatprep.subr.bf16.mxu0 0
        %3404 = vmatpush1.bf16.xpose.msra.mxu0 0
        %3405 = vmatprep.subr.bf16.mxu0 0
        %3406 = vmatpush1.bf16.xpose.msra.mxu0 0
        %3407 = vmatprep.subr.bf16.mxu0 0
        %3408 = vmatpush1.bf16.xpose.msra.mxu0 0
        %3409 = vmatprep.subr.bf16.mxu0 0
        %3410 = vmatpush1.bf16.xpose.msra.mxu0 0
        %3411 = vmatprep.subr.bf16.mxu0 0
        %3412 = vmatpush1.bf16.xpose.msra.mxu0 0
        %3413 = vmatprep.subr.bf16.mxu0 0
        %3414 = vmatpush1.bf16.xpose.msra.mxu0 0
        %3415 = vmatprep.subr.bf16.mxu0 0
        %3416 = vmatpush1.bf16.xpose.msra.mxu0 0
        %3417 = vmatprep.subr.bf16.mxu0 0
        %3418 = vmatpush1.bf16.xpose.msra.mxu0 0
        %3419 = vmatprep.subr.bf16.mxu0 0
        %3420 = vmatpush1.bf16.xpose.msra.mxu0 0
        %3421 = vmatprep.subr.bf16.mxu0 0
        %3422 = vmatpush1.bf16.xpose.msra.mxu0 0
        %3423 = vmatprep.subr.bf16.mxu0 0
        %3424 = vmatpush1.bf16.xpose.msra.mxu0 0
        %3425 = vmatprep.subr.bf16.mxu0 0
        %3426 = vmatpush1.bf16.xpose.msra.mxu0 0
        %3427 = vmatprep.subr.bf16.mxu0 0
        %3428 = vmatpush1.bf16.xpose.msra.mxu0 0
        %3429 = vmatprep.subr.bf16.mxu0 0
        %3430 = vmatpush1.bf16.xpose.msra.mxu0 0
        %3431 = vmatprep.mubr.bf16.mxu0 %v2268
        %3432 = vmatmul.mubr.bf16.gmra.mrb[0].mxu0 %v2267
        %v3433 = vpop.f32.mrb[0].mxu0
        %v3434 = vadd.f32 0.0, %v3433
        %v3435 = vpop.f32.mrb[0].mxu0
        %v3436 = vpop.f32.mrb[0].mxu0
        %v3437 = vpop.f32.mrb[0].mxu0
        %3438 = vdwg.mxu0
        %3439 = vmatprep.subr.bf16.mxu0 %v2906
        %3440 = vmatpush1.bf16.xpose.msra.mxu0 %v2905
        %3441 = vmatprep.subr.bf16.mxu0 %v2910
        %3442 = vmatpush1.bf16.xpose.msra.mxu0 %v2909
        %3443 = vmatprep.subr.bf16.mxu0 0
        %3444 = vmatpush1.bf16.xpose.msra.mxu0 0
        %3445 = vmatprep.subr.bf16.mxu0 0
        %3446 = vmatpush1.bf16.xpose.msra.mxu0 0
        %3447 = vmatprep.subr.bf16.mxu0 0
        %3448 = vmatpush1.bf16.xpose.msra.mxu0 0
        %3449 = vmatprep.subr.bf16.mxu0 0
        %3450 = vmatpush1.bf16.xpose.msra.mxu0 0
        %3451 = vmatprep.subr.bf16.mxu0 0
        %3452 = vmatpush1.bf16.xpose.msra.mxu0 0
        %3453 = vmatprep.subr.bf16.mxu0 0
        %3454 = vmatpush1.bf16.xpose.msra.mxu0 0
        %3455 = vmatprep.subr.bf16.mxu0 0
        %3456 = vmatpush1.bf16.xpose.msra.mxu0 0
        %3457 = vmatprep.subr.bf16.mxu0 0
        %3458 = vmatpush1.bf16.xpose.msra.mxu0 0
        %3459 = vmatprep.subr.bf16.mxu0 0
        %3460 = vmatpush1.bf16.xpose.msra.mxu0 0
        %3461 = vmatprep.subr.bf16.mxu0 0
        %3462 = vmatpush1.bf16.xpose.msra.mxu0 0
        %3463 = vmatprep.subr.bf16.mxu0 0
        %3464 = vmatpush1.bf16.xpose.msra.mxu0 0
        %3465 = vmatprep.subr.bf16.mxu0 0
        %3466 = vmatpush1.bf16.xpose.msra.mxu0 0
        %3467 = vmatprep.subr.bf16.mxu0 0
        %3468 = vmatpush1.bf16.xpose.msra.mxu0 0
        %3469 = vmatprep.subr.bf16.mxu0 0
        %3470 = vmatpush1.bf16.xpose.msra.mxu0 0
        %3471 = vmatprep.mubr.bf16.mxu0 %v2270
        %3472 = vmatmul.mubr.bf16.gmra.mrb[0].mxu0 %v2269
        %v3473 = vpop.f32.mrb[0].mxu0
        %v3474 = vadd.f32 %v3434, %v3473
        %v3475 = vpop.f32.mrb[0].mxu0
        %v3476 = vpop.f32.mrb[0].mxu0
        %v3477 = vpop.f32.mrb[0].mxu0
        %3478 = vdwg.mxu0
        %3479 = vmatprep.subr.bf16.mxu0 %v2912
        %3480 = vmatpush1.bf16.xpose.msra.mxu0 %v2911
        %3481 = vmatprep.subr.bf16.mxu0 %v2916
        %3482 = vmatpush1.bf16.xpose.msra.mxu0 %v2915
        %3483 = vmatprep.subr.bf16.mxu0 0
        %3484 = vmatpush1.bf16.xpose.msra.mxu0 0
        %3485 = vmatprep.subr.bf16.mxu0 0
        %3486 = vmatpush1.bf16.xpose.msra.mxu0 0
        %3487 = vmatprep.subr.bf16.mxu0 0
        %3488 = vmatpush1.bf16.xpose.msra.mxu0 0
        %3489 = vmatprep.subr.bf16.mxu0 0
        %3490 = vmatpush1.bf16.xpose.msra.mxu0 0
        %3491 = vmatprep.subr.bf16.mxu0 0
        %3492 = vmatpush1.bf16.xpose.msra.mxu0 0
        %3493 = vmatprep.subr.bf16.mxu0 0
        %3494 = vmatpush1.bf16.xpose.msra.mxu0 0
        %3495 = vmatprep.subr.bf16.mxu0 0
        %3496 = vmatpush1.bf16.xpose.msra.mxu0 0
        %3497 = vmatprep.subr.bf16.mxu0 0
        %3498 = vmatpush1.bf16.xpose.msra.mxu0 0
        %3499 = vmatprep.subr.bf16.mxu0 0
        %3500 = vmatpush1.bf16.xpose.msra.mxu0 0
        %3501 = vmatprep.subr.bf16.mxu0 0
        %3502 = vmatpush1.bf16.xpose.msra.mxu0 0
        %3503 = vmatprep.subr.bf16.mxu0 0
        %3504 = vmatpush1.bf16.xpose.msra.mxu0 0
        %3505 = vmatprep.subr.bf16.mxu0 0
        %3506 = vmatpush1.bf16.xpose.msra.mxu0 0
        %3507 = vmatprep.subr.bf16.mxu0 0
        %3508 = vmatpush1.bf16.xpose.msra.mxu0 0
        %3509 = vmatprep.subr.bf16.mxu0 0
        %3510 = vmatpush1.bf16.xpose.msra.mxu0 0
        %3511 = vmatprep.mubr.bf16.mxu0 %v2272
        %3512 = vmatmul.mubr.bf16.gmra.mrb[0].mxu0 %v2271
        %v3513 = vpop.f32.mrb[0].mxu0
        %v3514 = vadd.f32 0.0, %v3513
        %v3515 = vpop.f32.mrb[0].mxu0
        %v3516 = vpop.f32.mrb[0].mxu0
        %v3517 = vpop.f32.mrb[0].mxu0
        %3518 = vdwg.mxu0
        %3519 = vmatprep.subr.bf16.mxu0 %v2914
        %3520 = vmatpush1.bf16.xpose.msra.mxu0 %v2913
        %3521 = vmatprep.subr.bf16.mxu0 %v2918
        %3522 = vmatpush1.bf16.xpose.msra.mxu0 %v2917
        %3523 = vmatprep.subr.bf16.mxu0 0
        %3524 = vmatpush1.bf16.xpose.msra.mxu0 0
        %3525 = vmatprep.subr.bf16.mxu0 0
        %3526 = vmatpush1.bf16.xpose.msra.mxu0 0
        %3527 = vmatprep.subr.bf16.mxu0 0
        %3528 = vmatpush1.bf16.xpose.msra.mxu0 0
        %3529 = vmatprep.subr.bf16.mxu0 0
        %3530 = vmatpush1.bf16.xpose.msra.mxu0 0
        %3531 = vmatprep.subr.bf16.mxu0 0
        %3532 = vmatpush1.bf16.xpose.msra.mxu0 0
        %3533 = vmatprep.subr.bf16.mxu0 0
        %3534 = vmatpush1.bf16.xpose.msra.mxu0 0
        %3535 = vmatprep.subr.bf16.mxu0 0
        %3536 = vmatpush1.bf16.xpose.msra.mxu0 0
        %3537 = vmatprep.subr.bf16.mxu0 0
        %3538 = vmatpush1.bf16.xpose.msra.mxu0 0
        %3539 = vmatprep.subr.bf16.mxu0 0
        %3540 = vmatpush1.bf16.xpose.msra.mxu0 0
        %3541 = vmatprep.subr.bf16.mxu0 0
        %3542 = vmatpush1.bf16.xpose.msra.mxu0 0
        %3543 = vmatprep.subr.bf16.mxu0 0
        %3544 = vmatpush1.bf16.xpose.msra.mxu0 0
        %3545 = vmatprep.subr.bf16.mxu0 0
        %3546 = vmatpush1.bf16.xpose.msra.mxu0 0
        %3547 = vmatprep.subr.bf16.mxu0 0
        %3548 = vmatpush1.bf16.xpose.msra.mxu0 0
        %3549 = vmatprep.subr.bf16.mxu0 0
        %3550 = vmatpush1.bf16.xpose.msra.mxu0 0
        %3551 = vmatprep.mubr.bf16.mxu0 %v2274
        %3552 = vmatmul.mubr.bf16.gmra.mrb[0].mxu0 %v2273
        %v3553 = vpop.f32.mrb[0].mxu0
        %v3554 = vadd.f32 %v3514, %v3553
        %v3555 = vpop.f32.mrb[0].mxu0
        %v3556 = vpop.f32.mrb[0].mxu0
        %v3557 = vpop.f32.mrb[0].mxu0
        %3558 = vdwg.mxu0
        %v3559 = vsel %vm1904, %v2994, 0.0
        %v3560 = vsel %vm1904, %v3074, 0.0
        %v3561 = vadd.f32 %v3559, %v3560
        %v3562 = vsel %vm1904, %v3154, 0.0
        %v3563 = vadd.f32 %v3561, %v3562
        %v3564 = vsel %vm1904, %v3234, 0.0
        %v3565 = vadd.f32 %v3563, %v3564
        %v3566 = vsel %vm1904, %v3314, 0.0
        %v3567 = vadd.f32 %v3565, %v3566
        %v3568 = vsel %vm1904, %v3394, 0.0
        %v3569 = vadd.f32 %v3567, %v3568
        %v3570 = vsel %vm1904, %v3474, 0.0
        %v3571 = vadd.f32 %v3569, %v3570
        %v3572 = vsel %vm1904, %v3554, 0.0
        %v3573 = vadd.f32 %v3571, %v3572
        %v3574 = vadd.f32 %v1922, %v3573
        %3575 = vst.msk [vmem:[#allocation3] sm:$0xff] %vm1904, %v3574
        // Predicated region
        $region41: #{tpu_custom_call.1} parent=27 // pred_check
          _
        $region42: #{tpu_custom_call.1} parent=27 // pred_check_branch
          %3577 = sbr.rel (%p255) target = $region44
        $region43: #{tpu_custom_call.1} parent=27 // pred_region
          %v3578 = vld [vmem:[#allocation2] sm:$0xff]
          %v3579 = vld [vmem:[#allocation3] sm:$0xff]
          %3580 = vst.msk [vmem:[%s247] sm:$0xff] %vm1904, %v3578
          %3581 = vst.msk [vmem:[%s247 + $0x8] sm:$0xff] %vm1904, %v3579
        $region44: #{tpu_custom_call.1} parent=27 // pred_fallthru
          _
        %s3582 = sand.u32 %s122, 1
        %s3583 = scalar_lea.sflag [#allocation6], %s3582
        %s3584 = sand.u32 %s122, 1
        %s3585 = smul.addr %s3584, 16
        %s3586 = scalar_lea.vmem [#allocation9], %s3585
        // Predicated region
        $region45: #{tpu_custom_call.1} parent=27 // pred_check
          %p3587 = pneg %p132
        $region46: #{tpu_custom_call.1} parent=27 // pred_check_branch
          %3589 = sbr.rel (%p3587) target = $region48
        $region47: #{tpu_custom_call.1} parent=27 // pred_region
          %s3591 = ssub.s32 256, 256
          %3592 = vsyncadd %s3583, %s3591
          %s3593 = smul.addr %s29, 2
          %s3594 = smul.addr %s28, 4
          %s3595 = sadd.s32 %s3593, %s3594
          %s3596 = smul.addr %s3595, 128
          %s3597 = scalar_lea.hbm %s2, %s3596
          %s3598 = sshll.u32 %s3586, 4
          %s3599 = int_to_ptr.vmem [resolvable:$true] %s3598
          %3604 = dma.vmem_to_hbm [thread:$0]  %s3599, 256, %s3597, %s3583, 128, 128, 8
        $region48: #{tpu_custom_call.1} parent=27 // pred_fallthru
          _
      $region28: #{tpu_custom_call.1} parent=5 // pred_fallthru
        _
      %p3605 = scmp.le.s32.totalorder 2, %s17
      // Predicated region
      $region49: #{tpu_custom_call.1} parent=5 // pred_check
        %p3606 = pneg %p3605
      $region50: #{tpu_custom_call.1} parent=5 // pred_check_branch
        %3608 = sbr.rel (%p3606) target = $region52
      $region51: #{tpu_custom_call.1} parent=5 // pred_region
        %s3609 = ssub.s32 %s17, 2
        // Predicated region
        $region53: #{tpu_custom_call.1} parent=51 // pred_check
          %p3610 = pneg %p138
        $region54: #{tpu_custom_call.1} parent=51 // pred_check_branch
          %3612 = sbr.rel (%p3610) target = $region56
        $region55: #{tpu_custom_call.1} parent=51 // pred_region
          %s3613 = sand.u32 %s123, 1
          %s3614 = scalar_lea.sflag [#allocation6], %s3613
          %s3615 = sand.u32 %s123, 1
          %s3616 = smul.addr %s3615, 16
          %s3617 = scalar_lea.vmem [#allocation9], %s3616
          %3618 = dma.done %s3614, 256
        $region56: #{tpu_custom_call.1} parent=51 // pred_fallthru
          _
      $region52: #{tpu_custom_call.1} parent=5 // pred_fallthru
        _
    $region6: #{tpu_custom_call.1} parent=1 // loop_footer
      %s21 = sadd.s32 1, %s17
    $region7: #{tpu_custom_call.1} parent=1 // loop_footer_branch
      %16 = sbr.rel target = $region3
    $region8: #{tpu_custom_call.1} parent=1 // loop_exit
      _
    %3619 = vsyncpa [#allocation5], 1
    %s3620 = scalar_lea.sflag [#allocation5], 1
    %3621 = vsyncpa %s3620, 1
    %3622 = vsyncpa [#allocation8], 1
    %s3623 = scalar_lea.sflag [#allocation8], 1
    %3624 = vsyncpa %s3623, 1
    %3625 = vsyncpa [#allocation6], 1
    %s3626 = scalar_lea.sflag [#allocation6], 1
    %3627 = vsyncpa %s3626, 1

</llo_original>
